<compile_context>
chip_gen: v7x
topology: tpu7x:2x2x1
jax: 0.10.0
libtpu: 0.0.40
codegen_flags: <defaults>
</compile_context>

<pallas_src>
import jax
import jax.numpy as jnp
from jax.experimental import pallas as pl
from jax.experimental.pallas import tpu as pltpu

_BN_EPS = 1e-5
_LANE = 128


def _round_up(x, m):
    return (x + m - 1) // m * m


# ----------------------------------------------------------------------------
# Kernel
# ----------------------------------------------------------------------------
def _conv3x3_bias_relu(xpad, w_packed, bias, w_valid):
    """3x3 'SAME' conv + folded-BN bias + ReLU on one zero-padded VMEM tile.

    xpad:     (H+2, Wp, Cin)   bf16 value, zero padded (Wp >= w_valid + 2)
    w_packed: (3*Cin, 3*Cout)  bf16, [ky*Cin + ci, kx*Cout + co]
    bias:     (1, Cout)        f32
    returns:  (H, w_valid, Cout) f32
    """
    hp, wp, cin = xpad.shape
    h = hp - 2
    cout = bias.shape[-1]

    # Row taps (ky) folded into the contraction dim: contiguous leading-axis
    # slices only (no strided copies).  K = 3*Cin.
    patch = jnp.concatenate([xpad[0:h], xpad[1:h + 1], xpad[2:h + 2]], axis=-1)

    # One MXU matmul per conv layer: (H*Wp, 3*Cin) @ (3*Cin, 3*Cout), f32 accum.
    full = jnp.dot(patch.reshape(h * wp, 3 * cin), w_packed,
                   preferred_element_type=jnp.float32)
    full = full.reshape(h, wp, 3 * cout)

    # Column taps (kx): the three partial sums live in disjoint, lane-aligned
    # channel groups; combine them with width shifts of 0 / 1 / 2 columns.
    acc = (full[:, 0:w_valid, 0:cout]
           + full[:, 1:w_valid + 1, cout:2 * cout]
           + full[:, 2:w_valid + 2, 2 * cout:3 * cout])

    # BatchNorm (eval, scale folded into weights) bias + ReLU epilogue in f32.
    return jnp.maximum(acc + bias, 0.0)


def _decoder_block_kernel(xin_ref, w1_ref, b1_ref, w2_ref, b2_ref, o_ref,
                          xpad_ref, mid_ref):
    """One batch element: conv1+BN+ReLU -> conv2+BN+ReLU fully inside VMEM.

    xin_ref:  (Ho, Wo, Cin)       bf16  (upsampled x concat skip, NHWC)
    w1_ref:   (3*Cin, 3*Cmid)     bf16  packed, BN1 scale folded in
    b1_ref:   (1, Cmid)           f32
    w2_ref:   (3*Cmid, 3*Cout)    bf16  packed, BN2 scale folded in
    b2_ref:   (1, Cout)           f32
    o_ref:    (Ho, Wo, Cout)      bf16  (Cout padded to a multiple of 128)
    xpad_ref: (Ho+2, Wp, Cin)     bf16  scratch (zero-padded conv1 input)
    mid_ref:  (Ho+2, Wp, Cmid)    bf16  scratch (zero-padded intermediate)
    """
    ho, wo, _ = o_ref.shape

    # conv1 input: the spatial "SAME" zero padding is fused here (VMEM) instead
    # of materialising a padded HBM copy.  Scratch is re-zeroed every step:
    # with a "parallel" grid axis the steps may be sharded across TensorCores,
    # so no cross-step scratch state is assumed.
    xpad_ref[...] = jnp.zeros_like(xpad_ref)
    xpad_ref[1:ho + 1, 1:wo + 1, :] = xin_ref[...]
    y1 = _conv3x3_bias_relu(xpad_ref[...], w1_ref[...], b1_ref[...], wo)

    # conv2 input: the intermediate activation stays in VMEM (never hits HBM).
    mid_ref[...] = jnp.zeros_like(mid_ref)
    mid_ref[1:ho + 1, 1:wo + 1, :] = y1.astype(mid_ref.dtype)
    y2 = _conv3x3_bias_relu(mid_ref[...], w2_ref[...], b2_ref[...], wo)

    # Lane-dense store: o_ref's channel dim is a multiple of 128.
    o_ref[...] = y2.astype(o_ref.dtype)


def _fused_convs(xin, w1, b1, w2, b2):
    """xin: (N, Ho, Wo, Cin) bf16.  Returns (N, Ho, Wo, Cout_pad) bf16."""
    n, ho, wo, cin = xin.shape
    cmid = b1.shape[-1]
    cout = b2.shape[-1]
    wp = _round_up(wo + 2, 8)  # sublane-aligned padded width for the VMEM tiles

    return pl.pallas_call(
        _decoder_block_kernel,
        out_shape=jax.ShapeDtypeStruct((n, ho, wo, cout), jnp.bfloat16),
        grid=(n,),
        in_specs=[
            pl.BlockSpec((pl.Squeezed(), ho, wo, cin), lambda i: (i, 0, 0, 0)),
            pl.BlockSpec((3 * cin, 3 * cmid), lambda i: (0, 0)),
            pl.BlockSpec((1, cmid), lambda i: (0, 0)),
            pl.BlockSpec((3 * cmid, 3 * cout), lambda i: (0, 0)),
            pl.BlockSpec((1, cout), lambda i: (0, 0)),
        ],
        out_specs=pl.BlockSpec((pl.Squeezed(), ho, wo, cout),
                               lambda i: (i, 0, 0, 0)),
        scratch_shapes=[
            pltpu.VMEM((ho + 2, wp, cin), jnp.bfloat16),    # padded conv1 input
            pltpu.VMEM((ho + 2, wp, cmid), jnp.bfloat16),   # padded intermediate
        ],
        compiler_params=pltpu.CompilerParams(
            dimension_semantics=("parallel",),   # batch steps are independent
            vmem_limit_bytes=32 * 1024 * 1024,   # explicit; fits v5e/v6e/v7x budgets
        ),
    )(xin, w1, b1, w2, b2)


# ----------------------------------------------------------------------------
# Parameter prep (wrapper-side, glue only)
# ----------------------------------------------------------------------------
def _bn_scale_bias(params, idx):
    scale = params[f"bn{idx}_gamma"] / jnp.sqrt(params[f"bn{idx}_var"] + _BN_EPS)
    bias = params[f"bn{idx}_beta"] - params[f"bn{idx}_mean"] * scale
    return scale, bias


def _fold_pack_conv_bn(w_oihw, scale, bias, cin_pad, cout_pad):
    """Fold eval-mode BN scale into the conv weight, zero-pad channels for lane
    density, and pack to the (3*cin_pad, 3*cout_pad) layout the kernel's single
    matmul expects: row = ky*cin_pad + ci, col = kx*cout_pad + co."""
    w = jnp.transpose(w_oihw, (2, 3, 1, 0)) * scale          # OIHW -> HWIO, scaled
    kh, kw, cin, cout = w.shape
    w_pad = jnp.zeros((kh, kw, cin_pad, cout_pad), jnp.float32)
    w_pad = w_pad.at[:, :, :cin, :cout].set(w)
    w_packed = jnp.transpose(w_pad, (0, 2, 1, 3)).reshape(kh * cin_pad, kw * cout_pad)
    b_pad = jnp.zeros((1, cout_pad), jnp.float32).at[0, :cout].set(bias)
    return w_packed.astype(jnp.bfloat16), b_pad


def make_decoder_params(key, in_num_channels, out_num_channels):
    """Deterministic synthetic parameters (PyTorch shapes: conv weight OIHW)."""
    ks = jax.random.split(key, 10)

    def conv_w(k, ci, co):
        bound = 1.0 / jnp.sqrt(jnp.float32(ci * 9))
        return jax.random.uniform(k, (co, ci, 3, 3), jnp.float32, -bound, bound)

    return {
        "conv1_w":  conv_w(ks[0], in_num_channels, out_num_channels),
        "bn1_gamma": jax.random.uniform(ks[1], (out_num_channels,), jnp.float32, 0.5, 1.5),
        "bn1_beta":  jax.random.uniform(ks[2], (out_num_channels,), jnp.float32, -0.2, 0.2),
        "bn1_mean":  jax.random.uniform(ks[3], (out_num_channels,), jnp.float32, -0.2, 0.2),
        "bn1_var":   jax.random.uniform(ks[4], (out_num_channels,), jnp.float32, 0.5, 1.5),
        "conv2_w":  conv_w(ks[5], out_num_channels, out_num_channels),
        "bn2_gamma": jax.random.uniform(ks[6], (out_num_channels,), jnp.float32, 0.5, 1.5),
        "bn2_beta":  jax.random.uniform(ks[7], (out_num_channels,), jnp.float32, -0.2, 0.2),
        "bn2_mean":  jax.random.uniform(ks[8], (out_num_channels,), jnp.float32, -0.2, 0.2),
        "bn2_var":   jax.random.uniform(ks[9], (out_num_channels,), jnp.float32, 0.5, 1.5),
    }


def decoder_block_forward(params, x_nchw, skip_nchw, upsampling_scale=2):
    """Matches DecoderBlock.forward: upsample(nearest) -> concat(ch) -> 2x ConvBlock."""
    cout_real = params["conv1_w"].shape[0]           # out_num_channels
    cin1 = params["conv1_w"].shape[1]                # in_num_channels = C_x + C_skip
    cmid = _round_up(cout_real, _LANE)               # lane-dense intermediate channels
    cout = _round_up(cout_real, _LANE)               # lane-dense output channels

    s1, bias1 = _bn_scale_bias(params, 1)
    s2, bias2 = _bn_scale_bias(params, 2)
    w1, b1 = _fold_pack_conv_bn(params["conv1_w"], s1, bias1, cin1, cmid)
    w2, b2 = _fold_pack_conv_bn(params["conv2_w"], s2, bias2, cmid, cout)

    # NCHW -> NHWC once at the module boundary; everything inside stays NHWC.
    x = jnp.transpose(x_nchw, (0, 2, 3, 1))
    skip = jnp.transpose(skip_nchw, (0, 2, 3, 1))
    # nn.Upsample(scale_factor=s, mode='nearest') + torch.cat(dim=channels).
    x = jnp.repeat(jnp.repeat(x, upsampling_scale, axis=1), upsampling_scale, axis=2)
    xin = jnp.concatenate([x, skip], axis=-1).astype(jnp.bfloat16)   # bf16 activations

    out = _fused_convs(xin, w1, b1, w2, b2)            # (N, 2H, 2W, cout) bf16
    out = out[..., :cout_real].astype(jnp.float32)     # drop lane padding
    return jnp.transpose(out, (0, 3, 1, 2))            # back to NCHW (PyTorch)


# ----------------------------------------------------------------------------
# Pure-JAX reference (lax.conv) with the same bf16 quantisation points,
# used as a correctness sanity check of the Pallas path.
# ----------------------------------------------------------------------------
def _reference_forward(params, x_nchw, skip_nchw, upsampling_scale=2):
    x = jnp.transpose(x_nchw, (0, 2, 3, 1))
    skip = jnp.transpose(skip_nchw, (0, 2, 3, 1))
    x = jnp.repeat(jnp.repeat(x, upsampling_scale, axis=1), upsampling_scale, axis=2)
    h = jnp.concatenate([x, skip], axis=-1).astype(jnp.bfloat16)
    for i in (1, 2):
        scale, bias = _bn_scale_bias(params, i)
        w = (jnp.transpose(params[f"conv{i}_w"], (2, 3, 1, 0)) * scale).astype(jnp.bfloat16)
        h = jax.lax.conv_general_dilated(
            h, w, window_strides=(1, 1), padding="SAME",
            dimension_numbers=("NHWC", "HWIO", "NHWC"),
            preferred_element_type=jnp.float32)
        h = jnp.maximum(h + bias, 0.0).astype(jnp.bfloat16)
    return jnp.transpose(h.astype(jnp.float32), (0, 3, 1, 2))


if __name__ == "__main__":
    key = jax.random.PRNGKey(0)
    k_x, k_skip, k_params = jax.random.split(key, 3)

    # x: (N, C_x, H, W) -> upsampled x2 ; skip: (N, C_skip, 2H, 2W)
    # ConvBlock-1 input channels = C_x + C_skip = in_num_channels
    N, C_x, H, W = 2, 4, 8, 8
    C_skip = 4
    in_num_channels = C_x + C_skip     # 8
    out_num_channels = 4

    x = jax.random.normal(k_x, (N, C_x, H, W), jnp.float32)
    skip = jax.random.normal(k_skip, (N, C_skip, 2 * H, 2 * W), jnp.float32)
    params = make_decoder_params(k_params, in_num_channels, out_num_channels)

    fwd = jax.jit(decoder_block_forward)
    out = jax.block_until_ready(fwd(params, x, skip))
    assert out.shape == (N, out_num_channels, 2 * H, 2 * W), out.shape

    ref = jax.block_until_ready(_reference_forward(params, x, skip))
    max_err = float(jnp.max(jnp.abs(out - ref)))
    # bf16 weights/activations with f32 accumulation: both paths use the same
    # quantisation points, so they agree up to bf16 rounding of the intermediate.
    assert jnp.allclose(out, ref, rtol=2e-2, atol=2e-2), max_err

    print("KERNEL_OK")
</pallas_src>

<mosaic_0001>
module attributes {stable_mosaic.version = 11 : i64} {
  func.func @_decoder_block_kernel(%arg0: i32, %arg1: memref<1x16x16x8xbf16, #tpu.memory_space<vmem>>, %arg2: memref<24x384xbf16, #tpu.memory_space<vmem>>, %arg3: memref<1x128xf32, #tpu.memory_space<vmem>>, %arg4: memref<384x384xbf16, #tpu.memory_space<vmem>>, %arg5: memref<1x128xf32, #tpu.memory_space<vmem>>, %arg6: memref<1x16x16x128xbf16, #tpu.memory_space<vmem>>, %arg7: memref<18x24x8xbf16, #tpu.memory_space<vmem>>, %arg8: memref<18x24x128xbf16, #tpu.memory_space<vmem>>) attributes {dimension_semantics = [#tpu.dimension_semantics<parallel>], iteration_bounds = array<i64: 2>, scalar_prefetch = 0 : i64, scratch_operands = 2 : i64, tpu.core_type = #tpu.core_type<tc>, window_params = [{transform_indices = @transform_0, window_bounds = array<i64: 1, 16, 16, 8>}, {pipeline_mode = #tpu.pipeline_mode<synchronous>, transform_indices = @transform_1, window_bounds = array<i64: 24, 384>}, {pipeline_mode = #tpu.pipeline_mode<synchronous>, transform_indices = @transform_2, window_bounds = array<i64: 1, 128>}, {pipeline_mode = #tpu.pipeline_mode<synchronous>, transform_indices = @transform_3, window_bounds = array<i64: 384, 384>}, {pipeline_mode = #tpu.pipeline_mode<synchronous>, transform_indices = @transform_4, window_bounds = array<i64: 1, 128>}, {transform_indices = @transform_5, window_bounds = array<i64: 1, 16, 16, 128>}]} {
    %cst = arith.constant 0.000000e+00 : bf16
    %0 = vector.broadcast %cst : bf16 to vector<18x24x8xbf16>
    %c0 = arith.constant 0 : index
    %c0_0 = arith.constant 0 : index
    %c0_1 = arith.constant 0 : index
    %1 = vector.load %arg7[%c0, %c0_0, %c0_1] : memref<18x24x8xbf16, #tpu.memory_space<vmem>>, vector<18x24x8xbf16>
    tpu.vector_store %arg7[%c0, %c0_0, %c0_1], %0 {strides = array<i32>} : memref<18x24x8xbf16, #tpu.memory_space<vmem>>, vector<18x24x8xbf16>,
    %c0_2 = arith.constant 0 : index
    %c0_3 = arith.constant 0 : index
    %c0_4 = arith.constant 0 : index
    %c0_5 = arith.constant 0 : index
    %2 = vector.load %arg1[%c0_2, %c0_3, %c0_4, %c0_5] : memref<1x16x16x8xbf16, #tpu.memory_space<vmem>>, vector<1x16x16x8xbf16>
    %3 = vector.shape_cast %2 : vector<1x16x16x8xbf16> to vector<16x16x8xbf16>
    %c1 = arith.constant 1 : index
    %c1_6 = arith.constant 1 : index
    %c0_7 = arith.constant 0 : index
    %4 = vector.load %arg7[%c1, %c1_6, %c0_7] : memref<18x24x8xbf16, #tpu.memory_space<vmem>>, vector<16x16x8xbf16>
    tpu.vector_store %arg7[%c1, %c1_6, %c0_7], %3 {strides = array<i32>} : memref<18x24x8xbf16, #tpu.memory_space<vmem>>, vector<16x16x8xbf16>,
    %c0_8 = arith.constant 0 : index
    %c0_9 = arith.constant 0 : index
    %c0_10 = arith.constant 0 : index
    %5 = vector.load %arg7[%c0_8, %c0_9, %c0_10] : memref<18x24x8xbf16, #tpu.memory_space<vmem>>, vector<18x24x8xbf16>
    %c0_11 = arith.constant 0 : index
    %c0_12 = arith.constant 0 : index
    %6 = vector.load %arg2[%c0_11, %c0_12] : memref<24x384xbf16, #tpu.memory_space<vmem>>, vector<24x384xbf16>
    %c0_13 = arith.constant 0 : index
    %c0_14 = arith.constant 0 : index
    %7 = vector.load %arg3[%c0_13, %c0_14] : memref<1x128xf32, #tpu.memory_space<vmem>>, vector<1x128xf32>
    %8 = vector.extract_strided_slice %5 {offsets = [0, 0, 0], sizes = [16, 24, 8], strides = [1, 1, 1]} : vector<18x24x8xbf16> to vector<16x24x8xbf16>
    %9 = vector.extract_strided_slice %5 {offsets = [1, 0, 0], sizes = [16, 24, 8], strides = [1, 1, 1]} : vector<18x24x8xbf16> to vector<16x24x8xbf16>
    %10 = vector.extract_strided_slice %5 {offsets = [2, 0, 0], sizes = [16, 24, 8], strides = [1, 1, 1]} : vector<18x24x8xbf16> to vector<16x24x8xbf16>
    %11 = tpu.concatenate %8, %9, %10 in 2 : vector<16x24x8xbf16>, vector<16x24x8xbf16>, vector<16x24x8xbf16> -> vector<16x24x24xbf16>
    %12 = vector.shape_cast %11 : vector<16x24x24xbf16> to vector<384x24xbf16>
    %cst_15 = arith.constant dense<0.000000e+00> : vector<384x384xf32>
    %13 = tpu.matmul %12, %6, %cst_15 {dimension_numbers = #tpu.dot_dimension_numbers<[1], [0], [0], [1], [0, 0, 1, 1], [], []>} : vector<384x24xbf16>, vector<24x384xbf16>, vector<384x384xf32> -> vector<384x384xf32>
    %14 = vector.shape_cast %13 : vector<384x384xf32> to vector<16x24x384xf32>
    %15 = vector.extract_strided_slice %14 {offsets = [0, 0, 0], sizes = [16, 16, 128], strides = [1, 1, 1]} : vector<16x24x384xf32> to vector<16x16x128xf32>
    %16 = vector.extract_strided_slice %14 {offsets = [0, 1, 128], sizes = [16, 16, 128], strides = [1, 1, 1]} : vector<16x24x384xf32> to vector<16x16x128xf32>
    %17 = arith.addf %15, %16 : vector<16x16x128xf32>
    %18 = vector.extract_strided_slice %14 {offsets = [0, 2, 256], sizes = [16, 16, 128], strides = [1, 1, 1]} : vector<16x24x384xf32> to vector<16x16x128xf32>
    %19 = arith.addf %17, %18 : vector<16x16x128xf32>
    %20 = vector.shape_cast %7 : vector<1x128xf32> to vector<1x1x128xf32>
    %21 = vector.broadcast %20 : vector<1x1x128xf32> to vector<16x16x128xf32>
    %22 = arith.addf %19, %21 : vector<16x16x128xf32>
    %cst_16 = arith.constant 0.000000e+00 : f32
    %23 = vector.broadcast %cst_16 : f32 to vector<16x16x128xf32>
    %24 = arith.maximumf %22, %23 : vector<16x16x128xf32>
    %cst_17 = arith.constant 0.000000e+00 : bf16
    %25 = vector.broadcast %cst_17 : bf16 to vector<18x24x128xbf16>
    %c0_18 = arith.constant 0 : index
    %c0_19 = arith.constant 0 : index
    %c0_20 = arith.constant 0 : index
    %26 = vector.load %arg8[%c0_18, %c0_19, %c0_20] : memref<18x24x128xbf16, #tpu.memory_space<vmem>>, vector<18x24x128xbf16>
    tpu.vector_store %arg8[%c0_18, %c0_19, %c0_20], %25 {strides = array<i32>} : memref<18x24x128xbf16, #tpu.memory_space<vmem>>, vector<18x24x128xbf16>,
    %27 = arith.truncf %24 : vector<16x16x128xf32> to vector<16x16x128xbf16>
    %c1_21 = arith.constant 1 : index
    %c1_22 = arith.constant 1 : index
    %c0_23 = arith.constant 0 : index
    %28 = vector.load %arg8[%c1_21, %c1_22, %c0_23] : memref<18x24x128xbf16, #tpu.memory_space<vmem>>, vector<16x16x128xbf16>
    tpu.vector_store %arg8[%c1_21, %c1_22, %c0_23], %27 {strides = array<i32>} : memref<18x24x128xbf16, #tpu.memory_space<vmem>>, vector<16x16x128xbf16>,
    %c0_24 = arith.constant 0 : index
    %c0_25 = arith.constant 0 : index
    %c0_26 = arith.constant 0 : index
    %29 = vector.load %arg8[%c0_24, %c0_25, %c0_26] : memref<18x24x128xbf16, #tpu.memory_space<vmem>>, vector<18x24x128xbf16>
    %c0_27 = arith.constant 0 : index
    %c0_28 = arith.constant 0 : index
    %30 = vector.load %arg4[%c0_27, %c0_28] : memref<384x384xbf16, #tpu.memory_space<vmem>>, vector<384x384xbf16>
    %c0_29 = arith.constant 0 : index
    %c0_30 = arith.constant 0 : index
    %31 = vector.load %arg5[%c0_29, %c0_30] : memref<1x128xf32, #tpu.memory_space<vmem>>, vector<1x128xf32>
    %32 = vector.extract_strided_slice %29 {offsets = [0, 0, 0], sizes = [16, 24, 128], strides = [1, 1, 1]} : vector<18x24x128xbf16> to vector<16x24x128xbf16>
    %33 = vector.extract_strided_slice %29 {offsets = [1, 0, 0], sizes = [16, 24, 128], strides = [1, 1, 1]} : vector<18x24x128xbf16> to vector<16x24x128xbf16>
    %34 = vector.extract_strided_slice %29 {offsets = [2, 0, 0], sizes = [16, 24, 128], strides = [1, 1, 1]} : vector<18x24x128xbf16> to vector<16x24x128xbf16>
    %35 = tpu.concatenate %32, %33, %34 in 2 : vector<16x24x128xbf16>, vector<16x24x128xbf16>, vector<16x24x128xbf16> -> vector<16x24x384xbf16>
    %36 = vector.shape_cast %35 : vector<16x24x384xbf16> to vector<384x384xbf16>
    %cst_31 = arith.constant dense<0.000000e+00> : vector<384x384xf32>
    %37 = tpu.matmul %36, %30, %cst_31 {dimension_numbers = #tpu.dot_dimension_numbers<[1], [0], [0], [1], [0, 0, 1, 1], [], []>} : vector<384x384xbf16>, vector<384x384xbf16>, vector<384x384xf32> -> vector<384x384xf32>
    %38 = vector.shape_cast %37 : vector<384x384xf32> to vector<16x24x384xf32>
    %39 = vector.extract_strided_slice %38 {offsets = [0, 0, 0], sizes = [16, 16, 128], strides = [1, 1, 1]} : vector<16x24x384xf32> to vector<16x16x128xf32>
    %40 = vector.extract_strided_slice %38 {offsets = [0, 1, 128], sizes = [16, 16, 128], strides = [1, 1, 1]} : vector<16x24x384xf32> to vector<16x16x128xf32>
    %41 = arith.addf %39, %40 : vector<16x16x128xf32>
    %42 = vector.extract_strided_slice %38 {offsets = [0, 2, 256], sizes = [16, 16, 128], strides = [1, 1, 1]} : vector<16x24x384xf32> to vector<16x16x128xf32>
    %43 = arith.addf %41, %42 : vector<16x16x128xf32>
    %44 = vector.shape_cast %31 : vector<1x128xf32> to vector<1x1x128xf32>
    %45 = vector.broadcast %44 : vector<1x1x128xf32> to vector<16x16x128xf32>
    %46 = arith.addf %43, %45 : vector<16x16x128xf32>
    %cst_32 = arith.constant 0.000000e+00 : f32
    %47 = vector.broadcast %cst_32 : f32 to vector<16x16x128xf32>
    %48 = arith.maximumf %46, %47 : vector<16x16x128xf32>
    %49 = arith.truncf %48 : vector<16x16x128xf32> to vector<16x16x128xbf16>
    %c0_33 = arith.constant 0 : index
    %c0_34 = arith.constant 0 : index
    %c0_35 = arith.constant 0 : index
    %c0_36 = arith.constant 0 : index
    %50 = vector.load %arg6[%c0_33, %c0_34, %c0_35, %c0_36] : memref<1x16x16x128xbf16, #tpu.memory_space<vmem>>, vector<1x16x16x128xbf16>
    %51 = vector.shape_cast %50 : vector<1x16x16x128xbf16> to vector<16x16x128xbf16>
    %52 = vector.shape_cast %49 : vector<16x16x128xbf16> to vector<1x16x16x128xbf16>
    tpu.vector_store %arg6[%c0_33, %c0_34, %c0_35, %c0_36], %52 {strides = array<i32>} : memref<1x16x16x128xbf16, #tpu.memory_space<vmem>>, vector<1x16x16x128xbf16>,
    return
  }
  func.func @transform_0(%arg0: i32) -> (i32, i32, i32, i32) {
    %c0_i32 = arith.constant 0 : i32
    %c0_i32_0 = arith.constant 0 : i32
    %c0_i32_1 = arith.constant 0 : i32
    %c0_i32_2 = arith.constant 0 : i32
    return %arg0, %c0_i32, %c0_i32_0, %c0_i32_1 : i32, i32, i32, i32
  }
  func.func @transform_1(%arg0: i32) -> (i32, i32) {
    %c0_i32 = arith.constant 0 : i32
    %c0_i32_0 = arith.constant 0 : i32
    %c0_i32_1 = arith.constant 0 : i32
    return %c0_i32, %c0_i32_0 : i32, i32
  }
  func.func @transform_2(%arg0: i32) -> (i32, i32) {
    %c0_i32 = arith.constant 0 : i32
    %c0_i32_0 = arith.constant 0 : i32
    %c0_i32_1 = arith.constant 0 : i32
    return %c0_i32, %c0_i32_0 : i32, i32
  }
  func.func @transform_3(%arg0: i32) -> (i32, i32) {
    %c0_i32 = arith.constant 0 : i32
    %c0_i32_0 = arith.constant 0 : i32
    %c0_i32_1 = arith.constant 0 : i32
    return %c0_i32, %c0_i32_0 : i32, i32
  }
  func.func @transform_4(%arg0: i32) -> (i32, i32) {
    %c0_i32 = arith.constant 0 : i32
    %c0_i32_0 = arith.constant 0 : i32
    %c0_i32_1 = arith.constant 0 : i32
    return %c0_i32, %c0_i32_0 : i32, i32
  }
  func.func @transform_5(%arg0: i32) -> (i32, i32, i32, i32) {
    %c0_i32 = arith.constant 0 : i32
    %c0_i32_0 = arith.constant 0 : i32
    %c0_i32_1 = arith.constant 0 : i32
    %c0_i32_2 = arith.constant 0 : i32
    return %arg0, %c0_i32, %c0_i32_0, %c0_i32_1 : i32, i32, i32, i32
  }
}

</mosaic_0001>

<llo_original>
// kernel: decoder_block_forward.1
$region0: #{decoder_block_forward.1}
  #allocation0 [shape = 'u32[]', space=smem, size = 0x4, offset = 0x4, fixed_abs, tag = 'smem constant byte address 0x4 - core index']
  #allocation1 [shape = 'u32[144,128]{1,0:T(1,128)}', space=vmem, size = 0x12000, scoped, tag = 'internal scratch']
  #allocation2 [shape = 'bf16[18,24,8]{2,1,0:T(8,128)(2,1)}', space=vmem, size = 0x1b000, scoped, tag = 'scratch operand']
  #allocation3 [shape = 'bf16[18,24,128]{2,1,0:T(8,128)(2,1)}', space=vmem, size = 0x1b000, scoped, tag = 'scratch operand']
  %s0 = inlined_call_operand.vmem [shape: bf16[2,16,16,8], index: 0, kind: input, shape index: {}]
  %s1 = inlined_call_operand.vmem [shape: bf16[24,384], index: 1, kind: input, shape index: {}]
  %s2 = inlined_call_operand.vmem [shape: f32[1,128], index: 2, kind: input, shape index: {}]
  %s3 = inlined_call_operand.vmem [shape: bf16[384,384], index: 3, kind: input, shape index: {}]
  %s4 = inlined_call_operand.vmem [shape: f32[1,128], index: 4, kind: input, shape index: {}]
  %s5 = inlined_call_operand.vmem [shape: bf16[2,16,16,128], index: 5, kind: output, shape index: {}]
  %s6 = sld [smem:[#allocation0]]
  $region53: #{decoder_block_forward.1} parent=0
    _
  %s8 = ssub.s32 1, %s6
  %s9 = scalar_select 0, %s8, %s6
  loop: start=0, step=1, limit=4
  $region2: #{decoder_block_forward.1} parent=0 // loop_pre_header
    _
  $region3: #{decoder_block_forward.1} parent=0 // loop_header
    %s11 = sphi 0, %s15
    %p12 = scmp.ge.s32.totalorder %s11, 4
    %s21 = sphi 0, %s23
    %s24 = sphi 0, %s21
    %s25 = sphi 0, %s24
    %s41 = sphi 0, %s25
    %s45 = sphi 0, %s45
    %s47 = sphi 0, %s45
    %s48 = sphi 0, %s47
    %s62 = sphi 0, %s48
    %s66 = sphi 0, %s66
    %s68 = sphi 0, %s66
    %s69 = sphi 0, %s68
    %s83 = sphi 0, %s69
    %s87 = sphi 0, %s87
    %s89 = sphi 0, %s87
    %s90 = sphi 0, %s89
    %s104 = sphi 0, %s90
    %s108 = sphi 0, %s108
    %s110 = sphi 0, %s108
    %s111 = sphi 0, %s110
    %s125 = sphi 0, %s111
    %s131 = sphi 0, %s133
    %s134 = sphi 0, %s131
    %s135 = sphi 0, %s134
    %s151 = sphi 0, %s135
  $region4: #{decoder_block_forward.1} parent=0 // loop_header_branch
    %14 = sbr.rel (%p12) target = $region8
  $region5: #{decoder_block_forward.1} parent=0 // loop_body
    %s16 = ssub.s32 %s11, 1
    %s17 = ssub.s32 %s11, 2
    %s18 = sadd.s32 %s11, 1
    %s19 = ssub.s32 %s11, %s18
    %p20 = scmp.eq.s32.totalorder %s19, 0
    %s22 = sadd.s32 %s21, 1
    %s23 = scalar_select %p20, %s21, %s22
    %p26 = pneg %p20
    %p27 = scmp.eq.s32.totalorder %s11, 1
    %p28 = por %p26, %p27
    %p29 = scmp.ne.s32.totalorder %s21, %s24
    %p30 = scmp.eq.s32.totalorder %s11, 0
    %p31 = por %p29, %p30
    %p32 = scmp.ne.s32.totalorder %s21, %s24
    %p33 = scmp.eq.s32.totalorder %s16, 1
    %p34 = por %p32, %p33
    %p35 = scmp.ne.s32.totalorder %s24, %s25
    %p36 = scmp.eq.s32.totalorder %s16, 0
    %p37 = por %p35, %p36
    %p38 = scmp.ne.s32.totalorder %s24, %s25
    %p39 = scmp.eq.s32.totalorder %s17, 1
    %p40 = por %p38, %p39
    %p42 = scmp.ne.s32.totalorder %s25, %s41
    %p43 = scmp.eq.s32.totalorder %s17, 0
    %p44 = por %p42, %p43
    %s46 = sadd.s32 %s45, 1
    %p49 = scmp.eq.s32.totalorder %s11, 1
    %p50 = scmp.ne.s32.totalorder %s45, %s47
    %p51 = scmp.eq.s32.totalorder %s11, 0
    %p52 = por %p50, %p51
    %p53 = scmp.ne.s32.totalorder %s45, %s47
    %p54 = scmp.eq.s32.totalorder %s16, 1
    %p55 = por %p53, %p54
    %p56 = scmp.ne.s32.totalorder %s47, %s48
    %p57 = scmp.eq.s32.totalorder %s16, 0
    %p58 = por %p56, %p57
    %p59 = scmp.ne.s32.totalorder %s47, %s48
    %p60 = scmp.eq.s32.totalorder %s17, 1
    %p61 = por %p59, %p60
    %p63 = scmp.ne.s32.totalorder %s48, %s62
    %p64 = scmp.eq.s32.totalorder %s17, 0
    %p65 = por %p63, %p64
    %s67 = sadd.s32 %s66, 1
    %p70 = scmp.eq.s32.totalorder %s11, 1
    %p71 = scmp.ne.s32.totalorder %s66, %s68
    %p72 = scmp.eq.s32.totalorder %s11, 0
    %p73 = por %p71, %p72
    %p74 = scmp.ne.s32.totalorder %s66, %s68
    %p75 = scmp.eq.s32.totalorder %s16, 1
    %p76 = por %p74, %p75
    %p77 = scmp.ne.s32.totalorder %s68, %s69
    %p78 = scmp.eq.s32.totalorder %s16, 0
    %p79 = por %p77, %p78
    %p80 = scmp.ne.s32.totalorder %s68, %s69
    %p81 = scmp.eq.s32.totalorder %s17, 1
    %p82 = por %p80, %p81
    %p84 = scmp.ne.s32.totalorder %s69, %s83
    %p85 = scmp.eq.s32.totalorder %s17, 0
    %p86 = por %p84, %p85
    %s88 = sadd.s32 %s87, 1
    %p91 = scmp.eq.s32.totalorder %s11, 1
    %p92 = scmp.ne.s32.totalorder %s87, %s89
    %p93 = scmp.eq.s32.totalorder %s11, 0
    %p94 = por %p92, %p93
    %p95 = scmp.ne.s32.totalorder %s87, %s89
    %p96 = scmp.eq.s32.totalorder %s16, 1
    %p97 = por %p95, %p96
    %p98 = scmp.ne.s32.totalorder %s89, %s90
    %p99 = scmp.eq.s32.totalorder %s16, 0
    %p100 = por %p98, %p99
    %p101 = scmp.ne.s32.totalorder %s89, %s90
    %p102 = scmp.eq.s32.totalorder %s17, 1
    %p103 = por %p101, %p102
    %p105 = scmp.ne.s32.totalorder %s90, %s104
    %p106 = scmp.eq.s32.totalorder %s17, 0
    %p107 = por %p105, %p106
    %s109 = sadd.s32 %s108, 1
    %p112 = scmp.eq.s32.totalorder %s11, 1
    %p113 = scmp.ne.s32.totalorder %s108, %s110
    %p114 = scmp.eq.s32.totalorder %s11, 0
    %p115 = por %p113, %p114
    %p116 = scmp.ne.s32.totalorder %s108, %s110
    %p117 = scmp.eq.s32.totalorder %s16, 1
    %p118 = por %p116, %p117
    %p119 = scmp.ne.s32.totalorder %s110, %s111
    %p120 = scmp.eq.s32.totalorder %s16, 0
    %p121 = por %p119, %p120
    %p122 = scmp.ne.s32.totalorder %s110, %s111
    %p123 = scmp.eq.s32.totalorder %s17, 1
    %p124 = por %p122, %p123
    %p126 = scmp.ne.s32.totalorder %s111, %s125
    %p127 = scmp.eq.s32.totalorder %s17, 0
    %p128 = por %p126, %p127
    %s129 = ssub.s32 %s11, %s18
    %p130 = scmp.eq.s32.totalorder %s129, 0
    %s132 = sadd.s32 %s131, 1
    %s133 = scalar_select %p130, %s131, %s132
    %p136 = pneg %p130
    %p137 = scmp.eq.s32.totalorder %s11, 1
    %p138 = por %p136, %p137
    %p139 = scmp.ne.s32.totalorder %s131, %s134
    %p140 = scmp.eq.s32.totalorder %s11, 0
    %p141 = por %p139, %p140
    %p142 = scmp.ne.s32.totalorder %s131, %s134
    %p143 = scmp.eq.s32.totalorder %s16, 1
    %p144 = por %p142, %p143
    %p145 = scmp.ne.s32.totalorder %s134, %s135
    %p146 = scmp.eq.s32.totalorder %s16, 0
    %p147 = por %p145, %p146
    %p148 = scmp.ne.s32.totalorder %s134, %s135
    %p149 = scmp.eq.s32.totalorder %s17, 1
    %p150 = por %p148, %p149
    %p152 = scmp.ne.s32.totalorder %s135, %s151
    %p153 = scmp.eq.s32.totalorder %s17, 0
    %p154 = por %p152, %p153
    %p155 = scmp.le.s32.totalorder 1, %s11
    %p156 = scmp.lt.s32.totalorder %s11, 3
    %p157 = pnand %p155, %p156
    %p158 = pneg %p157
    // Predicated region
    $region9: #{decoder_block_forward.1} parent=5 // pred_check
      _
    $region10: #{decoder_block_forward.1} parent=5 // pred_check_branch
      %160 = sbr.rel (%p157) target = $region12
    $region11: #{decoder_block_forward.1} parent=5 // pred_region
      %s161 = ssub.s32 %s11, 1
      // Predicated region
      $region13: #{decoder_block_forward.1} parent=11 // pred_check
        %p162 = pneg %p58
      $region14: #{decoder_block_forward.1} parent=11 // pred_check_branch
        %164 = sbr.rel (%p162) target = $region16
      $region15: #{decoder_block_forward.1} parent=11 // pred_region
        _
      $region16: #{decoder_block_forward.1} parent=11 // pred_fallthru
        _
      // Predicated region
      $region17: #{decoder_block_forward.1} parent=11 // pred_check
        %p165 = pneg %p79
      $region18: #{decoder_block_forward.1} parent=11 // pred_check_branch
        %167 = sbr.rel (%p165) target = $region20
      $region19: #{decoder_block_forward.1} parent=11 // pred_region
        _
      $region20: #{decoder_block_forward.1} parent=11 // pred_fallthru
        _
      // Predicated region
      $region21: #{decoder_block_forward.1} parent=11 // pred_check
        %p168 = pneg %p100
      $region22: #{decoder_block_forward.1} parent=11 // pred_check_branch
        %170 = sbr.rel (%p168) target = $region24
      $region23: #{decoder_block_forward.1} parent=11 // pred_region
        _
      $region24: #{decoder_block_forward.1} parent=11 // pred_fallthru
        _
      // Predicated region
      $region25: #{decoder_block_forward.1} parent=11 // pred_check
        %p171 = pneg %p121
      $region26: #{decoder_block_forward.1} parent=11 // pred_check_branch
        %173 = sbr.rel (%p171) target = $region28
      $region27: #{decoder_block_forward.1} parent=11 // pred_region
        _
      $region28: #{decoder_block_forward.1} parent=11 // pred_fallthru
        _
    $region12: #{decoder_block_forward.1} parent=5 // pred_fallthru
      _
    %p174 = scmp.lt.s32.totalorder %s11, 2
    // Predicated region
    $region29: #{decoder_block_forward.1} parent=5 // pred_check
      %p175 = pneg %p174
    $region30: #{decoder_block_forward.1} parent=5 // pred_check_branch
      %177 = sbr.rel (%p175) target = $region32
    $region31: #{decoder_block_forward.1} parent=5 // pred_region
      // Predicated region
      $region33: #{decoder_block_forward.1} parent=31 // pred_check
        %p178 = pneg %p31
      $region34: #{decoder_block_forward.1} parent=31 // pred_check_branch
        %180 = sbr.rel (%p178) target = $region36
      $region35: #{decoder_block_forward.1} parent=31 // pred_region
        %p181 = scmp.lt.s32.totalorder %s11, 1
        %s182 = scalar_select %p181, %s11, 1
        %s183 = smul.addr %s182, 32
        %s184 = smul.addr %s183, 4
        %s185 = scalar_lea.vmem %s0, %s184
      $region36: #{decoder_block_forward.1} parent=31 // pred_fallthru
        _
    $region32: #{decoder_block_forward.1} parent=5 // pred_fallthru
      _
    %p186 = scmp.le.s32.totalorder 1, %s11
    %p187 = scmp.lt.s32.totalorder %s11, 3
    %p188 = pnand %p186, %p187
    %p189 = pneg %p188
    // Predicated region
    $region37: #{decoder_block_forward.1} parent=5 // pred_check
      _
    $region38: #{decoder_block_forward.1} parent=5 // pred_check_branch
      %191 = sbr.rel (%p188) target = $region40
    $region39: #{decoder_block_forward.1} parent=5 // pred_region
      %s192 = ssub.s32 %s11, 1
      %p193 = scmp.lt.s32.totalorder %s16, 1
      %s194 = scalar_select %p193, %s16, 1
      %s195 = smul.addr %s194, 32
      %s196 = smul.addr %s195, 4
      %s197 = scalar_lea.vmem %s0, %s196
      %p198 = pneg %p37
      %p199 = pneg %p34
      %p200 = pneg %p58
      %p201 = pneg %p55
      %p202 = pneg %p79
      %p203 = pneg %p76
      %p204 = pneg %p100
      %p205 = pneg %p97
      %p206 = pneg %p121
      %p207 = pneg %p118
      %p208 = pneg %p147
      %p209 = pneg %p144
      %p210 = scmp.lt.s32.totalorder %s16, 1
      %s211 = scalar_select %p210, %s16, 1
      %s212 = smul.addr %s211, 32
      %s213 = smul.addr %s212, 4
      %s214 = scalar_lea.vmem %s5, %s213
      %p215 = scmp.lt.s32.totalorder %s16, 1
      %s216 = scalar_select %p215, %s16, 1
      %s217 = smul.addr %s216, 32
      %s218 = smul.addr %s217, 4
      %s219 = scalar_lea.vmem %s0, %s218
      %p220 = scmp.lt.s32.totalorder %s16, 1
      %s221 = scalar_select %p220, %s16, 1
      %s222 = smul.addr %s221, 32
      %s223 = smul.addr %s222, 4
      %s224 = scalar_lea.vmem %s5, %s223
      %vm226 = vcmask 60416
      %227 = vst.msk [vmem:[#allocation2] sm:$0xf] %vm226, 0
      %228 = vst.msk [vmem:[#allocation2 + $0x4] sm:$0xf] %vm226, 0
      %229 = vst.msk [vmem:[#allocation2 + $0x8] sm:$0xf] %vm226, 0
      %230 = vst.msk [vmem:[#allocation2 + $0xc] sm:$0xf] %vm226, 0
      %231 = vst.msk [vmem:[#allocation2 + $0x10] sm:$0xf] %vm226, 0
      %232 = vst.msk [vmem:[#allocation2 + $0x14] sm:$0xf] %vm226, 0
      %233 = vst.msk [vmem:[#allocation2 + $0x18] sm:$0xf] %vm226, 0
      %234 = vst.msk [vmem:[#allocation2 + $0x1c] sm:$0xf] %vm226, 0
      %235 = vst.msk [vmem:[#allocation2 + $0x20] sm:$0xf] %vm226, 0
      %236 = vst.msk [vmem:[#allocation2 + $0x24] sm:$0xf] %vm226, 0
      %237 = vst.msk [vmem:[#allocation2 + $0x28] sm:$0xf] %vm226, 0
      %238 = vst.msk [vmem:[#allocation2 + $0x2c] sm:$0xf] %vm226, 0
      %239 = vst.msk [vmem:[#allocation2 + $0x30] sm:$0xf] %vm226, 0
      %240 = vst.msk [vmem:[#allocation2 + $0x34] sm:$0xf] %vm226, 0
      %241 = vst.msk [vmem:[#allocation2 + $0x38] sm:$0xf] %vm226, 0
      %242 = vst.msk [vmem:[#allocation2 + $0x3c] sm:$0xf] %vm226, 0
      %243 = vst.msk [vmem:[#allocation2 + $0x40] sm:$0xf] %vm226, 0
      %244 = vst.msk [vmem:[#allocation2 + $0x44] sm:$0xf] %vm226, 0
      %245 = vst.msk [vmem:[#allocation2 + $0x48] sm:$0xf] %vm226, 0
      %246 = vst.msk [vmem:[#allocation2 + $0x4c] sm:$0xf] %vm226, 0
      %247 = vst.msk [vmem:[#allocation2 + $0x50] sm:$0xf] %vm226, 0
      %248 = vst.msk [vmem:[#allocation2 + $0x54] sm:$0xf] %vm226, 0
      %249 = vst.msk [vmem:[#allocation2 + $0x58] sm:$0xf] %vm226, 0
      %250 = vst.msk [vmem:[#allocation2 + $0x5c] sm:$0xf] %vm226, 0
      %251 = vst.msk [vmem:[#allocation2 + $0x60] sm:$0xf] %vm226, 0
      %252 = vst.msk [vmem:[#allocation2 + $0x64] sm:$0xf] %vm226, 0
      %253 = vst.msk [vmem:[#allocation2 + $0x68] sm:$0xf] %vm226, 0
      %254 = vst.msk [vmem:[#allocation2 + $0x6c] sm:$0xf] %vm226, 0
      %255 = vst.msk [vmem:[#allocation2 + $0x70] sm:$0xf] %vm226, 0
      %256 = vst.msk [vmem:[#allocation2 + $0x74] sm:$0xf] %vm226, 0
      %257 = vst.msk [vmem:[#allocation2 + $0x78] sm:$0xf] %vm226, 0
      %258 = vst.msk [vmem:[#allocation2 + $0x7c] sm:$0xf] %vm226, 0
      %259 = vst.msk [vmem:[#allocation2 + $0x80] sm:$0xf] %vm226, 0
      %260 = vst.msk [vmem:[#allocation2 + $0x84] sm:$0xf] %vm226, 0
      %261 = vst.msk [vmem:[#allocation2 + $0x88] sm:$0xf] %vm226, 0
      %262 = vst.msk [vmem:[#allocation2 + $0x8c] sm:$0xf] %vm226, 0
      %263 = vst.msk [vmem:[#allocation2 + $0x90] sm:$0xf] %vm226, 0
      %264 = vst.msk [vmem:[#allocation2 + $0x94] sm:$0xf] %vm226, 0
      %265 = vst.msk [vmem:[#allocation2 + $0x98] sm:$0xf] %vm226, 0
      %266 = vst.msk [vmem:[#allocation2 + $0x9c] sm:$0xf] %vm226, 0
      %267 = vst.msk [vmem:[#allocation2 + $0xa0] sm:$0xf] %vm226, 0
      %268 = vst.msk [vmem:[#allocation2 + $0xa4] sm:$0xf] %vm226, 0
      %269 = vst.msk [vmem:[#allocation2 + $0xa8] sm:$0xf] %vm226, 0
      %270 = vst.msk [vmem:[#allocation2 + $0xac] sm:$0xf] %vm226, 0
      %271 = vst.msk [vmem:[#allocation2 + $0xb0] sm:$0xf] %vm226, 0
      %272 = vst.msk [vmem:[#allocation2 + $0xb4] sm:$0xf] %vm226, 0
      %273 = vst.msk [vmem:[#allocation2 + $0xb8] sm:$0xf] %vm226, 0
      %274 = vst.msk [vmem:[#allocation2 + $0xbc] sm:$0xf] %vm226, 0
      %275 = vst.msk [vmem:[#allocation2 + $0xc0] sm:$0xf] %vm226, 0
      %276 = vst.msk [vmem:[#allocation2 + $0xc4] sm:$0xf] %vm226, 0
      %277 = vst.msk [vmem:[#allocation2 + $0xc8] sm:$0xf] %vm226, 0
      %278 = vst.msk [vmem:[#allocation2 + $0xcc] sm:$0xf] %vm226, 0
      %279 = vst.msk [vmem:[#allocation2 + $0xd0] sm:$0xf] %vm226, 0
      %280 = vst.msk [vmem:[#allocation2 + $0xd4] sm:$0xf] %vm226, 0
      %v281 = vld [vmem:[%s219] sm:$0xf]
      %v282 = vld [vmem:[%s219 + $0x4] sm:$0xf]
      %v283 = vld [vmem:[%s219 + $0x8] sm:$0xf]
      %v284 = vld [vmem:[%s219 + $0xc] sm:$0xf]
      %v285 = vld [vmem:[%s219 + $0x10] sm:$0xf]
      %v286 = vld [vmem:[%s219 + $0x14] sm:$0xf]
      %v287 = vld [vmem:[%s219 + $0x18] sm:$0xf]
      %v288 = vld [vmem:[%s219 + $0x1c] sm:$0xf]
      %v289 = vld [vmem:[%s219 + $0x20] sm:$0xf]
      %v290 = vld [vmem:[%s219 + $0x24] sm:$0xf]
      %v291 = vld [vmem:[%s219 + $0x28] sm:$0xf]
      %v292 = vld [vmem:[%s219 + $0x2c] sm:$0xf]
      %v293 = vld [vmem:[%s219 + $0x30] sm:$0xf]
      %v294 = vld [vmem:[%s219 + $0x34] sm:$0xf]
      %v295 = vld [vmem:[%s219 + $0x38] sm:$0xf]
      %v296 = vld [vmem:[%s219 + $0x3c] sm:$0xf]
      %v297 = vld [vmem:[%s219 + $0x40] sm:$0xf]
      %v298 = vld [vmem:[%s219 + $0x44] sm:$0xf]
      %v299 = vld [vmem:[%s219 + $0x48] sm:$0xf]
      %v300 = vld [vmem:[%s219 + $0x4c] sm:$0xf]
      %v301 = vld [vmem:[%s219 + $0x50] sm:$0xf]
      %v302 = vld [vmem:[%s219 + $0x54] sm:$0xf]
      %v303 = vld [vmem:[%s219 + $0x58] sm:$0xf]
      %v304 = vld [vmem:[%s219 + $0x5c] sm:$0xf]
      %v305 = vld [vmem:[%s219 + $0x60] sm:$0xf]
      %v306 = vld [vmem:[%s219 + $0x64] sm:$0xf]
      %v307 = vld [vmem:[%s219 + $0x68] sm:$0xf]
      %v308 = vld [vmem:[%s219 + $0x6c] sm:$0xf]
      %v309 = vld [vmem:[%s219 + $0x70] sm:$0xf]
      %v310 = vld [vmem:[%s219 + $0x74] sm:$0xf]
      %v311 = vld [vmem:[%s219 + $0x78] sm:$0xf]
      %v312 = vld [vmem:[%s219 + $0x7c] sm:$0xf]
      %vm313 = vsmask.f32 256
      %vm314 = vsmask.f32 4368
      %vm315 = vmor %vm313, %vm314
      %v317 = vshrl.u32 %v281, 16
      %v319 = vrot.slane %v317, 7
      %v320 = vshll.u32 %v281, 16
      %v322 = vor.u32 %v319, %v320
      %v323 = vrot.slane %v319, 4
      %v325 = vshrl.u32 %v282, 16
      %v327 = vrot.slane %v325, 7
      %v328 = vshll.u32 %v282, 16
      %v330 = vor.u32 %v327, %v328
      %v331 = vsel %vm315, %v323, %v330
      %v332 = vrot.slane %v327, 4
      %v334 = vshrl.u32 %v283, 16
      %v336 = vrot.slane %v334, 7
      %v337 = vshll.u32 %v283, 16
      %v339 = vor.u32 %v336, %v337
      %v340 = vrot.slane %v336, 4
      %v342 = vshrl.u32 %v284, 16
      %v344 = vrot.slane %v342, 7
      %v345 = vshll.u32 %v284, 16
      %v347 = vor.u32 %v344, %v345
      %v348 = vsel %vm315, %v340, %v347
      %v349 = vrot.slane %v344, 4
      %v351 = vshrl.u32 %v285, 16
      %v353 = vrot.slane %v351, 7
      %v354 = vshll.u32 %v285, 16
      %v356 = vor.u32 %v353, %v354
      %v357 = vrot.slane %v353, 4
      %v359 = vshrl.u32 %v286, 16
      %v361 = vrot.slane %v359, 7
      %v362 = vshll.u32 %v286, 16
      %v364 = vor.u32 %v361, %v362
      %v365 = vsel %vm315, %v357, %v364
      %v366 = vrot.slane %v361, 4
      %v368 = vshrl.u32 %v287, 16
      %v370 = vrot.slane %v368, 7
      %v371 = vshll.u32 %v287, 16
      %v373 = vor.u32 %v370, %v371
      %v374 = vrot.slane %v370, 4
      %v376 = vshrl.u32 %v288, 16
      %v378 = vrot.slane %v376, 7
      %v379 = vshll.u32 %v288, 16
      %v381 = vor.u32 %v378, %v379
      %v382 = vsel %vm315, %v374, %v381
      %v383 = vrot.slane %v378, 4
      %v385 = vshrl.u32 %v289, 16
      %v387 = vrot.slane %v385, 7
      %v388 = vshll.u32 %v289, 16
      %v390 = vor.u32 %v387, %v388
      %v391 = vrot.slane %v387, 4
      %v393 = vshrl.u32 %v290, 16
      %v395 = vrot.slane %v393, 7
      %v396 = vshll.u32 %v290, 16
      %v398 = vor.u32 %v395, %v396
      %v399 = vsel %vm315, %v391, %v398
      %v400 = vrot.slane %v395, 4
      %v402 = vshrl.u32 %v291, 16
      %v404 = vrot.slane %v402, 7
      %v405 = vshll.u32 %v291, 16
      %v407 = vor.u32 %v404, %v405
      %v408 = vrot.slane %v404, 4
      %v410 = vshrl.u32 %v292, 16
      %v412 = vrot.slane %v410, 7
      %v413 = vshll.u32 %v292, 16
      %v415 = vor.u32 %v412, %v413
      %v416 = vsel %vm315, %v408, %v415
      %v417 = vrot.slane %v412, 4
      %v419 = vshrl.u32 %v293, 16
      %v421 = vrot.slane %v419, 7
      %v422 = vshll.u32 %v293, 16
      %v424 = vor.u32 %v421, %v422
      %v425 = vrot.slane %v421, 4
      %v427 = vshrl.u32 %v294, 16
      %v429 = vrot.slane %v427, 7
      %v430 = vshll.u32 %v294, 16
      %v432 = vor.u32 %v429, %v430
      %v433 = vsel %vm315, %v425, %v432
      %v434 = vrot.slane %v429, 4
      %v436 = vshrl.u32 %v295, 16
      %v438 = vrot.slane %v436, 7
      %v439 = vshll.u32 %v295, 16
      %v441 = vor.u32 %v438, %v439
      %v442 = vrot.slane %v438, 4
      %v444 = vshrl.u32 %v296, 16
      %v446 = vrot.slane %v444, 7
      %v447 = vshll.u32 %v296, 16
      %v449 = vor.u32 %v446, %v447
      %v450 = vsel %vm315, %v442, %v449
      %v451 = vrot.slane %v446, 4
      %v453 = vshrl.u32 %v297, 16
      %v455 = vrot.slane %v453, 7
      %v456 = vshll.u32 %v297, 16
      %v458 = vor.u32 %v455, %v456
      %v459 = vrot.slane %v455, 4
      %v461 = vshrl.u32 %v298, 16
      %v463 = vrot.slane %v461, 7
      %v464 = vshll.u32 %v298, 16
      %v466 = vor.u32 %v463, %v464
      %v467 = vsel %vm315, %v459, %v466
      %v468 = vrot.slane %v463, 4
      %v470 = vshrl.u32 %v299, 16
      %v472 = vrot.slane %v470, 7
      %v473 = vshll.u32 %v299, 16
      %v475 = vor.u32 %v472, %v473
      %v476 = vrot.slane %v472, 4
      %v478 = vshrl.u32 %v300, 16
      %v480 = vrot.slane %v478, 7
      %v481 = vshll.u32 %v300, 16
      %v483 = vor.u32 %v480, %v481
      %v484 = vsel %vm315, %v476, %v483
      %v485 = vrot.slane %v480, 4
      %v487 = vshrl.u32 %v301, 16
      %v489 = vrot.slane %v487, 7
      %v490 = vshll.u32 %v301, 16
      %v492 = vor.u32 %v489, %v490
      %v493 = vrot.slane %v489, 4
      %v495 = vshrl.u32 %v302, 16
      %v497 = vrot.slane %v495, 7
      %v498 = vshll.u32 %v302, 16
      %v500 = vor.u32 %v497, %v498
      %v501 = vsel %vm315, %v493, %v500
      %v502 = vrot.slane %v497, 4
      %v504 = vshrl.u32 %v303, 16
      %v506 = vrot.slane %v504, 7
      %v507 = vshll.u32 %v303, 16
      %v509 = vor.u32 %v506, %v507
      %v510 = vrot.slane %v506, 4
      %v512 = vshrl.u32 %v304, 16
      %v514 = vrot.slane %v512, 7
      %v515 = vshll.u32 %v304, 16
      %v517 = vor.u32 %v514, %v515
      %v518 = vsel %vm315, %v510, %v517
      %v519 = vrot.slane %v514, 4
      %v521 = vshrl.u32 %v305, 16
      %v523 = vrot.slane %v521, 7
      %v524 = vshll.u32 %v305, 16
      %v526 = vor.u32 %v523, %v524
      %v527 = vrot.slane %v523, 4
      %v529 = vshrl.u32 %v306, 16
      %v531 = vrot.slane %v529, 7
      %v532 = vshll.u32 %v306, 16
      %v534 = vor.u32 %v531, %v532
      %v535 = vsel %vm315, %v527, %v534
      %v536 = vrot.slane %v531, 4
      %v538 = vshrl.u32 %v307, 16
      %v540 = vrot.slane %v538, 7
      %v541 = vshll.u32 %v307, 16
      %v543 = vor.u32 %v540, %v541
      %v544 = vrot.slane %v540, 4
      %v546 = vshrl.u32 %v308, 16
      %v548 = vrot.slane %v546, 7
      %v549 = vshll.u32 %v308, 16
      %v551 = vor.u32 %v548, %v549
      %v552 = vsel %vm315, %v544, %v551
      %v553 = vrot.slane %v548, 4
      %v555 = vshrl.u32 %v309, 16
      %v557 = vrot.slane %v555, 7
      %v558 = vshll.u32 %v309, 16
      %v560 = vor.u32 %v557, %v558
      %v561 = vrot.slane %v557, 4
      %v563 = vshrl.u32 %v310, 16
      %v565 = vrot.slane %v563, 7
      %v566 = vshll.u32 %v310, 16
      %v568 = vor.u32 %v565, %v566
      %v569 = vsel %vm315, %v561, %v568
      %v570 = vrot.slane %v565, 4
      %v572 = vshrl.u32 %v311, 16
      %v574 = vrot.slane %v572, 7
      %v575 = vshll.u32 %v311, 16
      %v577 = vor.u32 %v574, %v575
      %v578 = vrot.slane %v574, 4
      %v580 = vshrl.u32 %v312, 16
      %v582 = vrot.slane %v580, 7
      %v583 = vshll.u32 %v312, 16
      %v585 = vor.u32 %v582, %v583
      %v586 = vsel %vm315, %v578, %v585
      %v587 = vrot.slane %v582, 4
      %s636 = scalar_lea.vmem [#allocation2], 12
      %vm637 = vcmask 60416
      %vm638 = vsmask.f32 7938
      %vm639 = vmand %vm637, %vm638
      %v640 = vld [vmem:[%s636] sm:$0xf]
      %v641 = vsel %vm639, %v322, %v640
      %642 = vst [vmem:[%s636] sm:$0xf] %v641
      %643 = vst.msk [vmem:[%s636 + $0x4] sm:$0xf] %vm226, %v331
      %vm644 = vcmask 57344
      %vm645 = vmand %vm644, %vm313
      %v646 = vld [vmem:[%s636 + $0x8] sm:$0x1]
      %v647 = vsel %vm645, %v332, %v646
      %648 = vst [vmem:[%s636 + $0x8] sm:$0x1] %v647
      %v649 = vld [vmem:[%s636 + $0xc] sm:$0xf]
      %v650 = vsel %vm639, %v339, %v649
      %651 = vst [vmem:[%s636 + $0xc] sm:$0xf] %v650
      %652 = vst.msk [vmem:[%s636 + $0x10] sm:$0xf] %vm226, %v348
      %v653 = vld [vmem:[%s636 + $0x14] sm:$0x1]
      %v654 = vsel %vm645, %v349, %v653
      %655 = vst [vmem:[%s636 + $0x14] sm:$0x1] %v654
      %v656 = vld [vmem:[%s636 + $0x18] sm:$0xf]
      %v657 = vsel %vm639, %v356, %v656
      %658 = vst [vmem:[%s636 + $0x18] sm:$0xf] %v657
      %659 = vst.msk [vmem:[%s636 + $0x1c] sm:$0xf] %vm226, %v365
      %v660 = vld [vmem:[%s636 + $0x20] sm:$0x1]
      %v661 = vsel %vm645, %v366, %v660
      %662 = vst [vmem:[%s636 + $0x20] sm:$0x1] %v661
      %v663 = vld [vmem:[%s636 + $0x24] sm:$0xf]
      %v664 = vsel %vm639, %v373, %v663
      %665 = vst [vmem:[%s636 + $0x24] sm:$0xf] %v664
      %666 = vst.msk [vmem:[%s636 + $0x28] sm:$0xf] %vm226, %v382
      %v667 = vld [vmem:[%s636 + $0x2c] sm:$0x1]
      %v668 = vsel %vm645, %v383, %v667
      %669 = vst [vmem:[%s636 + $0x2c] sm:$0x1] %v668
      %v670 = vld [vmem:[%s636 + $0x30] sm:$0xf]
      %v671 = vsel %vm639, %v390, %v670
      %672 = vst [vmem:[%s636 + $0x30] sm:$0xf] %v671
      %673 = vst.msk [vmem:[%s636 + $0x34] sm:$0xf] %vm226, %v399
      %v674 = vld [vmem:[%s636 + $0x38] sm:$0x1]
      %v675 = vsel %vm645, %v400, %v674
      %676 = vst [vmem:[%s636 + $0x38] sm:$0x1] %v675
      %v677 = vld [vmem:[%s636 + $0x3c] sm:$0xf]
      %v678 = vsel %vm639, %v407, %v677
      %679 = vst [vmem:[%s636 + $0x3c] sm:$0xf] %v678
      %680 = vst.msk [vmem:[%s636 + $0x40] sm:$0xf] %vm226, %v416
      %v681 = vld [vmem:[%s636 + $0x44] sm:$0x1]
      %v682 = vsel %vm645, %v417, %v681
      %683 = vst [vmem:[%s636 + $0x44] sm:$0x1] %v682
      %v684 = vld [vmem:[%s636 + $0x48] sm:$0xf]
      %v685 = vsel %vm639, %v424, %v684
      %686 = vst [vmem:[%s636 + $0x48] sm:$0xf] %v685
      %687 = vst.msk [vmem:[%s636 + $0x4c] sm:$0xf] %vm226, %v433
      %v688 = vld [vmem:[%s636 + $0x50] sm:$0x1]
      %v689 = vsel %vm645, %v434, %v688
      %690 = vst [vmem:[%s636 + $0x50] sm:$0x1] %v689
      %v691 = vld [vmem:[%s636 + $0x54] sm:$0xf]
      %v692 = vsel %vm639, %v441, %v691
      %693 = vst [vmem:[%s636 + $0x54] sm:$0xf] %v692
      %694 = vst.msk [vmem:[%s636 + $0x58] sm:$0xf] %vm226, %v450
      %v695 = vld [vmem:[%s636 + $0x5c] sm:$0x1]
      %v696 = vsel %vm645, %v451, %v695
      %697 = vst [vmem:[%s636 + $0x5c] sm:$0x1] %v696
      %v698 = vld [vmem:[%s636 + $0x60] sm:$0xf]
      %v699 = vsel %vm639, %v458, %v698
      %700 = vst [vmem:[%s636 + $0x60] sm:$0xf] %v699
      %701 = vst.msk [vmem:[%s636 + $0x64] sm:$0xf] %vm226, %v467
      %v702 = vld [vmem:[%s636 + $0x68] sm:$0x1]
      %v703 = vsel %vm645, %v468, %v702
      %704 = vst [vmem:[%s636 + $0x68] sm:$0x1] %v703
      %v705 = vld [vmem:[%s636 + $0x6c] sm:$0xf]
      %v706 = vsel %vm639, %v475, %v705
      %707 = vst [vmem:[%s636 + $0x6c] sm:$0xf] %v706
      %708 = vst.msk [vmem:[%s636 + $0x70] sm:$0xf] %vm226, %v484
      %v709 = vld [vmem:[%s636 + $0x74] sm:$0x1]
      %v710 = vsel %vm645, %v485, %v709
      %711 = vst [vmem:[%s636 + $0x74] sm:$0x1] %v710
      %v712 = vld [vmem:[%s636 + $0x78] sm:$0xf]
      %v713 = vsel %vm639, %v492, %v712
      %714 = vst [vmem:[%s636 + $0x78] sm:$0xf] %v713
      %715 = vst.msk [vmem:[%s636 + $0x7c] sm:$0xf] %vm226, %v501
      %v716 = vld [vmem:[%s636 + $0x80] sm:$0x1]
      %v717 = vsel %vm645, %v502, %v716
      %718 = vst [vmem:[%s636 + $0x80] sm:$0x1] %v717
      %v719 = vld [vmem:[%s636 + $0x84] sm:$0xf]
      %v720 = vsel %vm639, %v509, %v719
      %721 = vst [vmem:[%s636 + $0x84] sm:$0xf] %v720
      %722 = vst.msk [vmem:[%s636 + $0x88] sm:$0xf] %vm226, %v518
      %v723 = vld [vmem:[%s636 + $0x8c] sm:$0x1]
      %v724 = vsel %vm645, %v519, %v723
      %725 = vst [vmem:[%s636 + $0x8c] sm:$0x1] %v724
      %v726 = vld [vmem:[%s636 + $0x90] sm:$0xf]
      %v727 = vsel %vm639, %v526, %v726
      %728 = vst [vmem:[%s636 + $0x90] sm:$0xf] %v727
      %729 = vst.msk [vmem:[%s636 + $0x94] sm:$0xf] %vm226, %v535
      %v730 = vld [vmem:[%s636 + $0x98] sm:$0x1]
      %v731 = vsel %vm645, %v536, %v730
      %732 = vst [vmem:[%s636 + $0x98] sm:$0x1] %v731
      %v733 = vld [vmem:[%s636 + $0x9c] sm:$0xf]
      %v734 = vsel %vm639, %v543, %v733
      %735 = vst [vmem:[%s636 + $0x9c] sm:$0xf] %v734
      %736 = vst.msk [vmem:[%s636 + $0xa0] sm:$0xf] %vm226, %v552
      %v737 = vld [vmem:[%s636 + $0xa4] sm:$0x1]
      %v738 = vsel %vm645, %v553, %v737
      %739 = vst [vmem:[%s636 + $0xa4] sm:$0x1] %v738
      %v740 = vld [vmem:[%s636 + $0xa8] sm:$0xf]
      %v741 = vsel %vm639, %v560, %v740
      %742 = vst [vmem:[%s636 + $0xa8] sm:$0xf] %v741
      %743 = vst.msk [vmem:[%s636 + $0xac] sm:$0xf] %vm226, %v569
      %v744 = vld [vmem:[%s636 + $0xb0] sm:$0x1]
      %v745 = vsel %vm645, %v570, %v744
      %746 = vst [vmem:[%s636 + $0xb0] sm:$0x1] %v745
      %v747 = vld [vmem:[%s636 + $0xb4] sm:$0xf]
      %v748 = vsel %vm639, %v577, %v747
      %749 = vst [vmem:[%s636 + $0xb4] sm:$0xf] %v748
      %750 = vst.msk [vmem:[%s636 + $0xb8] sm:$0xf] %vm226, %v586
      %v751 = vld [vmem:[%s636 + $0xbc] sm:$0x1]
      %v752 = vsel %vm645, %v587, %v751
      %753 = vst [vmem:[%s636 + $0xbc] sm:$0x1] %v752
      %v754 = vld [vmem:[#allocation2] sm:$0xf]
      %v755 = vld [vmem:[#allocation2 + $0x4] sm:$0xf]
      %v756 = vld [vmem:[#allocation2 + $0x8] sm:$0xf]
      %v757 = vld [vmem:[#allocation2 + $0xc] sm:$0xf]
      %v758 = vld [vmem:[#allocation2 + $0x10] sm:$0xf]
      %v759 = vld [vmem:[#allocation2 + $0x14] sm:$0xf]
      %v760 = vld [vmem:[#allocation2 + $0x18] sm:$0xf]
      %v761 = vld [vmem:[#allocation2 + $0x1c] sm:$0xf]
      %v762 = vld [vmem:[#allocation2 + $0x20] sm:$0xf]
      %v763 = vld [vmem:[#allocation2 + $0x24] sm:$0xf]
      %v764 = vld [vmem:[#allocation2 + $0x28] sm:$0xf]
      %v765 = vld [vmem:[#allocation2 + $0x2c] sm:$0xf]
      %v766 = vld [vmem:[#allocation2 + $0x30] sm:$0xf]
      %v767 = vld [vmem:[#allocation2 + $0x34] sm:$0xf]
      %v768 = vld [vmem:[#allocation2 + $0x38] sm:$0xf]
      %v769 = vld [vmem:[#allocation2 + $0x3c] sm:$0xf]
      %v770 = vld [vmem:[#allocation2 + $0x40] sm:$0xf]
      %v771 = vld [vmem:[#allocation2 + $0x44] sm:$0xf]
      %v772 = vld [vmem:[#allocation2 + $0x48] sm:$0xf]
      %v773 = vld [vmem:[#allocation2 + $0x4c] sm:$0xf]
      %v774 = vld [vmem:[#allocation2 + $0x50] sm:$0xf]
      %v775 = vld [vmem:[#allocation2 + $0x54] sm:$0xf]
      %v776 = vld [vmem:[#allocation2 + $0x58] sm:$0xf]
      %v777 = vld [vmem:[#allocation2 + $0x5c] sm:$0xf]
      %v778 = vld [vmem:[#allocation2 + $0x60] sm:$0xf]
      %v779 = vld [vmem:[#allocation2 + $0x64] sm:$0xf]
      %v780 = vld [vmem:[#allocation2 + $0x68] sm:$0xf]
      %v781 = vld [vmem:[#allocation2 + $0x6c] sm:$0xf]
      %v782 = vld [vmem:[#allocation2 + $0x70] sm:$0xf]
      %v783 = vld [vmem:[#allocation2 + $0x74] sm:$0xf]
      %v784 = vld [vmem:[#allocation2 + $0x78] sm:$0xf]
      %v785 = vld [vmem:[#allocation2 + $0x7c] sm:$0xf]
      %v786 = vld [vmem:[#allocation2 + $0x80] sm:$0xf]
      %v787 = vld [vmem:[#allocation2 + $0x84] sm:$0xf]
      %v788 = vld [vmem:[#allocation2 + $0x88] sm:$0xf]
      %v789 = vld [vmem:[#allocation2 + $0x8c] sm:$0xf]
      %v790 = vld [vmem:[#allocation2 + $0x90] sm:$0xf]
      %v791 = vld [vmem:[#allocation2 + $0x94] sm:$0xf]
      %v792 = vld [vmem:[#allocation2 + $0x98] sm:$0xf]
      %v793 = vld [vmem:[#allocation2 + $0x9c] sm:$0xf]
      %v794 = vld [vmem:[#allocation2 + $0xa0] sm:$0xf]
      %v795 = vld [vmem:[#allocation2 + $0xa4] sm:$0xf]
      %v796 = vld [vmem:[#allocation2 + $0xa8] sm:$0xf]
      %v797 = vld [vmem:[#allocation2 + $0xac] sm:$0xf]
      %v798 = vld [vmem:[#allocation2 + $0xb0] sm:$0xf]
      %v799 = vld [vmem:[#allocation2 + $0xb4] sm:$0xf]
      %v800 = vld [vmem:[#allocation2 + $0xb8] sm:$0xf]
      %v801 = vld [vmem:[#allocation2 + $0xbc] sm:$0xf]
      %v802 = vld [vmem:[#allocation2 + $0xc0] sm:$0xf]
      %v803 = vld [vmem:[#allocation2 + $0xc4] sm:$0xf]
      %v804 = vld [vmem:[#allocation2 + $0xc8] sm:$0xf]
      %v805 = vld [vmem:[#allocation2 + $0xcc] sm:$0xf]
      %v806 = vld [vmem:[#allocation2 + $0xd0] sm:$0xf]
      %v807 = vld [vmem:[#allocation2 + $0xd4] sm:$0xf]
      %v808 = vld [vmem:[%s1] sm:$0xff]
      %v809 = vld [vmem:[%s1 + $0x8] sm:$0xf]
      %v810 = vld [vmem:[%s1 + $0xc] sm:$0xff]
      %v811 = vld [vmem:[%s1 + $0x14] sm:$0xf]
      %v812 = vld [vmem:[%s1 + $0x18] sm:$0xff]
      %v813 = vld [vmem:[%s1 + $0x20] sm:$0xf]
      %v814 = vld [vmem:[%s2] sm:$0x1]
      %v863 = vunpack.c.l.b16 %v754
      %v864 = vunpack.c.l.b16 %v755
      %v865 = vunpack.c.l.b16 %v756
      %v866 = vunpack.c.l.b16 %v757
      %v867 = vunpack.c.l.b16 %v758
      %v868 = vunpack.c.l.b16 %v759
      %v869 = vunpack.c.l.b16 %v760
      %v870 = vunpack.c.l.b16 %v761
      %v871 = vunpack.c.l.b16 %v762
      %v872 = vunpack.c.l.b16 %v763
      %v873 = vunpack.c.l.b16 %v764
      %v874 = vunpack.c.l.b16 %v765
      %v875 = vunpack.c.l.b16 %v766
      %v876 = vunpack.c.l.b16 %v767
      %v877 = vunpack.c.l.b16 %v768
      %v878 = vunpack.c.l.b16 %v769
      %v879 = vunpack.c.l.b16 %v770
      %v880 = vunpack.c.l.b16 %v771
      %v881 = vunpack.c.l.b16 %v772
      %v882 = vunpack.c.l.b16 %v773
      %v883 = vunpack.c.l.b16 %v774
      %v884 = vunpack.c.l.b16 %v775
      %v885 = vunpack.c.l.b16 %v776
      %v886 = vunpack.c.l.b16 %v777
      %v887 = vunpack.c.l.b16 %v778
      %v888 = vunpack.c.l.b16 %v779
      %v889 = vunpack.c.l.b16 %v780
      %v890 = vunpack.c.l.b16 %v781
      %v891 = vunpack.c.l.b16 %v782
      %v892 = vunpack.c.l.b16 %v783
      %v893 = vunpack.c.l.b16 %v784
      %v894 = vunpack.c.l.b16 %v785
      %v895 = vunpack.c.l.b16 %v786
      %v896 = vunpack.c.l.b16 %v787
      %v897 = vunpack.c.l.b16 %v788
      %v898 = vunpack.c.l.b16 %v789
      %v899 = vunpack.c.l.b16 %v790
      %v900 = vunpack.c.l.b16 %v791
      %v901 = vunpack.c.l.b16 %v792
      %v902 = vunpack.c.l.b16 %v793
      %v903 = vunpack.c.l.b16 %v794
      %v904 = vunpack.c.l.b16 %v795
      %v905 = vunpack.c.l.b16 %v796
      %v906 = vunpack.c.l.b16 %v797
      %v907 = vunpack.c.l.b16 %v798
      %v908 = vunpack.c.l.b16 %v799
      %v909 = vunpack.c.l.b16 %v800
      %v910 = vunpack.c.l.b16 %v801
      %v911 = vpack.c.b16 %v864, %v863
      %v912 = vpack.c.b16 %v865, %v865
      %v913 = vpack.c.b16 %v867, %v866
      %v914 = vpack.c.b16 %v868, %v868
      %v915 = vpack.c.b16 %v870, %v869
      %v916 = vpack.c.b16 %v871, %v871
      %v917 = vpack.c.b16 %v873, %v872
      %v918 = vpack.c.b16 %v874, %v874
      %v919 = vpack.c.b16 %v876, %v875
      %v920 = vpack.c.b16 %v877, %v877
      %v921 = vpack.c.b16 %v879, %v878
      %v922 = vpack.c.b16 %v880, %v880
      %v923 = vpack.c.b16 %v882, %v881
      %v924 = vpack.c.b16 %v883, %v883
      %v925 = vpack.c.b16 %v885, %v884
      %v926 = vpack.c.b16 %v886, %v886
      %v927 = vpack.c.b16 %v888, %v887
      %v928 = vpack.c.b16 %v889, %v889
      %v929 = vpack.c.b16 %v891, %v890
      %v930 = vpack.c.b16 %v892, %v892
      %v931 = vpack.c.b16 %v894, %v893
      %v932 = vpack.c.b16 %v895, %v895
      %v933 = vpack.c.b16 %v897, %v896
      %v934 = vpack.c.b16 %v898, %v898
      %v935 = vpack.c.b16 %v900, %v899
      %v936 = vpack.c.b16 %v901, %v901
      %v937 = vpack.c.b16 %v903, %v902
      %v938 = vpack.c.b16 %v904, %v904
      %v939 = vpack.c.b16 %v906, %v905
      %v940 = vpack.c.b16 %v907, %v907
      %v941 = vpack.c.b16 %v909, %v908
      %v942 = vpack.c.b16 %v910, %v910
      %v946 = vunpack.c.l.b16 %v802
      %v947 = vunpack.c.l.b16 %v803
      %v948 = vunpack.c.l.b16 %v804
      %v949 = vpack.c.b16 %v947, %v946
      %v950 = vpack.c.b16 %v948, %v948
      %951 = vrot.lane.b32.xlu0 %v913, 8
      %v952 = vpop.permute.xlu0 %951
      %953 = vrot.lane.b32.xlu0 %v914, 8
      %v954 = vpop.permute.xlu0 %953
      %955 = vrot.lane.b32.xlu0 %v915, 8
      %v956 = vpop.permute.xlu0 %955
      %957 = vrot.lane.b32.xlu0 %v916, 8
      %v958 = vpop.permute.xlu0 %957
      %959 = vrot.lane.b32.xlu0 %v917, 8
      %v960 = vpop.permute.xlu0 %959
      %961 = vrot.lane.b32.xlu0 %v918, 8
      %v962 = vpop.permute.xlu0 %961
      %963 = vrot.lane.b32.xlu0 %v919, 8
      %v964 = vpop.permute.xlu0 %963
      %965 = vrot.lane.b32.xlu0 %v920, 8
      %v966 = vpop.permute.xlu0 %965
      %967 = vrot.lane.b32.xlu0 %v921, 8
      %v968 = vpop.permute.xlu0 %967
      %969 = vrot.lane.b32.xlu0 %v922, 8
      %v970 = vpop.permute.xlu0 %969
      %971 = vrot.lane.b32.xlu0 %v923, 8
      %v972 = vpop.permute.xlu0 %971
      %973 = vrot.lane.b32.xlu0 %v924, 8
      %v974 = vpop.permute.xlu0 %973
      %975 = vrot.lane.b32.xlu0 %v925, 8
      %v976 = vpop.permute.xlu0 %975
      %977 = vrot.lane.b32.xlu0 %v926, 8
      %v978 = vpop.permute.xlu0 %977
      %979 = vrot.lane.b32.xlu0 %v927, 8
      %v980 = vpop.permute.xlu0 %979
      %981 = vrot.lane.b32.xlu0 %v928, 8
      %v982 = vpop.permute.xlu0 %981
      %983 = vrot.lane.b32.xlu0 %v929, 8
      %v984 = vpop.permute.xlu0 %983
      %985 = vrot.lane.b32.xlu0 %v930, 8
      %v986 = vpop.permute.xlu0 %985
      %987 = vrot.lane.b32.xlu0 %v931, 8
      %v988 = vpop.permute.xlu0 %987
      %989 = vrot.lane.b32.xlu0 %v932, 8
      %v990 = vpop.permute.xlu0 %989
      %991 = vrot.lane.b32.xlu0 %v933, 8
      %v992 = vpop.permute.xlu0 %991
      %993 = vrot.lane.b32.xlu0 %v934, 8
      %v994 = vpop.permute.xlu0 %993
      %995 = vrot.lane.b32.xlu0 %v935, 8
      %v996 = vpop.permute.xlu0 %995
      %997 = vrot.lane.b32.xlu0 %v936, 8
      %v998 = vpop.permute.xlu0 %997
      %999 = vrot.lane.b32.xlu0 %v937, 8
      %v1000 = vpop.permute.xlu0 %999
      %1001 = vrot.lane.b32.xlu0 %v938, 8
      %v1002 = vpop.permute.xlu0 %1001
      %1003 = vrot.lane.b32.xlu0 %v939, 8
      %v1004 = vpop.permute.xlu0 %1003
      %1005 = vrot.lane.b32.xlu0 %v940, 8
      %v1006 = vpop.permute.xlu0 %1005
      %1007 = vrot.lane.b32.xlu0 %v941, 8
      %v1008 = vpop.permute.xlu0 %1007
      %1009 = vrot.lane.b32.xlu0 %v942, 8
      %v1010 = vpop.permute.xlu0 %1009
      %1011 = vrot.lane.b32.xlu0 %v949, 8
      %v1012 = vpop.permute.xlu0 %1011
      %1013 = vrot.lane.b32.xlu0 %v950, 8
      %v1014 = vpop.permute.xlu0 %1013
      %v1018 = vunpack.c.l.b16 %v805
      %v1019 = vunpack.c.l.b16 %v806
      %v1020 = vunpack.c.l.b16 %v807
      %v1021 = vpack.c.b16 %v1019, %v1018
      %v1022 = vpack.c.b16 %v1020, %v1020
      %1023 = vrot.lane.b32.xlu0 %v915, 16
      %v1024 = vpop.permute.xlu0 %1023
      %1025 = vrot.lane.b32.xlu0 %v916, 16
      %v1026 = vpop.permute.xlu0 %1025
      %1027 = vrot.lane.b32.xlu0 %v917, 16
      %v1028 = vpop.permute.xlu0 %1027
      %1029 = vrot.lane.b32.xlu0 %v918, 16
      %v1030 = vpop.permute.xlu0 %1029
      %1031 = vrot.lane.b32.xlu0 %v919, 16
      %v1032 = vpop.permute.xlu0 %1031
      %1033 = vrot.lane.b32.xlu0 %v920, 16
      %v1034 = vpop.permute.xlu0 %1033
      %1035 = vrot.lane.b32.xlu0 %v921, 16
      %v1036 = vpop.permute.xlu0 %1035
      %1037 = vrot.lane.b32.xlu0 %v922, 16
      %v1038 = vpop.permute.xlu0 %1037
      %1039 = vrot.lane.b32.xlu0 %v923, 16
      %v1040 = vpop.permute.xlu0 %1039
      %1041 = vrot.lane.b32.xlu0 %v924, 16
      %v1042 = vpop.permute.xlu0 %1041
      %1043 = vrot.lane.b32.xlu0 %v925, 16
      %v1044 = vpop.permute.xlu0 %1043
      %1045 = vrot.lane.b32.xlu0 %v926, 16
      %v1046 = vpop.permute.xlu0 %1045
      %1047 = vrot.lane.b32.xlu0 %v927, 16
      %v1048 = vpop.permute.xlu0 %1047
      %1049 = vrot.lane.b32.xlu0 %v928, 16
      %v1050 = vpop.permute.xlu0 %1049
      %1051 = vrot.lane.b32.xlu0 %v929, 16
      %v1052 = vpop.permute.xlu0 %1051
      %1053 = vrot.lane.b32.xlu0 %v930, 16
      %v1054 = vpop.permute.xlu0 %1053
      %1055 = vrot.lane.b32.xlu0 %v931, 16
      %v1056 = vpop.permute.xlu0 %1055
      %1057 = vrot.lane.b32.xlu0 %v932, 16
      %v1058 = vpop.permute.xlu0 %1057
      %1059 = vrot.lane.b32.xlu0 %v933, 16
      %v1060 = vpop.permute.xlu0 %1059
      %1061 = vrot.lane.b32.xlu0 %v934, 16
      %v1062 = vpop.permute.xlu0 %1061
      %1063 = vrot.lane.b32.xlu0 %v935, 16
      %v1064 = vpop.permute.xlu0 %1063
      %1065 = vrot.lane.b32.xlu0 %v936, 16
      %v1066 = vpop.permute.xlu0 %1065
      %1067 = vrot.lane.b32.xlu0 %v937, 16
      %v1068 = vpop.permute.xlu0 %1067
      %1069 = vrot.lane.b32.xlu0 %v938, 16
      %v1070 = vpop.permute.xlu0 %1069
      %1071 = vrot.lane.b32.xlu0 %v939, 16
      %v1072 = vpop.permute.xlu0 %1071
      %1073 = vrot.lane.b32.xlu0 %v940, 16
      %v1074 = vpop.permute.xlu0 %1073
      %1075 = vrot.lane.b32.xlu0 %v941, 16
      %v1076 = vpop.permute.xlu0 %1075
      %1077 = vrot.lane.b32.xlu0 %v942, 16
      %v1078 = vpop.permute.xlu0 %1077
      %1079 = vrot.lane.b32.xlu0 %v949, 16
      %v1080 = vpop.permute.xlu0 %1079
      %1081 = vrot.lane.b32.xlu0 %v950, 16
      %v1082 = vpop.permute.xlu0 %1081
      %1083 = vrot.lane.b32.xlu0 %v1021, 16
      %v1084 = vpop.permute.xlu0 %1083
      %1085 = vrot.lane.b32.xlu0 %v1022, 16
      %v1086 = vpop.permute.xlu0 %1085
      %vm1087 = vcmask 64512
      %v1090 = vsel %vm1087, %v911, %v952
      %v1093 = vsel %vm1087, %v912, %v954
      %v1096 = vsel %vm1087, %v913, %v956
      %v1099 = vsel %vm1087, %v914, %v958
      %v1102 = vsel %vm1087, %v915, %v960
      %v1105 = vsel %vm1087, %v916, %v962
      %v1108 = vsel %vm1087, %v917, %v964
      %v1111 = vsel %vm1087, %v918, %v966
      %v1114 = vsel %vm1087, %v919, %v968
      %v1117 = vsel %vm1087, %v920, %v970
      %v1120 = vsel %vm1087, %v921, %v972
      %v1123 = vsel %vm1087, %v922, %v974
      %v1126 = vsel %vm1087, %v923, %v976
      %v1129 = vsel %vm1087, %v924, %v978
      %v1132 = vsel %vm1087, %v925, %v980
      %v1135 = vsel %vm1087, %v926, %v982
      %v1138 = vsel %vm1087, %v927, %v984
      %v1141 = vsel %vm1087, %v928, %v986
      %v1144 = vsel %vm1087, %v929, %v988
      %v1147 = vsel %vm1087, %v930, %v990
      %v1150 = vsel %vm1087, %v931, %v992
      %v1153 = vsel %vm1087, %v932, %v994
      %v1156 = vsel %vm1087, %v933, %v996
      %v1159 = vsel %vm1087, %v934, %v998
      %v1162 = vsel %vm1087, %v935, %v1000
      %v1165 = vsel %vm1087, %v936, %v1002
      %v1168 = vsel %vm1087, %v937, %v1004
      %v1171 = vsel %vm1087, %v938, %v1006
      %v1174 = vsel %vm1087, %v939, %v1008
      %v1177 = vsel %vm1087, %v940, %v1010
      %v1180 = vsel %vm1087, %v941, %v1012
      %v1183 = vsel %vm1087, %v942, %v1014
      %vm1184 = vcmask 130048
      %v1186 = vsel %vm1184, %v1090, %v1024
      %v1188 = vsel %vm1184, %v1093, %v1026
      %v1190 = vsel %vm1184, %v1096, %v1028
      %v1192 = vsel %vm1184, %v1099, %v1030
      %v1194 = vsel %vm1184, %v1102, %v1032
      %v1196 = vsel %vm1184, %v1105, %v1034
      %v1198 = vsel %vm1184, %v1108, %v1036
      %v1200 = vsel %vm1184, %v1111, %v1038
      %v1202 = vsel %vm1184, %v1114, %v1040
      %v1204 = vsel %vm1184, %v1117, %v1042
      %v1206 = vsel %vm1184, %v1120, %v1044
      %v1208 = vsel %vm1184, %v1123, %v1046
      %v1210 = vsel %vm1184, %v1126, %v1048
      %v1212 = vsel %vm1184, %v1129, %v1050
      %v1214 = vsel %vm1184, %v1132, %v1052
      %v1216 = vsel %vm1184, %v1135, %v1054
      %v1218 = vsel %vm1184, %v1138, %v1056
      %v1220 = vsel %vm1184, %v1141, %v1058
      %v1222 = vsel %vm1184, %v1144, %v1060
      %v1224 = vsel %vm1184, %v1147, %v1062
      %v1226 = vsel %vm1184, %v1150, %v1064
      %v1228 = vsel %vm1184, %v1153, %v1066
      %v1230 = vsel %vm1184, %v1156, %v1068
      %v1232 = vsel %vm1184, %v1159, %v1070
      %v1234 = vsel %vm1184, %v1162, %v1072
      %v1236 = vsel %vm1184, %v1165, %v1074
      %v1238 = vsel %vm1184, %v1168, %v1076
      %v1240 = vsel %vm1184, %v1171, %v1078
      %v1242 = vsel %vm1184, %v1174, %v1080
      %v1244 = vsel %vm1184, %v1177, %v1082
      %v1246 = vsel %vm1184, %v1180, %v1084
      %v1248 = vsel %vm1184, %v1183, %v1086
      %v1281 = vunpack.c.l.b16 %v1186
      %v1282 = vunpack.c.h.b16 %v1186
      %v1283 = vunpack.c.l.b16 %v1188
      %v1284 = vunpack.c.l.b16 %v1190
      %v1285 = vunpack.c.h.b16 %v1190
      %v1286 = vunpack.c.l.b16 %v1192
      %v1287 = vunpack.c.l.b16 %v1194
      %v1288 = vunpack.c.h.b16 %v1194
      %v1289 = vunpack.c.l.b16 %v1196
      %v1290 = vunpack.c.l.b16 %v1198
      %v1291 = vunpack.c.h.b16 %v1198
      %v1292 = vunpack.c.l.b16 %v1200
      %v1293 = vunpack.c.l.b16 %v1202
      %v1294 = vunpack.c.h.b16 %v1202
      %v1295 = vunpack.c.l.b16 %v1204
      %v1296 = vunpack.c.l.b16 %v1206
      %v1297 = vunpack.c.h.b16 %v1206
      %v1298 = vunpack.c.l.b16 %v1208
      %v1299 = vunpack.c.l.b16 %v1210
      %v1300 = vunpack.c.h.b16 %v1210
      %v1301 = vunpack.c.l.b16 %v1212
      %v1302 = vunpack.c.l.b16 %v1214
      %v1303 = vunpack.c.h.b16 %v1214
      %v1304 = vunpack.c.l.b16 %v1216
      %v1305 = vunpack.c.l.b16 %v1218
      %v1306 = vunpack.c.h.b16 %v1218
      %v1307 = vunpack.c.l.b16 %v1220
      %v1308 = vunpack.c.l.b16 %v1222
      %v1309 = vunpack.c.h.b16 %v1222
      %v1310 = vunpack.c.l.b16 %v1224
      %v1311 = vunpack.c.l.b16 %v1226
      %v1312 = vunpack.c.h.b16 %v1226
      %v1313 = vunpack.c.l.b16 %v1228
      %v1314 = vunpack.c.l.b16 %v1230
      %v1315 = vunpack.c.h.b16 %v1230
      %v1316 = vunpack.c.l.b16 %v1232
      %v1317 = vunpack.c.l.b16 %v1234
      %v1318 = vunpack.c.h.b16 %v1234
      %v1319 = vunpack.c.l.b16 %v1236
      %v1320 = vunpack.c.l.b16 %v1238
      %v1321 = vunpack.c.h.b16 %v1238
      %v1322 = vunpack.c.l.b16 %v1240
      %v1323 = vunpack.c.l.b16 %v1242
      %v1324 = vunpack.c.h.b16 %v1242
      %v1325 = vunpack.c.l.b16 %v1244
      %v1326 = vunpack.c.l.b16 %v1246
      %v1327 = vunpack.c.h.b16 %v1246
      %v1328 = vunpack.c.l.b16 %v1248
      %v1329 = vpack.c.b16 %v1282, %v1281
      %v1330 = vpack.c.b16 %v1284, %v1283
      %v1331 = vpack.c.b16 %v1286, %v1285
      %v1332 = vpack.c.b16 %v1288, %v1287
      %v1333 = vpack.c.b16 %v1290, %v1289
      %v1334 = vpack.c.b16 %v1292, %v1291
      %v1335 = vpack.c.b16 %v1294, %v1293
      %v1336 = vpack.c.b16 %v1296, %v1295
      %v1337 = vpack.c.b16 %v1298, %v1297
      %v1338 = vpack.c.b16 %v1300, %v1299
      %v1339 = vpack.c.b16 %v1302, %v1301
      %v1340 = vpack.c.b16 %v1304, %v1303
      %v1341 = vpack.c.b16 %v1306, %v1305
      %v1342 = vpack.c.b16 %v1308, %v1307
      %v1343 = vpack.c.b16 %v1310, %v1309
      %v1344 = vpack.c.b16 %v1312, %v1311
      %v1345 = vpack.c.b16 %v1314, %v1313
      %v1346 = vpack.c.b16 %v1316, %v1315
      %v1347 = vpack.c.b16 %v1318, %v1317
      %v1348 = vpack.c.b16 %v1320, %v1319
      %v1349 = vpack.c.b16 %v1322, %v1321
      %v1350 = vpack.c.b16 %v1324, %v1323
      %v1351 = vpack.c.b16 %v1326, %v1325
      %v1352 = vpack.c.b16 %v1328, %v1327
      %v1359 = vunpack.c.l.b16 %v808
      %v1360 = vunpack.c.h.b16 %v808
      %v1361 = vunpack.c.l.b16 %v809
      %v1362 = vunpack.c.l.b16 %v810
      %v1363 = vunpack.c.h.b16 %v810
      %v1364 = vunpack.c.l.b16 %v811
      %v1365 = vunpack.c.l.b16 %v812
      %v1366 = vunpack.c.h.b16 %v812
      %v1367 = vunpack.c.l.b16 %v813
      %v1368 = vpack.c.b16 %v1362, %v1359
      %v1369 = vpack.c.b16 %v1363, %v1360
      %v1370 = vpack.c.b16 %v1364, %v1361
      %v1371 = vpack.c.b16 %v1365, %v1365
      %v1372 = vpack.c.b16 %v1366, %v1366
      %v1373 = vpack.c.b16 %v1367, %v1367
      %vm1377 = vcmask 195584
      %v1379 = vsel %vm1377, %v1329, 0
      %v1382 = vsel %vm1377, %v1330, 0
      %v1385 = vsel %vm1377, %v1331, 0
      %v1388 = vsel %vm1377, %v1332, 0
      %v1391 = vsel %vm1377, %v1333, 0
      %v1394 = vsel %vm1377, %v1334, 0
      %v1397 = vsel %vm1377, %v1335, 0
      %v1400 = vsel %vm1377, %v1336, 0
      %v1403 = vsel %vm1377, %v1337, 0
      %v1406 = vsel %vm1377, %v1338, 0
      %v1409 = vsel %vm1377, %v1339, 0
      %v1412 = vsel %vm1377, %v1340, 0
      %v1415 = vsel %vm1377, %v1341, 0
      %v1418 = vsel %vm1377, %v1342, 0
      %v1421 = vsel %vm1377, %v1343, 0
      %v1424 = vsel %vm1377, %v1344, 0
      %v1427 = vsel %vm1377, %v1345, 0
      %v1430 = vsel %vm1377, %v1346, 0
      %v1433 = vsel %vm1377, %v1347, 0
      %v1436 = vsel %vm1377, %v1348, 0
      %v1439 = vsel %vm1377, %v1349, 0
      %v1442 = vsel %vm1377, %v1350, 0
      %v1445 = vsel %vm1377, %v1351, 0
      %v1448 = vsel %vm1377, %v1352, 0
      %vm1450 = vcmask 1043456
      %v1452 = vsel %vm1450, %v1371, 0
      %v1455 = vsel %vm1450, %v1372, 0
      %v1458 = vsel %vm1450, %v1373, 0
      %1460 = vmatprep.subr.bf16.mxu0 %v1369
      %1461 = vmatpush1.bf16.msra.mxu0 %v1368
      %1462 = vmatprep.subr.bf16.mxu0 %v1455
      %1463 = vmatpush1.bf16.msra.mxu0 %v1452
      %1464 = vmatprep.subr.bf16.mxu0 0
      %1465 = vmatpush1.bf16.msra.mxu0 0
      %1466 = vmatprep.subr.bf16.mxu0 0
      %1467 = vmatpush1.bf16.msra.mxu0 0
      %1468 = vmatprep.subr.bf16.mxu0 0
      %1469 = vmatpush1.bf16.msra.mxu0 0
      %1470 = vmatprep.subr.bf16.mxu0 0
      %1471 = vmatpush1.bf16.msra.mxu0 0
      %1472 = vmatprep.subr.bf16.mxu0 0
      %1473 = vmatpush1.bf16.msra.mxu0 0
      %1474 = vmatprep.subr.bf16.mxu0 0
      %1475 = vmatpush1.bf16.msra.mxu0 0
      %1476 = vmatprep.subr.bf16.mxu0 0
      %1477 = vmatpush1.bf16.msra.mxu0 0
      %1478 = vmatprep.subr.bf16.mxu0 0
      %1479 = vmatpush1.bf16.msra.mxu0 0
      %1480 = vmatprep.subr.bf16.mxu0 0
      %1481 = vmatpush1.bf16.msra.mxu0 0
      %1482 = vmatprep.subr.bf16.mxu0 0
      %1483 = vmatpush1.bf16.msra.mxu0 0
      %1484 = vmatprep.subr.bf16.mxu0 0
      %1485 = vmatpush1.bf16.msra.mxu0 0
      %1486 = vmatprep.subr.bf16.mxu0 0
      %1487 = vmatpush1.bf16.msra.mxu0 0
      %1488 = vmatprep.subr.bf16.mxu0 0
      %1489 = vmatpush1.bf16.msra.mxu0 0
      %1490 = vmatprep.subr.bf16.mxu0 0
      %1491 = vmatpush1.bf16.msra.mxu0 0
      %1492 = vmatprep.mubr.bf16.mxu0 0
      %1493 = vmatmul.mubr.bf16.gmra.mrb[0].mxu0 %v1379
      %v1494 = vpop.f32.mrb[0].mxu0
      %v1495 = vadd.f32 0.0, %v1494
      %v1496 = vpop.f32.mrb[0].mxu0
      %v1497 = vadd.f32 0.0, %v1496
      %v1498 = vpop.f32.mrb[0].mxu0
      %v1499 = vadd.f32 0.0, %v1498
      %v1500 = vpop.f32.mrb[0].mxu0
      %v1501 = vadd.f32 0.0, %v1500
      %1502 = vmatprep.mubr.bf16.mxu0 0
      %1503 = vmatmul.mubr.bf16.gmra.mrb[0].mxu0 %v1382
      %v1504 = vpop.f32.mrb[0].mxu0
      %v1505 = vpop.f32.mrb[0].mxu0
      %v1506 = vadd.f32 0.0, %v1505
      %v1507 = vpop.f32.mrb[0].mxu0
      %v1508 = vadd.f32 0.0, %v1507
      %v1509 = vpop.f32.mrb[0].mxu0
      %v1510 = vadd.f32 0.0, %v1509
      %1511 = vmatprep.mubr.bf16.mxu0 0
      %1512 = vmatmul.mubr.bf16.gmra.mrb[0].mxu0 %v1385
      %v1513 = vpop.f32.mrb[0].mxu0
      %v1514 = vadd.f32 0.0, %v1513
      %v1515 = vpop.f32.mrb[0].mxu0
      %v1516 = vadd.f32 0.0, %v1515
      %v1517 = vpop.f32.mrb[0].mxu0
      %v1518 = vpop.f32.mrb[0].mxu0
      %v1519 = vadd.f32 0.0, %v1518
      %1520 = vmatprep.mubr.bf16.mxu0 0
      %1521 = vmatmul.mubr.bf16.gmra.mrb[0].mxu0 %v1388
      %v1522 = vpop.f32.mrb[0].mxu0
      %v1523 = vadd.f32 0.0, %v1522
      %v1524 = vpop.f32.mrb[0].mxu0
      %v1525 = vadd.f32 0.0, %v1524
      %v1526 = vpop.f32.mrb[0].mxu0
      %v1527 = vadd.f32 0.0, %v1526
      %v1528 = vpop.f32.mrb[0].mxu0
      %v1529 = vadd.f32 0.0, %v1528
      %1530 = vmatprep.mubr.bf16.mxu0 0
      %1531 = vmatmul.mubr.bf16.gmra.mrb[0].mxu0 %v1391
      %v1532 = vpop.f32.mrb[0].mxu0
      %v1533 = vpop.f32.mrb[0].mxu0
      %v1534 = vadd.f32 0.0, %v1533
      %v1535 = vpop.f32.mrb[0].mxu0
      %v1536 = vadd.f32 0.0, %v1535
      %v1537 = vpop.f32.mrb[0].mxu0
      %v1538 = vadd.f32 0.0, %v1537
      %1539 = vmatprep.mubr.bf16.mxu0 0
      %1540 = vmatmul.mubr.bf16.gmra.mrb[0].mxu0 %v1394
      %v1541 = vpop.f32.mrb[0].mxu0
      %v1542 = vadd.f32 0.0, %v1541
      %v1543 = vpop.f32.mrb[0].mxu0
      %v1544 = vadd.f32 0.0, %v1543
      %v1545 = vpop.f32.mrb[0].mxu0
      %v1546 = vpop.f32.mrb[0].mxu0
      %v1547 = vadd.f32 0.0, %v1546
      %1548 = vmatprep.mubr.bf16.mxu0 0
      %1549 = vmatmul.mubr.bf16.gmra.mrb[0].mxu0 %v1397
      %v1550 = vpop.f32.mrb[0].mxu0
      %v1551 = vadd.f32 0.0, %v1550
      %v1552 = vpop.f32.mrb[0].mxu0
      %v1553 = vadd.f32 0.0, %v1552
      %v1554 = vpop.f32.mrb[0].mxu0
      %v1555 = vadd.f32 0.0, %v1554
      %v1556 = vpop.f32.mrb[0].mxu0
      %v1557 = vadd.f32 0.0, %v1556
      %1558 = vmatprep.mubr.bf16.mxu0 0
      %1559 = vmatmul.mubr.bf16.gmra.mrb[0].mxu0 %v1400
      %v1560 = vpop.f32.mrb[0].mxu0
      %v1561 = vpop.f32.mrb[0].mxu0
      %v1562 = vadd.f32 0.0, %v1561
      %v1563 = vpop.f32.mrb[0].mxu0
      %v1564 = vadd.f32 0.0, %v1563
      %v1565 = vpop.f32.mrb[0].mxu0
      %v1566 = vadd.f32 0.0, %v1565
      %1567 = vmatprep.mubr.bf16.mxu0 0
      %1568 = vmatmul.mubr.bf16.gmra.mrb[0].mxu0 %v1403
      %v1569 = vpop.f32.mrb[0].mxu0
      %v1570 = vadd.f32 0.0, %v1569
      %v1571 = vpop.f32.mrb[0].mxu0
      %v1572 = vadd.f32 0.0, %v1571
      %v1573 = vpop.f32.mrb[0].mxu0
      %v1574 = vpop.f32.mrb[0].mxu0
      %v1575 = vadd.f32 0.0, %v1574
      %1576 = vmatprep.mubr.bf16.mxu0 0
      %1577 = vmatmul.mubr.bf16.gmra.mrb[0].mxu0 %v1406
      %v1578 = vpop.f32.mrb[0].mxu0
      %v1579 = vadd.f32 0.0, %v1578
      %v1580 = vpop.f32.mrb[0].mxu0
      %v1581 = vadd.f32 0.0, %v1580
      %v1582 = vpop.f32.mrb[0].mxu0
      %v1583 = vadd.f32 0.0, %v1582
      %v1584 = vpop.f32.mrb[0].mxu0
      %v1585 = vadd.f32 0.0, %v1584
      %1586 = vmatprep.mubr.bf16.mxu0 0
      %1587 = vmatmul.mubr.bf16.gmra.mrb[0].mxu0 %v1409
      %v1588 = vpop.f32.mrb[0].mxu0
      %v1589 = vpop.f32.mrb[0].mxu0
      %v1590 = vadd.f32 0.0, %v1589
      %v1591 = vpop.f32.mrb[0].mxu0
      %v1592 = vadd.f32 0.0, %v1591
      %v1593 = vpop.f32.mrb[0].mxu0
      %v1594 = vadd.f32 0.0, %v1593
      %1595 = vmatprep.mubr.bf16.mxu0 0
      %1596 = vmatmul.mubr.bf16.gmra.mrb[0].mxu0 %v1412
      %v1597 = vpop.f32.mrb[0].mxu0
      %v1598 = vadd.f32 0.0, %v1597
      %v1599 = vpop.f32.mrb[0].mxu0
      %v1600 = vadd.f32 0.0, %v1599
      %v1601 = vpop.f32.mrb[0].mxu0
      %v1602 = vpop.f32.mrb[0].mxu0
      %v1603 = vadd.f32 0.0, %v1602
      %1604 = vmatprep.mubr.bf16.mxu0 0
      %1605 = vmatmul.mubr.bf16.gmra.mrb[0].mxu0 %v1415
      %v1606 = vpop.f32.mrb[0].mxu0
      %v1607 = vadd.f32 0.0, %v1606
      %v1608 = vpop.f32.mrb[0].mxu0
      %v1609 = vadd.f32 0.0, %v1608
      %v1610 = vpop.f32.mrb[0].mxu0
      %v1611 = vadd.f32 0.0, %v1610
      %v1612 = vpop.f32.mrb[0].mxu0
      %v1613 = vadd.f32 0.0, %v1612
      %1614 = vmatprep.mubr.bf16.mxu0 0
      %1615 = vmatmul.mubr.bf16.gmra.mrb[0].mxu0 %v1418
      %v1616 = vpop.f32.mrb[0].mxu0
      %v1617 = vpop.f32.mrb[0].mxu0
      %v1618 = vadd.f32 0.0, %v1617
      %v1619 = vpop.f32.mrb[0].mxu0
      %v1620 = vadd.f32 0.0, %v1619
      %v1621 = vpop.f32.mrb[0].mxu0
      %v1622 = vadd.f32 0.0, %v1621
      %1623 = vmatprep.mubr.bf16.mxu0 0
      %1624 = vmatmul.mubr.bf16.gmra.mrb[0].mxu0 %v1421
      %v1625 = vpop.f32.mrb[0].mxu0
      %v1626 = vadd.f32 0.0, %v1625
      %v1627 = vpop.f32.mrb[0].mxu0
      %v1628 = vadd.f32 0.0, %v1627
      %v1629 = vpop.f32.mrb[0].mxu0
      %v1630 = vpop.f32.mrb[0].mxu0
      %v1631 = vadd.f32 0.0, %v1630
      %1632 = vmatprep.mubr.bf16.mxu0 0
      %1633 = vmatmul.mubr.bf16.gmra.mrb[0].mxu0 %v1424
      %v1634 = vpop.f32.mrb[0].mxu0
      %v1635 = vadd.f32 0.0, %v1634
      %v1636 = vpop.f32.mrb[0].mxu0
      %v1637 = vadd.f32 0.0, %v1636
      %v1638 = vpop.f32.mrb[0].mxu0
      %v1639 = vadd.f32 0.0, %v1638
      %v1640 = vpop.f32.mrb[0].mxu0
      %v1641 = vadd.f32 0.0, %v1640
      %1642 = vmatprep.mubr.bf16.mxu0 0
      %1643 = vmatmul.mubr.bf16.gmra.mrb[0].mxu0 %v1427
      %v1644 = vpop.f32.mrb[0].mxu0
      %v1645 = vpop.f32.mrb[0].mxu0
      %v1646 = vadd.f32 0.0, %v1645
      %v1647 = vpop.f32.mrb[0].mxu0
      %v1648 = vadd.f32 0.0, %v1647
      %v1649 = vpop.f32.mrb[0].mxu0
      %v1650 = vadd.f32 0.0, %v1649
      %1651 = vmatprep.mubr.bf16.mxu0 0
      %1652 = vmatmul.mubr.bf16.gmra.mrb[0].mxu0 %v1430
      %v1653 = vpop.f32.mrb[0].mxu0
      %v1654 = vadd.f32 0.0, %v1653
      %v1655 = vpop.f32.mrb[0].mxu0
      %v1656 = vadd.f32 0.0, %v1655
      %v1657 = vpop.f32.mrb[0].mxu0
      %v1658 = vpop.f32.mrb[0].mxu0
      %v1659 = vadd.f32 0.0, %v1658
      %1660 = vmatprep.mubr.bf16.mxu0 0
      %1661 = vmatmul.mubr.bf16.gmra.mrb[0].mxu0 %v1433
      %v1662 = vpop.f32.mrb[0].mxu0
      %v1663 = vadd.f32 0.0, %v1662
      %v1664 = vpop.f32.mrb[0].mxu0
      %v1665 = vadd.f32 0.0, %v1664
      %v1666 = vpop.f32.mrb[0].mxu0
      %v1667 = vadd.f32 0.0, %v1666
      %v1668 = vpop.f32.mrb[0].mxu0
      %v1669 = vadd.f32 0.0, %v1668
      %1670 = vmatprep.mubr.bf16.mxu0 0
      %1671 = vmatmul.mubr.bf16.gmra.mrb[0].mxu0 %v1436
      %v1672 = vpop.f32.mrb[0].mxu0
      %v1673 = vpop.f32.mrb[0].mxu0
      %v1674 = vadd.f32 0.0, %v1673
      %v1675 = vpop.f32.mrb[0].mxu0
      %v1676 = vadd.f32 0.0, %v1675
      %v1677 = vpop.f32.mrb[0].mxu0
      %v1678 = vadd.f32 0.0, %v1677
      %1679 = vmatprep.mubr.bf16.mxu0 0
      %1680 = vmatmul.mubr.bf16.gmra.mrb[0].mxu0 %v1439
      %v1681 = vpop.f32.mrb[0].mxu0
      %v1682 = vadd.f32 0.0, %v1681
      %v1683 = vpop.f32.mrb[0].mxu0
      %v1684 = vadd.f32 0.0, %v1683
      %v1685 = vpop.f32.mrb[0].mxu0
      %v1686 = vpop.f32.mrb[0].mxu0
      %v1687 = vadd.f32 0.0, %v1686
      %1688 = vmatprep.mubr.bf16.mxu0 0
      %1689 = vmatmul.mubr.bf16.gmra.mrb[0].mxu0 %v1442
      %v1690 = vpop.f32.mrb[0].mxu0
      %v1691 = vadd.f32 0.0, %v1690
      %v1692 = vpop.f32.mrb[0].mxu0
      %v1693 = vadd.f32 0.0, %v1692
      %v1694 = vpop.f32.mrb[0].mxu0
      %v1695 = vadd.f32 0.0, %v1694
      %v1696 = vpop.f32.mrb[0].mxu0
      %v1697 = vadd.f32 0.0, %v1696
      %1698 = vmatprep.mubr.bf16.mxu0 0
      %1699 = vmatmul.mubr.bf16.gmra.mrb[0].mxu0 %v1445
      %v1700 = vpop.f32.mrb[0].mxu0
      %v1701 = vpop.f32.mrb[0].mxu0
      %v1702 = vadd.f32 0.0, %v1701
      %v1703 = vpop.f32.mrb[0].mxu0
      %v1704 = vadd.f32 0.0, %v1703
      %v1705 = vpop.f32.mrb[0].mxu0
      %v1706 = vadd.f32 0.0, %v1705
      %1707 = vmatprep.mubr.bf16.mxu0 0
      %1708 = vmatmul.mubr.bf16.gmra.mrb[0].mxu0 %v1448
      %v1709 = vpop.f32.mrb[0].mxu0
      %v1710 = vadd.f32 0.0, %v1709
      %v1711 = vpop.f32.mrb[0].mxu0
      %v1712 = vadd.f32 0.0, %v1711
      %v1713 = vpop.f32.mrb[0].mxu0
      %v1714 = vpop.f32.mrb[0].mxu0
      %v1715 = vadd.f32 0.0, %v1714
      %1716 = vdwg.mxu0
      %1717 = vmatprep.subr.bf16.mxu0 0
      %1718 = vmatpush1.bf16.msra.mxu0 %v1370
      %1719 = vmatprep.subr.bf16.mxu0 0
      %1720 = vmatpush1.bf16.msra.mxu0 %v1458
      %1721 = vmatprep.subr.bf16.mxu0 0
      %1722 = vmatpush1.bf16.msra.mxu0 0
      %1723 = vmatprep.subr.bf16.mxu0 0
      %1724 = vmatpush1.bf16.msra.mxu0 0
      %1725 = vmatprep.subr.bf16.mxu0 0
      %1726 = vmatpush1.bf16.msra.mxu0 0
      %1727 = vmatprep.subr.bf16.mxu0 0
      %1728 = vmatpush1.bf16.msra.mxu0 0
      %1729 = vmatprep.subr.bf16.mxu0 0
      %1730 = vmatpush1.bf16.msra.mxu0 0
      %1731 = vmatprep.subr.bf16.mxu0 0
      %1732 = vmatpush1.bf16.msra.mxu0 0
      %1733 = vmatprep.subr.bf16.mxu0 0
      %1734 = vmatpush1.bf16.msra.mxu0 0
      %1735 = vmatprep.subr.bf16.mxu0 0
      %1736 = vmatpush1.bf16.msra.mxu0 0
      %1737 = vmatprep.subr.bf16.mxu0 0
      %1738 = vmatpush1.bf16.msra.mxu0 0
      %1739 = vmatprep.subr.bf16.mxu0 0
      %1740 = vmatpush1.bf16.msra.mxu0 0
      %1741 = vmatprep.subr.bf16.mxu0 0
      %1742 = vmatpush1.bf16.msra.mxu0 0
      %1743 = vmatprep.subr.bf16.mxu0 0
      %1744 = vmatpush1.bf16.msra.mxu0 0
      %1745 = vmatprep.subr.bf16.mxu0 0
      %1746 = vmatpush1.bf16.msra.mxu0 0
      %1747 = vmatprep.subr.bf16.mxu0 0
      %1748 = vmatpush1.bf16.msra.mxu0 0
      %1749 = vmatprep.mubr.bf16.mxu0 0
      %1750 = vmatmul.mubr.bf16.gmra.mrb[0].mxu0 %v1379
      %v1751 = vpop.f32.mrb[0].mxu0
      %v1752 = vadd.f32 0.0, %v1751
      %v1753 = vpop.f32.mrb[0].mxu0
      %v1754 = vpop.f32.mrb[0].mxu0
      %v1755 = vadd.f32 0.0, %v1754
      %v1756 = vpop.f32.mrb[0].mxu0
      %1757 = vmatprep.mubr.bf16.mxu0 0
      %1758 = vmatmul.mubr.bf16.gmra.mrb[0].mxu0 %v1382
      %v1759 = vpop.f32.mrb[0].mxu0
      %v1760 = vadd.f32 0.0, %v1759
      %v1761 = vpop.f32.mrb[0].mxu0
      %v1762 = vpop.f32.mrb[0].mxu0
      %v1763 = vadd.f32 0.0, %v1762
      %v1764 = vpop.f32.mrb[0].mxu0
      %1765 = vmatprep.mubr.bf16.mxu0 0
      %1766 = vmatmul.mubr.bf16.gmra.mrb[0].mxu0 %v1385
      %v1767 = vpop.f32.mrb[0].mxu0
      %v1768 = vadd.f32 0.0, %v1767
      %v1769 = vpop.f32.mrb[0].mxu0
      %v1770 = vpop.f32.mrb[0].mxu0
      %v1771 = vadd.f32 0.0, %v1770
      %v1772 = vpop.f32.mrb[0].mxu0
      %1773 = vmatprep.mubr.bf16.mxu0 0
      %1774 = vmatmul.mubr.bf16.gmra.mrb[0].mxu0 %v1388
      %v1775 = vpop.f32.mrb[0].mxu0
      %v1776 = vadd.f32 0.0, %v1775
      %v1777 = vpop.f32.mrb[0].mxu0
      %v1778 = vpop.f32.mrb[0].mxu0
      %v1779 = vadd.f32 0.0, %v1778
      %v1780 = vpop.f32.mrb[0].mxu0
      %1781 = vmatprep.mubr.bf16.mxu0 0
      %1782 = vmatmul.mubr.bf16.gmra.mrb[0].mxu0 %v1391
      %v1783 = vpop.f32.mrb[0].mxu0
      %v1784 = vadd.f32 0.0, %v1783
      %v1785 = vpop.f32.mrb[0].mxu0
      %v1786 = vpop.f32.mrb[0].mxu0
      %v1787 = vadd.f32 0.0, %v1786
      %v1788 = vpop.f32.mrb[0].mxu0
      %1789 = vmatprep.mubr.bf16.mxu0 0
      %1790 = vmatmul.mubr.bf16.gmra.mrb[0].mxu0 %v1394
      %v1791 = vpop.f32.mrb[0].mxu0
      %v1792 = vadd.f32 0.0, %v1791
      %v1793 = vpop.f32.mrb[0].mxu0
      %v1794 = vpop.f32.mrb[0].mxu0
      %v1795 = vadd.f32 0.0, %v1794
      %v1796 = vpop.f32.mrb[0].mxu0
      %1797 = vmatprep.mubr.bf16.mxu0 0
      %1798 = vmatmul.mubr.bf16.gmra.mrb[0].mxu0 %v1397
      %v1799 = vpop.f32.mrb[0].mxu0
      %v1800 = vadd.f32 0.0, %v1799
      %v1801 = vpop.f32.mrb[0].mxu0
      %v1802 = vpop.f32.mrb[0].mxu0
      %v1803 = vadd.f32 0.0, %v1802
      %v1804 = vpop.f32.mrb[0].mxu0
      %1805 = vmatprep.mubr.bf16.mxu0 0
      %1806 = vmatmul.mubr.bf16.gmra.mrb[0].mxu0 %v1400
      %v1807 = vpop.f32.mrb[0].mxu0
      %v1808 = vadd.f32 0.0, %v1807
      %v1809 = vpop.f32.mrb[0].mxu0
      %v1810 = vpop.f32.mrb[0].mxu0
      %v1811 = vadd.f32 0.0, %v1810
      %v1812 = vpop.f32.mrb[0].mxu0
      %1813 = vmatprep.mubr.bf16.mxu0 0
      %1814 = vmatmul.mubr.bf16.gmra.mrb[0].mxu0 %v1403
      %v1815 = vpop.f32.mrb[0].mxu0
      %v1816 = vadd.f32 0.0, %v1815
      %v1817 = vpop.f32.mrb[0].mxu0
      %v1818 = vpop.f32.mrb[0].mxu0
      %v1819 = vadd.f32 0.0, %v1818
      %v1820 = vpop.f32.mrb[0].mxu0
      %1821 = vmatprep.mubr.bf16.mxu0 0
      %1822 = vmatmul.mubr.bf16.gmra.mrb[0].mxu0 %v1406
      %v1823 = vpop.f32.mrb[0].mxu0
      %v1824 = vadd.f32 0.0, %v1823
      %v1825 = vpop.f32.mrb[0].mxu0
      %v1826 = vpop.f32.mrb[0].mxu0
      %v1827 = vadd.f32 0.0, %v1826
      %v1828 = vpop.f32.mrb[0].mxu0
      %1829 = vmatprep.mubr.bf16.mxu0 0
      %1830 = vmatmul.mubr.bf16.gmra.mrb[0].mxu0 %v1409
      %v1831 = vpop.f32.mrb[0].mxu0
      %v1832 = vadd.f32 0.0, %v1831
      %v1833 = vpop.f32.mrb[0].mxu0
      %v1834 = vpop.f32.mrb[0].mxu0
      %v1835 = vadd.f32 0.0, %v1834
      %v1836 = vpop.f32.mrb[0].mxu0
      %1837 = vmatprep.mubr.bf16.mxu0 0
      %1838 = vmatmul.mubr.bf16.gmra.mrb[0].mxu0 %v1412
      %v1839 = vpop.f32.mrb[0].mxu0
      %v1840 = vadd.f32 0.0, %v1839
      %v1841 = vpop.f32.mrb[0].mxu0
      %v1842 = vpop.f32.mrb[0].mxu0
      %v1843 = vadd.f32 0.0, %v1842
      %v1844 = vpop.f32.mrb[0].mxu0
      %1845 = vmatprep.mubr.bf16.mxu0 0
      %1846 = vmatmul.mubr.bf16.gmra.mrb[0].mxu0 %v1415
      %v1847 = vpop.f32.mrb[0].mxu0
      %v1848 = vadd.f32 0.0, %v1847
      %v1849 = vpop.f32.mrb[0].mxu0
      %v1850 = vpop.f32.mrb[0].mxu0
      %v1851 = vadd.f32 0.0, %v1850
      %v1852 = vpop.f32.mrb[0].mxu0
      %1853 = vmatprep.mubr.bf16.mxu0 0
      %1854 = vmatmul.mubr.bf16.gmra.mrb[0].mxu0 %v1418
      %v1855 = vpop.f32.mrb[0].mxu0
      %v1856 = vadd.f32 0.0, %v1855
      %v1857 = vpop.f32.mrb[0].mxu0
      %v1858 = vpop.f32.mrb[0].mxu0
      %v1859 = vadd.f32 0.0, %v1858
      %v1860 = vpop.f32.mrb[0].mxu0
      %1861 = vmatprep.mubr.bf16.mxu0 0
      %1862 = vmatmul.mubr.bf16.gmra.mrb[0].mxu0 %v1421
      %v1863 = vpop.f32.mrb[0].mxu0
      %v1864 = vadd.f32 0.0, %v1863
      %v1865 = vpop.f32.mrb[0].mxu0
      %v1866 = vpop.f32.mrb[0].mxu0
      %v1867 = vadd.f32 0.0, %v1866
      %v1868 = vpop.f32.mrb[0].mxu0
      %1869 = vmatprep.mubr.bf16.mxu0 0
      %1870 = vmatmul.mubr.bf16.gmra.mrb[0].mxu0 %v1424
      %v1871 = vpop.f32.mrb[0].mxu0
      %v1872 = vadd.f32 0.0, %v1871
      %v1873 = vpop.f32.mrb[0].mxu0
      %v1874 = vpop.f32.mrb[0].mxu0
      %v1875 = vadd.f32 0.0, %v1874
      %v1876 = vpop.f32.mrb[0].mxu0
      %1877 = vmatprep.mubr.bf16.mxu0 0
      %1878 = vmatmul.mubr.bf16.gmra.mrb[0].mxu0 %v1427
      %v1879 = vpop.f32.mrb[0].mxu0
      %v1880 = vadd.f32 0.0, %v1879
      %v1881 = vpop.f32.mrb[0].mxu0
      %v1882 = vpop.f32.mrb[0].mxu0
      %v1883 = vadd.f32 0.0, %v1882
      %v1884 = vpop.f32.mrb[0].mxu0
      %1885 = vmatprep.mubr.bf16.mxu0 0
      %1886 = vmatmul.mubr.bf16.gmra.mrb[0].mxu0 %v1430
      %v1887 = vpop.f32.mrb[0].mxu0
      %v1888 = vadd.f32 0.0, %v1887
      %v1889 = vpop.f32.mrb[0].mxu0
      %v1890 = vpop.f32.mrb[0].mxu0
      %v1891 = vadd.f32 0.0, %v1890
      %v1892 = vpop.f32.mrb[0].mxu0
      %1893 = vmatprep.mubr.bf16.mxu0 0
      %1894 = vmatmul.mubr.bf16.gmra.mrb[0].mxu0 %v1433
      %v1895 = vpop.f32.mrb[0].mxu0
      %v1896 = vadd.f32 0.0, %v1895
      %v1897 = vpop.f32.mrb[0].mxu0
      %v1898 = vpop.f32.mrb[0].mxu0
      %v1899 = vadd.f32 0.0, %v1898
      %v1900 = vpop.f32.mrb[0].mxu0
      %1901 = vmatprep.mubr.bf16.mxu0 0
      %1902 = vmatmul.mubr.bf16.gmra.mrb[0].mxu0 %v1436
      %v1903 = vpop.f32.mrb[0].mxu0
      %v1904 = vadd.f32 0.0, %v1903
      %v1905 = vpop.f32.mrb[0].mxu0
      %v1906 = vpop.f32.mrb[0].mxu0
      %v1907 = vadd.f32 0.0, %v1906
      %v1908 = vpop.f32.mrb[0].mxu0
      %1909 = vmatprep.mubr.bf16.mxu0 0
      %1910 = vmatmul.mubr.bf16.gmra.mrb[0].mxu0 %v1439
      %v1911 = vpop.f32.mrb[0].mxu0
      %v1912 = vadd.f32 0.0, %v1911
      %v1913 = vpop.f32.mrb[0].mxu0
      %v1914 = vpop.f32.mrb[0].mxu0
      %v1915 = vadd.f32 0.0, %v1914
      %v1916 = vpop.f32.mrb[0].mxu0
      %1917 = vmatprep.mubr.bf16.mxu0 0
      %1918 = vmatmul.mubr.bf16.gmra.mrb[0].mxu0 %v1442
      %v1919 = vpop.f32.mrb[0].mxu0
      %v1920 = vadd.f32 0.0, %v1919
      %v1921 = vpop.f32.mrb[0].mxu0
      %v1922 = vpop.f32.mrb[0].mxu0
      %v1923 = vadd.f32 0.0, %v1922
      %v1924 = vpop.f32.mrb[0].mxu0
      %1925 = vmatprep.mubr.bf16.mxu0 0
      %1926 = vmatmul.mubr.bf16.gmra.mrb[0].mxu0 %v1445
      %v1927 = vpop.f32.mrb[0].mxu0
      %v1928 = vadd.f32 0.0, %v1927
      %v1929 = vpop.f32.mrb[0].mxu0
      %v1930 = vpop.f32.mrb[0].mxu0
      %v1931 = vadd.f32 0.0, %v1930
      %v1932 = vpop.f32.mrb[0].mxu0
      %1933 = vmatprep.mubr.bf16.mxu0 0
      %1934 = vmatmul.mubr.bf16.gmra.mrb[0].mxu0 %v1448
      %v1935 = vpop.f32.mrb[0].mxu0
      %v1936 = vadd.f32 0.0, %v1935
      %v1937 = vpop.f32.mrb[0].mxu0
      %v1938 = vpop.f32.mrb[0].mxu0
      %v1939 = vadd.f32 0.0, %v1938
      %v1940 = vpop.f32.mrb[0].mxu0
      %1941 = vdwg.mxu0
      %vm1990 = vcmask 1046528
      %v1991 = vrot.slane %v1497, 1
      %v1992 = vrot.slane %v1501, 1
      %v1993 = vsel %vm1990, %v1991, %v1992
      %v1994 = vrot.slane %v1506, 1
      %v1995 = vsel %vm1990, %v1992, %v1994
      %v1996 = vrot.slane %v1510, 1
      %v1997 = vrot.slane %v1516, 1
      %v1998 = vsel %vm1990, %v1996, %v1997
      %v1999 = vrot.slane %v1519, 1
      %v2000 = vsel %vm1990, %v1997, %v1999
      %v2001 = vrot.slane %v1525, 1
      %v2002 = vrot.slane %v1529, 1
      %v2003 = vsel %vm1990, %v2001, %v2002
      %v2004 = vrot.slane %v1534, 1
      %v2005 = vsel %vm1990, %v2002, %v2004
      %v2006 = vrot.slane %v1538, 1
      %v2007 = vrot.slane %v1544, 1
      %v2008 = vsel %vm1990, %v2006, %v2007
      %v2009 = vrot.slane %v1547, 1
      %v2010 = vsel %vm1990, %v2007, %v2009
      %v2011 = vrot.slane %v1553, 1
      %v2012 = vrot.slane %v1557, 1
      %v2013 = vsel %vm1990, %v2011, %v2012
      %v2014 = vrot.slane %v1562, 1
      %v2015 = vsel %vm1990, %v2012, %v2014
      %v2016 = vrot.slane %v1566, 1
      %v2017 = vrot.slane %v1572, 1
      %v2018 = vsel %vm1990, %v2016, %v2017
      %v2019 = vrot.slane %v1575, 1
      %v2020 = vsel %vm1990, %v2017, %v2019
      %v2021 = vrot.slane %v1581, 1
      %v2022 = vrot.slane %v1585, 1
      %v2023 = vsel %vm1990, %v2021, %v2022
      %v2024 = vrot.slane %v1590, 1
      %v2025 = vsel %vm1990, %v2022, %v2024
      %v2026 = vrot.slane %v1594, 1
      %v2027 = vrot.slane %v1600, 1
      %v2028 = vsel %vm1990, %v2026, %v2027
      %v2029 = vrot.slane %v1603, 1
      %v2030 = vsel %vm1990, %v2027, %v2029
      %v2031 = vrot.slane %v1609, 1
      %v2032 = vrot.slane %v1613, 1
      %v2033 = vsel %vm1990, %v2031, %v2032
      %v2034 = vrot.slane %v1618, 1
      %v2035 = vsel %vm1990, %v2032, %v2034
      %v2036 = vrot.slane %v1622, 1
      %v2037 = vrot.slane %v1628, 1
      %v2038 = vsel %vm1990, %v2036, %v2037
      %v2039 = vrot.slane %v1631, 1
      %v2040 = vsel %vm1990, %v2037, %v2039
      %v2041 = vrot.slane %v1637, 1
      %v2042 = vrot.slane %v1641, 1
      %v2043 = vsel %vm1990, %v2041, %v2042
      %v2044 = vrot.slane %v1646, 1
      %v2045 = vsel %vm1990, %v2042, %v2044
      %v2046 = vrot.slane %v1650, 1
      %v2047 = vrot.slane %v1656, 1
      %v2048 = vsel %vm1990, %v2046, %v2047
      %v2049 = vrot.slane %v1659, 1
      %v2050 = vsel %vm1990, %v2047, %v2049
      %v2051 = vrot.slane %v1665, 1
      %v2052 = vrot.slane %v1669, 1
      %v2053 = vsel %vm1990, %v2051, %v2052
      %v2054 = vrot.slane %v1674, 1
      %v2055 = vsel %vm1990, %v2052, %v2054
      %v2056 = vrot.slane %v1678, 1
      %v2057 = vrot.slane %v1684, 1
      %v2058 = vsel %vm1990, %v2056, %v2057
      %v2059 = vrot.slane %v1687, 1
      %v2060 = vsel %vm1990, %v2057, %v2059
      %v2061 = vrot.slane %v1693, 1
      %v2062 = vrot.slane %v1697, 1
      %v2063 = vsel %vm1990, %v2061, %v2062
      %v2064 = vrot.slane %v1702, 1
      %v2065 = vsel %vm1990, %v2062, %v2064
      %v2066 = vrot.slane %v1706, 1
      %v2067 = vrot.slane %v1712, 1
      %v2068 = vsel %vm1990, %v2066, %v2067
      %v2069 = vrot.slane %v1715, 1
      %v2070 = vsel %vm1990, %v2067, %v2069
      %v2103 = vadd.f32 %v1495, %v1993
      %v2104 = vadd.f32 %v1499, %v1995
      %v2105 = vadd.f32 %v1508, %v1998
      %v2106 = vadd.f32 %v1514, %v2000
      %v2107 = vadd.f32 %v1523, %v2003
      %v2108 = vadd.f32 %v1527, %v2005
      %v2109 = vadd.f32 %v1536, %v2008
      %v2110 = vadd.f32 %v1542, %v2010
      %v2111 = vadd.f32 %v1551, %v2013
      %v2112 = vadd.f32 %v1555, %v2015
      %v2113 = vadd.f32 %v1564, %v2018
      %v2114 = vadd.f32 %v1570, %v2020
      %v2115 = vadd.f32 %v1579, %v2023
      %v2116 = vadd.f32 %v1583, %v2025
      %v2117 = vadd.f32 %v1592, %v2028
      %v2118 = vadd.f32 %v1598, %v2030
      %v2119 = vadd.f32 %v1607, %v2033
      %v2120 = vadd.f32 %v1611, %v2035
      %v2121 = vadd.f32 %v1620, %v2038
      %v2122 = vadd.f32 %v1626, %v2040
      %v2123 = vadd.f32 %v1635, %v2043
      %v2124 = vadd.f32 %v1639, %v2045
      %v2125 = vadd.f32 %v1648, %v2048
      %v2126 = vadd.f32 %v1654, %v2050
      %v2127 = vadd.f32 %v1663, %v2053
      %v2128 = vadd.f32 %v1667, %v2055
      %v2129 = vadd.f32 %v1676, %v2058
      %v2130 = vadd.f32 %v1682, %v2060
      %v2131 = vadd.f32 %v1691, %v2063
      %v2132 = vadd.f32 %v1695, %v2065
      %v2133 = vadd.f32 %v1704, %v2068
      %v2134 = vadd.f32 %v1710, %v2070
      %vm2183 = vcmask 1045504
      %v2184 = vrot.slane %v1752, 2
      %v2185 = vrot.slane %v1755, 2
      %v2186 = vsel %vm2183, %v2184, %v2185
      %v2187 = vrot.slane %v1760, 2
      %v2188 = vsel %vm2183, %v2185, %v2187
      %v2189 = vrot.slane %v1763, 2
      %v2190 = vrot.slane %v1768, 2
      %v2191 = vsel %vm2183, %v2189, %v2190
      %v2192 = vrot.slane %v1771, 2
      %v2193 = vsel %vm2183, %v2190, %v2192
      %v2194 = vrot.slane %v1776, 2
      %v2195 = vrot.slane %v1779, 2
      %v2196 = vsel %vm2183, %v2194, %v2195
      %v2197 = vrot.slane %v1784, 2
      %v2198 = vsel %vm2183, %v2195, %v2197
      %v2199 = vrot.slane %v1787, 2
      %v2200 = vrot.slane %v1792, 2
      %v2201 = vsel %vm2183, %v2199, %v2200
      %v2202 = vrot.slane %v1795, 2
      %v2203 = vsel %vm2183, %v2200, %v2202
      %v2204 = vrot.slane %v1800, 2
      %v2205 = vrot.slane %v1803, 2
      %v2206 = vsel %vm2183, %v2204, %v2205
      %v2207 = vrot.slane %v1808, 2
      %v2208 = vsel %vm2183, %v2205, %v2207
      %v2209 = vrot.slane %v1811, 2
      %v2210 = vrot.slane %v1816, 2
      %v2211 = vsel %vm2183, %v2209, %v2210
      %v2212 = vrot.slane %v1819, 2
      %v2213 = vsel %vm2183, %v2210, %v2212
      %v2214 = vrot.slane %v1824, 2
      %v2215 = vrot.slane %v1827, 2
      %v2216 = vsel %vm2183, %v2214, %v2215
      %v2217 = vrot.slane %v1832, 2
      %v2218 = vsel %vm2183, %v2215, %v2217
      %v2219 = vrot.slane %v1835, 2
      %v2220 = vrot.slane %v1840, 2
      %v2221 = vsel %vm2183, %v2219, %v2220
      %v2222 = vrot.slane %v1843, 2
      %v2223 = vsel %vm2183, %v2220, %v2222
      %v2224 = vrot.slane %v1848, 2
      %v2225 = vrot.slane %v1851, 2
      %v2226 = vsel %vm2183, %v2224, %v2225
      %v2227 = vrot.slane %v1856, 2
      %v2228 = vsel %vm2183, %v2225, %v2227
      %v2229 = vrot.slane %v1859, 2
      %v2230 = vrot.slane %v1864, 2
      %v2231 = vsel %vm2183, %v2229, %v2230
      %v2232 = vrot.slane %v1867, 2
      %v2233 = vsel %vm2183, %v2230, %v2232
      %v2234 = vrot.slane %v1872, 2
      %v2235 = vrot.slane %v1875, 2
      %v2236 = vsel %vm2183, %v2234, %v2235
      %v2237 = vrot.slane %v1880, 2
      %v2238 = vsel %vm2183, %v2235, %v2237
      %v2239 = vrot.slane %v1883, 2
      %v2240 = vrot.slane %v1888, 2
      %v2241 = vsel %vm2183, %v2239, %v2240
      %v2242 = vrot.slane %v1891, 2
      %v2243 = vsel %vm2183, %v2240, %v2242
      %v2244 = vrot.slane %v1896, 2
      %v2245 = vrot.slane %v1899, 2
      %v2246 = vsel %vm2183, %v2244, %v2245
      %v2247 = vrot.slane %v1904, 2
      %v2248 = vsel %vm2183, %v2245, %v2247
      %v2249 = vrot.slane %v1907, 2
      %v2250 = vrot.slane %v1912, 2
      %v2251 = vsel %vm2183, %v2249, %v2250
      %v2252 = vrot.slane %v1915, 2
      %v2253 = vsel %vm2183, %v2250, %v2252
      %v2254 = vrot.slane %v1920, 2
      %v2255 = vrot.slane %v1923, 2
      %v2256 = vsel %vm2183, %v2254, %v2255
      %v2257 = vrot.slane %v1928, 2
      %v2258 = vsel %vm2183, %v2255, %v2257
      %v2259 = vrot.slane %v1931, 2
      %v2260 = vrot.slane %v1936, 2
      %v2261 = vsel %vm2183, %v2259, %v2260
      %v2262 = vrot.slane %v1939, 2
      %v2263 = vsel %vm2183, %v2260, %v2262
      %v2296 = vadd.f32 %v2103, %v2186
      %v2297 = vadd.f32 %v2104, %v2188
      %v2298 = vadd.f32 %v2105, %v2191
      %v2299 = vadd.f32 %v2106, %v2193
      %v2300 = vadd.f32 %v2107, %v2196
      %v2301 = vadd.f32 %v2108, %v2198
      %v2302 = vadd.f32 %v2109, %v2201
      %v2303 = vadd.f32 %v2110, %v2203
      %v2304 = vadd.f32 %v2111, %v2206
      %v2305 = vadd.f32 %v2112, %v2208
      %v2306 = vadd.f32 %v2113, %v2211
      %v2307 = vadd.f32 %v2114, %v2213
      %v2308 = vadd.f32 %v2115, %v2216
      %v2309 = vadd.f32 %v2116, %v2218
      %v2310 = vadd.f32 %v2117, %v2221
      %v2311 = vadd.f32 %v2118, %v2223
      %v2312 = vadd.f32 %v2119, %v2226
      %v2313 = vadd.f32 %v2120, %v2228
      %v2314 = vadd.f32 %v2121, %v2231
      %v2315 = vadd.f32 %v2122, %v2233
      %v2316 = vadd.f32 %v2123, %v2236
      %v2317 = vadd.f32 %v2124, %v2238
      %v2318 = vadd.f32 %v2125, %v2241
      %v2319 = vadd.f32 %v2126, %v2243
      %v2320 = vadd.f32 %v2127, %v2246
      %v2321 = vadd.f32 %v2128, %v2248
      %v2322 = vadd.f32 %v2129, %v2251
      %v2323 = vadd.f32 %v2130, %v2253
      %v2324 = vadd.f32 %v2131, %v2256
      %v2325 = vadd.f32 %v2132, %v2258
      %v2326 = vadd.f32 %v2133, %v2261
      %v2327 = vadd.f32 %v2134, %v2263
      %v2329 = vlaneseq
      %v2330 = vshrl.u32 %v2329, 7
      %v2331 = vsub.s32 0, %v2330
      %v2332 = vrot.slane %v814, %v2331
      %v2334 = vadd.f32 %v2296, %v2332
      %v2335 = vadd.f32 %v2297, %v2332
      %v2336 = vadd.f32 %v2298, %v2332
      %v2337 = vadd.f32 %v2299, %v2332
      %v2338 = vadd.f32 %v2300, %v2332
      %v2339 = vadd.f32 %v2301, %v2332
      %v2340 = vadd.f32 %v2302, %v2332
      %v2341 = vadd.f32 %v2303, %v2332
      %v2342 = vadd.f32 %v2304, %v2332
      %v2343 = vadd.f32 %v2305, %v2332
      %v2344 = vadd.f32 %v2306, %v2332
      %v2345 = vadd.f32 %v2307, %v2332
      %v2346 = vadd.f32 %v2308, %v2332
      %v2347 = vadd.f32 %v2309, %v2332
      %v2348 = vadd.f32 %v2310, %v2332
      %v2349 = vadd.f32 %v2311, %v2332
      %v2350 = vadd.f32 %v2312, %v2332
      %v2351 = vadd.f32 %v2313, %v2332
      %v2352 = vadd.f32 %v2314, %v2332
      %v2353 = vadd.f32 %v2315, %v2332
      %v2354 = vadd.f32 %v2316, %v2332
      %v2355 = vadd.f32 %v2317, %v2332
      %v2356 = vadd.f32 %v2318, %v2332
      %v2357 = vadd.f32 %v2319, %v2332
      %v2358 = vadd.f32 %v2320, %v2332
      %v2359 = vadd.f32 %v2321, %v2332
      %v2360 = vadd.f32 %v2322, %v2332
      %v2361 = vadd.f32 %v2323, %v2332
      %v2362 = vadd.f32 %v2324, %v2332
      %v2363 = vadd.f32 %v2325, %v2332
      %v2364 = vadd.f32 %v2326, %v2332
      %v2365 = vadd.f32 %v2327, %v2332
      %v2366 = vmax.f32 %v2334, 0.0
      %v2367 = vmax.f32 %v2335, 0.0
      %v2368 = vmax.f32 %v2336, 0.0
      %v2369 = vmax.f32 %v2337, 0.0
      %v2370 = vmax.f32 %v2338, 0.0
      %v2371 = vmax.f32 %v2339, 0.0
      %v2372 = vmax.f32 %v2340, 0.0
      %v2373 = vmax.f32 %v2341, 0.0
      %v2374 = vmax.f32 %v2342, 0.0
      %v2375 = vmax.f32 %v2343, 0.0
      %v2376 = vmax.f32 %v2344, 0.0
      %v2377 = vmax.f32 %v2345, 0.0
      %v2378 = vmax.f32 %v2346, 0.0
      %v2379 = vmax.f32 %v2347, 0.0
      %v2380 = vmax.f32 %v2348, 0.0
      %v2381 = vmax.f32 %v2349, 0.0
      %v2382 = vmax.f32 %v2350, 0.0
      %v2383 = vmax.f32 %v2351, 0.0
      %v2384 = vmax.f32 %v2352, 0.0
      %v2385 = vmax.f32 %v2353, 0.0
      %v2386 = vmax.f32 %v2354, 0.0
      %v2387 = vmax.f32 %v2355, 0.0
      %v2388 = vmax.f32 %v2356, 0.0
      %v2389 = vmax.f32 %v2357, 0.0
      %v2390 = vmax.f32 %v2358, 0.0
      %v2391 = vmax.f32 %v2359, 0.0
      %v2392 = vmax.f32 %v2360, 0.0
      %v2393 = vmax.f32 %v2361, 0.0
      %v2394 = vmax.f32 %v2362, 0.0
      %v2395 = vmax.f32 %v2363, 0.0
      %v2396 = vmax.f32 %v2364, 0.0
      %v2397 = vmax.f32 %v2365, 0.0
      %2398 = vst [vmem:[#allocation3] sm:$0xf] 0
      %2399 = vst [vmem:[#allocation3 + $0x4] sm:$0xf] 0
      %2400 = vst [vmem:[#allocation3 + $0x8] sm:$0xf] 0
      %2401 = vst [vmem:[#allocation3 + $0xc] sm:$0xf] 0
      %2402 = vst [vmem:[#allocation3 + $0x10] sm:$0xf] 0
      %2403 = vst [vmem:[#allocation3 + $0x14] sm:$0xf] 0
      %2404 = vst [vmem:[#allocation3 + $0x18] sm:$0xf] 0
      %2405 = vst [vmem:[#allocation3 + $0x1c] sm:$0xf] 0
      %2406 = vst [vmem:[#allocation3 + $0x20] sm:$0xf] 0
      %2407 = vst [vmem:[#allocation3 + $0x24] sm:$0xf] 0
      %2408 = vst [vmem:[#allocation3 + $0x28] sm:$0xf] 0
      %2409 = vst [vmem:[#allocation3 + $0x2c] sm:$0xf] 0
      %2410 = vst [vmem:[#allocation3 + $0x30] sm:$0xf] 0
      %2411 = vst [vmem:[#allocation3 + $0x34] sm:$0xf] 0
      %2412 = vst [vmem:[#allocation3 + $0x38] sm:$0xf] 0
      %2413 = vst [vmem:[#allocation3 + $0x3c] sm:$0xf] 0
      %2414 = vst [vmem:[#allocation3 + $0x40] sm:$0xf] 0
      %2415 = vst [vmem:[#allocation3 + $0x44] sm:$0xf] 0
      %2416 = vst [vmem:[#allocation3 + $0x48] sm:$0xf] 0
      %2417 = vst [vmem:[#allocation3 + $0x4c] sm:$0xf] 0
      %2418 = vst [vmem:[#allocation3 + $0x50] sm:$0xf] 0
      %2419 = vst [vmem:[#allocation3 + $0x54] sm:$0xf] 0
      %2420 = vst [vmem:[#allocation3 + $0x58] sm:$0xf] 0
      %2421 = vst [vmem:[#allocation3 + $0x5c] sm:$0xf] 0
      %2422 = vst [vmem:[#allocation3 + $0x60] sm:$0xf] 0
      %2423 = vst [vmem:[#allocation3 + $0x64] sm:$0xf] 0
      %2424 = vst [vmem:[#allocation3 + $0x68] sm:$0xf] 0
      %2425 = vst [vmem:[#allocation3 + $0x6c] sm:$0xf] 0
      %2426 = vst [vmem:[#allocation3 + $0x70] sm:$0xf] 0
      %2427 = vst [vmem:[#allocation3 + $0x74] sm:$0xf] 0
      %2428 = vst [vmem:[#allocation3 + $0x78] sm:$0xf] 0
      %2429 = vst [vmem:[#allocation3 + $0x7c] sm:$0xf] 0
      %2430 = vst [vmem:[#allocation3 + $0x80] sm:$0xf] 0
      %2431 = vst [vmem:[#allocation3 + $0x84] sm:$0xf] 0
      %2432 = vst [vmem:[#allocation3 + $0x88] sm:$0xf] 0
      %2433 = vst [vmem:[#allocation3 + $0x8c] sm:$0xf] 0
      %2434 = vst [vmem:[#allocation3 + $0x90] sm:$0xf] 0
      %2435 = vst [vmem:[#allocation3 + $0x94] sm:$0xf] 0
      %2436 = vst [vmem:[#allocation3 + $0x98] sm:$0xf] 0
      %2437 = vst [vmem:[#allocation3 + $0x9c] sm:$0xf] 0
      %2438 = vst [vmem:[#allocation3 + $0xa0] sm:$0xf] 0
      %2439 = vst [vmem:[#allocation3 + $0xa4] sm:$0xf] 0
      %2440 = vst [vmem:[#allocation3 + $0xa8] sm:$0xf] 0
      %2441 = vst [vmem:[#allocation3 + $0xac] sm:$0xf] 0
      %2442 = vst [vmem:[#allocation3 + $0xb0] sm:$0xf] 0
      %2443 = vst [vmem:[#allocation3 + $0xb4] sm:$0xf] 0
      %2444 = vst [vmem:[#allocation3 + $0xb8] sm:$0xf] 0
      %2445 = vst [vmem:[#allocation3 + $0xbc] sm:$0xf] 0
      %2446 = vst [vmem:[#allocation3 + $0xc0] sm:$0xf] 0
      %2447 = vst [vmem:[#allocation3 + $0xc4] sm:$0xf] 0
      %2448 = vst [vmem:[#allocation3 + $0xc8] sm:$0xf] 0
      %2449 = vst [vmem:[#allocation3 + $0xcc] sm:$0xf] 0
      %2450 = vst [vmem:[#allocation3 + $0xd0] sm:$0xf] 0
      %2451 = vst [vmem:[#allocation3 + $0xd4] sm:$0xf] 0
      %v2452 = vpack.c.bf16 %v2367, %v2366
      %v2453 = vpack.c.bf16 %v2369, %v2368
      %v2454 = vpack.c.bf16 %v2371, %v2370
      %v2455 = vpack.c.bf16 %v2373, %v2372
      %v2456 = vpack.c.bf16 %v2375, %v2374
      %v2457 = vpack.c.bf16 %v2377, %v2376
      %v2458 = vpack.c.bf16 %v2379, %v2378
      %v2459 = vpack.c.bf16 %v2381, %v2380
      %v2460 = vpack.c.bf16 %v2383, %v2382
      %v2461 = vpack.c.bf16 %v2385, %v2384
      %v2462 = vpack.c.bf16 %v2387, %v2386
      %v2463 = vpack.c.bf16 %v2389, %v2388
      %v2464 = vpack.c.bf16 %v2391, %v2390
      %v2465 = vpack.c.bf16 %v2393, %v2392
      %v2466 = vpack.c.bf16 %v2395, %v2394
      %v2467 = vpack.c.bf16 %v2397, %v2396
      %v2484 = vunpack.c.l.b16 %v2452
      %v2485 = vunpack.c.h.b16 %v2452
      %v2486 = vunpack.c.l.b16 %v2453
      %v2487 = vunpack.c.h.b16 %v2453
      %v2488 = vunpack.c.l.b16 %v2454
      %v2489 = vunpack.c.h.b16 %v2454
      %v2490 = vunpack.c.l.b16 %v2455
      %v2491 = vunpack.c.h.b16 %v2455
      %v2492 = vunpack.c.l.b16 %v2456
      %v2493 = vunpack.c.h.b16 %v2456
      %v2494 = vunpack.c.l.b16 %v2457
      %v2495 = vunpack.c.h.b16 %v2457
      %v2496 = vunpack.c.l.b16 %v2458
      %v2497 = vunpack.c.h.b16 %v2458
      %v2498 = vunpack.c.l.b16 %v2459
      %v2499 = vunpack.c.h.b16 %v2459
      %v2500 = vunpack.c.l.b16 %v2460
      %v2501 = vunpack.c.h.b16 %v2460
      %v2502 = vunpack.c.l.b16 %v2461
      %v2503 = vunpack.c.h.b16 %v2461
      %v2504 = vunpack.c.l.b16 %v2462
      %v2505 = vunpack.c.h.b16 %v2462
      %v2506 = vunpack.c.l.b16 %v2463
      %v2507 = vunpack.c.h.b16 %v2463
      %v2508 = vunpack.c.l.b16 %v2464
      %v2509 = vunpack.c.h.b16 %v2464
      %v2510 = vunpack.c.l.b16 %v2465
      %v2511 = vunpack.c.h.b16 %v2465
      %v2512 = vunpack.c.l.b16 %v2466
      %v2513 = vunpack.c.h.b16 %v2466
      %v2514 = vunpack.c.l.b16 %v2467
      %v2515 = vunpack.c.h.b16 %v2467
      %v2516 = vpack.c.b16 %v2484, %v2484
      %v2517 = vpack.c.b16 %v2485, %v2485
      %v2518 = vpack.c.b16 %v2486, %v2486
      %v2519 = vpack.c.b16 %v2487, %v2487
      %v2520 = vpack.c.b16 %v2488, %v2488
      %v2521 = vpack.c.b16 %v2489, %v2489
      %v2522 = vpack.c.b16 %v2490, %v2490
      %v2523 = vpack.c.b16 %v2491, %v2491
      %v2524 = vpack.c.b16 %v2492, %v2492
      %v2525 = vpack.c.b16 %v2493, %v2493
      %v2526 = vpack.c.b16 %v2494, %v2494
      %v2527 = vpack.c.b16 %v2495, %v2495
      %v2528 = vpack.c.b16 %v2496, %v2496
      %v2529 = vpack.c.b16 %v2497, %v2497
      %v2530 = vpack.c.b16 %v2498, %v2498
      %v2531 = vpack.c.b16 %v2499, %v2499
      %v2532 = vpack.c.b16 %v2500, %v2500
      %v2533 = vpack.c.b16 %v2501, %v2501
      %v2534 = vpack.c.b16 %v2502, %v2502
      %v2535 = vpack.c.b16 %v2503, %v2503
      %v2536 = vpack.c.b16 %v2504, %v2504
      %v2537 = vpack.c.b16 %v2505, %v2505
      %v2538 = vpack.c.b16 %v2506, %v2506
      %v2539 = vpack.c.b16 %v2507, %v2507
      %v2540 = vpack.c.b16 %v2508, %v2508
      %v2541 = vpack.c.b16 %v2509, %v2509
      %v2542 = vpack.c.b16 %v2510, %v2510
      %v2543 = vpack.c.b16 %v2511, %v2511
      %v2544 = vpack.c.b16 %v2512, %v2512
      %v2545 = vpack.c.b16 %v2513, %v2513
      %v2546 = vpack.c.b16 %v2514, %v2514
      %v2547 = vpack.c.b16 %v2515, %v2515
      %v2549 = vshrl.u32 %v2516, 16
      %v2551 = vrot.slane %v2549, 7
      %v2552 = vshll.u32 %v2516, 16
      %v2554 = vor.u32 %v2551, %v2552
      %v2555 = vrot.slane %v2551, 4
      %v2557 = vshrl.u32 %v2517, 16
      %v2559 = vrot.slane %v2557, 7
      %v2560 = vshll.u32 %v2517, 16
      %v2562 = vor.u32 %v2559, %v2560
      %v2563 = vsel %vm315, %v2555, %v2562
      %v2564 = vrot.slane %v2559, 4
      %v2566 = vshrl.u32 %v2518, 16
      %v2568 = vrot.slane %v2566, 7
      %v2569 = vshll.u32 %v2518, 16
      %v2571 = vor.u32 %v2568, %v2569
      %v2572 = vrot.slane %v2568, 4
      %v2574 = vshrl.u32 %v2519, 16
      %v2576 = vrot.slane %v2574, 7
      %v2577 = vshll.u32 %v2519, 16
      %v2579 = vor.u32 %v2576, %v2577
      %v2580 = vsel %vm315, %v2572, %v2579
      %v2581 = vrot.slane %v2576, 4
      %v2583 = vshrl.u32 %v2520, 16
      %v2585 = vrot.slane %v2583, 7
      %v2586 = vshll.u32 %v2520, 16
      %v2588 = vor.u32 %v2585, %v2586
      %v2589 = vrot.slane %v2585, 4
      %v2591 = vshrl.u32 %v2521, 16
      %v2593 = vrot.slane %v2591, 7
      %v2594 = vshll.u32 %v2521, 16
      %v2596 = vor.u32 %v2593, %v2594
      %v2597 = vsel %vm315, %v2589, %v2596
      %v2598 = vrot.slane %v2593, 4
      %v2600 = vshrl.u32 %v2522, 16
      %v2602 = vrot.slane %v2600, 7
      %v2603 = vshll.u32 %v2522, 16
      %v2605 = vor.u32 %v2602, %v2603
      %v2606 = vrot.slane %v2602, 4
      %v2608 = vshrl.u32 %v2523, 16
      %v2610 = vrot.slane %v2608, 7
      %v2611 = vshll.u32 %v2523, 16
      %v2613 = vor.u32 %v2610, %v2611
      %v2614 = vsel %vm315, %v2606, %v2613
      %v2615 = vrot.slane %v2610, 4
      %v2617 = vshrl.u32 %v2524, 16
      %v2619 = vrot.slane %v2617, 7
      %v2620 = vshll.u32 %v2524, 16
      %v2622 = vor.u32 %v2619, %v2620
      %v2623 = vrot.slane %v2619, 4
      %v2625 = vshrl.u32 %v2525, 16
      %v2627 = vrot.slane %v2625, 7
      %v2628 = vshll.u32 %v2525, 16
      %v2630 = vor.u32 %v2627, %v2628
      %v2631 = vsel %vm315, %v2623, %v2630
      %v2632 = vrot.slane %v2627, 4
      %v2634 = vshrl.u32 %v2526, 16
      %v2636 = vrot.slane %v2634, 7
      %v2637 = vshll.u32 %v2526, 16
      %v2639 = vor.u32 %v2636, %v2637
      %v2640 = vrot.slane %v2636, 4
      %v2642 = vshrl.u32 %v2527, 16
      %v2644 = vrot.slane %v2642, 7
      %v2645 = vshll.u32 %v2527, 16
      %v2647 = vor.u32 %v2644, %v2645
      %v2648 = vsel %vm315, %v2640, %v2647
      %v2649 = vrot.slane %v2644, 4
      %v2651 = vshrl.u32 %v2528, 16
      %v2653 = vrot.slane %v2651, 7
      %v2654 = vshll.u32 %v2528, 16
      %v2656 = vor.u32 %v2653, %v2654
      %v2657 = vrot.slane %v2653, 4
      %v2659 = vshrl.u32 %v2529, 16
      %v2661 = vrot.slane %v2659, 7
      %v2662 = vshll.u32 %v2529, 16
      %v2664 = vor.u32 %v2661, %v2662
      %v2665 = vsel %vm315, %v2657, %v2664
      %v2666 = vrot.slane %v2661, 4
      %v2668 = vshrl.u32 %v2530, 16
      %v2670 = vrot.slane %v2668, 7
      %v2671 = vshll.u32 %v2530, 16
      %v2673 = vor.u32 %v2670, %v2671
      %v2674 = vrot.slane %v2670, 4
      %v2676 = vshrl.u32 %v2531, 16
      %v2678 = vrot.slane %v2676, 7
      %v2679 = vshll.u32 %v2531, 16
      %v2681 = vor.u32 %v2678, %v2679
      %v2682 = vsel %vm315, %v2674, %v2681
      %v2683 = vrot.slane %v2678, 4
      %v2685 = vshrl.u32 %v2532, 16
      %v2687 = vrot.slane %v2685, 7
      %v2688 = vshll.u32 %v2532, 16
      %v2690 = vor.u32 %v2687, %v2688
      %v2691 = vrot.slane %v2687, 4
      %v2693 = vshrl.u32 %v2533, 16
      %v2695 = vrot.slane %v2693, 7
      %v2696 = vshll.u32 %v2533, 16
      %v2698 = vor.u32 %v2695, %v2696
      %v2699 = vsel %vm315, %v2691, %v2698
      %v2700 = vrot.slane %v2695, 4
      %v2702 = vshrl.u32 %v2534, 16
      %v2704 = vrot.slane %v2702, 7
      %v2705 = vshll.u32 %v2534, 16
      %v2707 = vor.u32 %v2704, %v2705
      %v2708 = vrot.slane %v2704, 4
      %v2710 = vshrl.u32 %v2535, 16
      %v2712 = vrot.slane %v2710, 7
      %v2713 = vshll.u32 %v2535, 16
      %v2715 = vor.u32 %v2712, %v2713
      %v2716 = vsel %vm315, %v2708, %v2715
      %v2717 = vrot.slane %v2712, 4
      %v2719 = vshrl.u32 %v2536, 16
      %v2721 = vrot.slane %v2719, 7
      %v2722 = vshll.u32 %v2536, 16
      %v2724 = vor.u32 %v2721, %v2722
      %v2725 = vrot.slane %v2721, 4
      %v2727 = vshrl.u32 %v2537, 16
      %v2729 = vrot.slane %v2727, 7
      %v2730 = vshll.u32 %v2537, 16
      %v2732 = vor.u32 %v2729, %v2730
      %v2733 = vsel %vm315, %v2725, %v2732
      %v2734 = vrot.slane %v2729, 4
      %v2736 = vshrl.u32 %v2538, 16
      %v2738 = vrot.slane %v2736, 7
      %v2739 = vshll.u32 %v2538, 16
      %v2741 = vor.u32 %v2738, %v2739
      %v2742 = vrot.slane %v2738, 4
      %v2744 = vshrl.u32 %v2539, 16
      %v2746 = vrot.slane %v2744, 7
      %v2747 = vshll.u32 %v2539, 16
      %v2749 = vor.u32 %v2746, %v2747
      %v2750 = vsel %vm315, %v2742, %v2749
      %v2751 = vrot.slane %v2746, 4
      %v2753 = vshrl.u32 %v2540, 16
      %v2755 = vrot.slane %v2753, 7
      %v2756 = vshll.u32 %v2540, 16
      %v2758 = vor.u32 %v2755, %v2756
      %v2759 = vrot.slane %v2755, 4
      %v2761 = vshrl.u32 %v2541, 16
      %v2763 = vrot.slane %v2761, 7
      %v2764 = vshll.u32 %v2541, 16
      %v2766 = vor.u32 %v2763, %v2764
      %v2767 = vsel %vm315, %v2759, %v2766
      %v2768 = vrot.slane %v2763, 4
      %v2770 = vshrl.u32 %v2542, 16
      %v2772 = vrot.slane %v2770, 7
      %v2773 = vshll.u32 %v2542, 16
      %v2775 = vor.u32 %v2772, %v2773
      %v2776 = vrot.slane %v2772, 4
      %v2778 = vshrl.u32 %v2543, 16
      %v2780 = vrot.slane %v2778, 7
      %v2781 = vshll.u32 %v2543, 16
      %v2783 = vor.u32 %v2780, %v2781
      %v2784 = vsel %vm315, %v2776, %v2783
      %v2785 = vrot.slane %v2780, 4
      %v2787 = vshrl.u32 %v2544, 16
      %v2789 = vrot.slane %v2787, 7
      %v2790 = vshll.u32 %v2544, 16
      %v2792 = vor.u32 %v2789, %v2790
      %v2793 = vrot.slane %v2789, 4
      %v2795 = vshrl.u32 %v2545, 16
      %v2797 = vrot.slane %v2795, 7
      %v2798 = vshll.u32 %v2545, 16
      %v2800 = vor.u32 %v2797, %v2798
      %v2801 = vsel %vm315, %v2793, %v2800
      %v2802 = vrot.slane %v2797, 4
      %v2804 = vshrl.u32 %v2546, 16
      %v2806 = vrot.slane %v2804, 7
      %v2807 = vshll.u32 %v2546, 16
      %v2809 = vor.u32 %v2806, %v2807
      %v2810 = vrot.slane %v2806, 4
      %v2812 = vshrl.u32 %v2547, 16
      %v2814 = vrot.slane %v2812, 7
      %v2815 = vshll.u32 %v2547, 16
      %v2817 = vor.u32 %v2814, %v2815
      %v2818 = vsel %vm315, %v2810, %v2817
      %v2819 = vrot.slane %v2814, 4
      %s2868 = scalar_lea.vmem [#allocation3], 12
      %vm2869 = vcmask 1043456
      %vm2870 = vmand %vm2869, %vm638
      %v2871 = vld [vmem:[%s2868] sm:$0xf]
      %v2872 = vsel %vm2870, %v2554, %v2871
      %2873 = vst [vmem:[%s2868] sm:$0xf] %v2872
      %2874 = vst [vmem:[%s2868 + $0x4] sm:$0xf] %v2563
      %vm2875 = vcmask 1040384
      %vm2876 = vmand %vm2875, %vm313
      %v2877 = vld [vmem:[%s2868 + $0x8] sm:$0x1]
      %v2878 = vsel %vm2876, %v2564, %v2877
      %2879 = vst [vmem:[%s2868 + $0x8] sm:$0x1] %v2878
      %v2880 = vld [vmem:[%s2868 + $0xc] sm:$0xf]
      %v2881 = vsel %vm2870, %v2571, %v2880
      %2882 = vst [vmem:[%s2868 + $0xc] sm:$0xf] %v2881
      %2883 = vst [vmem:[%s2868 + $0x10] sm:$0xf] %v2580
      %v2884 = vld [vmem:[%s2868 + $0x14] sm:$0x1]
      %v2885 = vsel %vm2876, %v2581, %v2884
      %2886 = vst [vmem:[%s2868 + $0x14] sm:$0x1] %v2885
      %v2887 = vld [vmem:[%s2868 + $0x18] sm:$0xf]
      %v2888 = vsel %vm2870, %v2588, %v2887
      %2889 = vst [vmem:[%s2868 + $0x18] sm:$0xf] %v2888
      %2890 = vst [vmem:[%s2868 + $0x1c] sm:$0xf] %v2597
      %v2891 = vld [vmem:[%s2868 + $0x20] sm:$0x1]
      %v2892 = vsel %vm2876, %v2598, %v2891
      %2893 = vst [vmem:[%s2868 + $0x20] sm:$0x1] %v2892
      %v2894 = vld [vmem:[%s2868 + $0x24] sm:$0xf]
      %v2895 = vsel %vm2870, %v2605, %v2894
      %2896 = vst [vmem:[%s2868 + $0x24] sm:$0xf] %v2895
      %2897 = vst [vmem:[%s2868 + $0x28] sm:$0xf] %v2614
      %v2898 = vld [vmem:[%s2868 + $0x2c] sm:$0x1]
      %v2899 = vsel %vm2876, %v2615, %v2898
      %2900 = vst [vmem:[%s2868 + $0x2c] sm:$0x1] %v2899
      %v2901 = vld [vmem:[%s2868 + $0x30] sm:$0xf]
      %v2902 = vsel %vm2870, %v2622, %v2901
      %2903 = vst [vmem:[%s2868 + $0x30] sm:$0xf] %v2902
      %2904 = vst [vmem:[%s2868 + $0x34] sm:$0xf] %v2631
      %v2905 = vld [vmem:[%s2868 + $0x38] sm:$0x1]
      %v2906 = vsel %vm2876, %v2632, %v2905
      %2907 = vst [vmem:[%s2868 + $0x38] sm:$0x1] %v2906
      %v2908 = vld [vmem:[%s2868 + $0x3c] sm:$0xf]
      %v2909 = vsel %vm2870, %v2639, %v2908
      %2910 = vst [vmem:[%s2868 + $0x3c] sm:$0xf] %v2909
      %2911 = vst [vmem:[%s2868 + $0x40] sm:$0xf] %v2648
      %v2912 = vld [vmem:[%s2868 + $0x44] sm:$0x1]
      %v2913 = vsel %vm2876, %v2649, %v2912
      %2914 = vst [vmem:[%s2868 + $0x44] sm:$0x1] %v2913
      %v2915 = vld [vmem:[%s2868 + $0x48] sm:$0xf]
      %v2916 = vsel %vm2870, %v2656, %v2915
      %2917 = vst [vmem:[%s2868 + $0x48] sm:$0xf] %v2916
      %2918 = vst [vmem:[%s2868 + $0x4c] sm:$0xf] %v2665
      %v2919 = vld [vmem:[%s2868 + $0x50] sm:$0x1]
      %v2920 = vsel %vm2876, %v2666, %v2919
      %2921 = vst [vmem:[%s2868 + $0x50] sm:$0x1] %v2920
      %v2922 = vld [vmem:[%s2868 + $0x54] sm:$0xf]
      %v2923 = vsel %vm2870, %v2673, %v2922
      %2924 = vst [vmem:[%s2868 + $0x54] sm:$0xf] %v2923
      %2925 = vst [vmem:[%s2868 + $0x58] sm:$0xf] %v2682
      %v2926 = vld [vmem:[%s2868 + $0x5c] sm:$0x1]
      %v2927 = vsel %vm2876, %v2683, %v2926
      %2928 = vst [vmem:[%s2868 + $0x5c] sm:$0x1] %v2927
      %v2929 = vld [vmem:[%s2868 + $0x60] sm:$0xf]
      %v2930 = vsel %vm2870, %v2690, %v2929
      %2931 = vst [vmem:[%s2868 + $0x60] sm:$0xf] %v2930
      %2932 = vst [vmem:[%s2868 + $0x64] sm:$0xf] %v2699
      %v2933 = vld [vmem:[%s2868 + $0x68] sm:$0x1]
      %v2934 = vsel %vm2876, %v2700, %v2933
      %2935 = vst [vmem:[%s2868 + $0x68] sm:$0x1] %v2934
      %v2936 = vld [vmem:[%s2868 + $0x6c] sm:$0xf]
      %v2937 = vsel %vm2870, %v2707, %v2936
      %2938 = vst [vmem:[%s2868 + $0x6c] sm:$0xf] %v2937
      %2939 = vst [vmem:[%s2868 + $0x70] sm:$0xf] %v2716
      %v2940 = vld [vmem:[%s2868 + $0x74] sm:$0x1]
      %v2941 = vsel %vm2876, %v2717, %v2940
      %2942 = vst [vmem:[%s2868 + $0x74] sm:$0x1] %v2941
      %v2943 = vld [vmem:[%s2868 + $0x78] sm:$0xf]
      %v2944 = vsel %vm2870, %v2724, %v2943
      %2945 = vst [vmem:[%s2868 + $0x78] sm:$0xf] %v2944
      %2946 = vst [vmem:[%s2868 + $0x7c] sm:$0xf] %v2733
      %v2947 = vld [vmem:[%s2868 + $0x80] sm:$0x1]
      %v2948 = vsel %vm2876, %v2734, %v2947
      %2949 = vst [vmem:[%s2868 + $0x80] sm:$0x1] %v2948
      %v2950 = vld [vmem:[%s2868 + $0x84] sm:$0xf]
      %v2951 = vsel %vm2870, %v2741, %v2950
      %2952 = vst [vmem:[%s2868 + $0x84] sm:$0xf] %v2951
      %2953 = vst [vmem:[%s2868 + $0x88] sm:$0xf] %v2750
      %v2954 = vld [vmem:[%s2868 + $0x8c] sm:$0x1]
      %v2955 = vsel %vm2876, %v2751, %v2954
      %2956 = vst [vmem:[%s2868 + $0x8c] sm:$0x1] %v2955
      %v2957 = vld [vmem:[%s2868 + $0x90] sm:$0xf]
      %v2958 = vsel %vm2870, %v2758, %v2957
      %2959 = vst [vmem:[%s2868 + $0x90] sm:$0xf] %v2958
      %2960 = vst [vmem:[%s2868 + $0x94] sm:$0xf] %v2767
      %v2961 = vld [vmem:[%s2868 + $0x98] sm:$0x1]
      %v2962 = vsel %vm2876, %v2768, %v2961
      %2963 = vst [vmem:[%s2868 + $0x98] sm:$0x1] %v2962
      %v2964 = vld [vmem:[%s2868 + $0x9c] sm:$0xf]
      %v2965 = vsel %vm2870, %v2775, %v2964
      %2966 = vst [vmem:[%s2868 + $0x9c] sm:$0xf] %v2965
      %2967 = vst [vmem:[%s2868 + $0xa0] sm:$0xf] %v2784
      %v2968 = vld [vmem:[%s2868 + $0xa4] sm:$0x1]
      %v2969 = vsel %vm2876, %v2785, %v2968
      %2970 = vst [vmem:[%s2868 + $0xa4] sm:$0x1] %v2969
      %v2971 = vld [vmem:[%s2868 + $0xa8] sm:$0xf]
      %v2972 = vsel %vm2870, %v2792, %v2971
      %2973 = vst [vmem:[%s2868 + $0xa8] sm:$0xf] %v2972
      %2974 = vst [vmem:[%s2868 + $0xac] sm:$0xf] %v2801
      %v2975 = vld [vmem:[%s2868 + $0xb0] sm:$0x1]
      %v2976 = vsel %vm2876, %v2802, %v2975
      %2977 = vst [vmem:[%s2868 + $0xb0] sm:$0x1] %v2976
      %v2978 = vld [vmem:[%s2868 + $0xb4] sm:$0xf]
      %v2979 = vsel %vm2870, %v2809, %v2978
      %2980 = vst [vmem:[%s2868 + $0xb4] sm:$0xf] %v2979
      %2981 = vst [vmem:[%s2868 + $0xb8] sm:$0xf] %v2818
      %v2982 = vld [vmem:[%s2868 + $0xbc] sm:$0x1]
      %v2983 = vsel %vm2876, %v2819, %v2982
      %2984 = vst [vmem:[%s2868 + $0xbc] sm:$0x1] %v2983
      %v2985 = vld [vmem:[#allocation3] sm:$0xf]
      %v2986 = vld [vmem:[#allocation3 + $0x4] sm:$0xf]
      %v2987 = vld [vmem:[#allocation3 + $0x8] sm:$0xf]
      %v2988 = vld [vmem:[#allocation3 + $0xc] sm:$0xf]
      %v2989 = vld [vmem:[#allocation3 + $0x10] sm:$0xf]
      %v2990 = vld [vmem:[#allocation3 + $0x14] sm:$0xf]
      %v2991 = vld [vmem:[#allocation3 + $0x18] sm:$0xf]
      %v2992 = vld [vmem:[#allocation3 + $0x1c] sm:$0xf]
      %v2993 = vld [vmem:[#allocation3 + $0x20] sm:$0xf]
      %v2994 = vld [vmem:[#allocation3 + $0x24] sm:$0xf]
      %v2995 = vld [vmem:[#allocation3 + $0x28] sm:$0xf]
      %v2996 = vld [vmem:[#allocation3 + $0x2c] sm:$0xf]
      %v2997 = vld [vmem:[#allocation3 + $0x30] sm:$0xf]
      %v2998 = vld [vmem:[#allocation3 + $0x34] sm:$0xf]
      %v2999 = vld [vmem:[#allocation3 + $0x38] sm:$0xf]
      %v3000 = vld [vmem:[#allocation3 + $0x3c] sm:$0xf]
      %v3001 = vld [vmem:[#allocation3 + $0x40] sm:$0xf]
      %v3002 = vld [vmem:[#allocation3 + $0x44] sm:$0xf]
      %v3003 = vld [vmem:[#allocation3 + $0x48] sm:$0xf]
      %v3004 = vld [vmem:[#allocation3 + $0x4c] sm:$0xf]
      %v3005 = vld [vmem:[#allocation3 + $0x50] sm:$0xf]
      %v3006 = vld [vmem:[#allocation3 + $0x54] sm:$0xf]
      %v3007 = vld [vmem:[#allocation3 + $0x58] sm:$0xf]
      %v3008 = vld [vmem:[#allocation3 + $0x5c] sm:$0xf]
      %v3009 = vld [vmem:[#allocation3 + $0x60] sm:$0xf]
      %v3010 = vld [vmem:[#allocation3 + $0x64] sm:$0xf]
      %v3011 = vld [vmem:[#allocation3 + $0x68] sm:$0xf]
      %v3012 = vld [vmem:[#allocation3 + $0x6c] sm:$0xf]
      %v3013 = vld [vmem:[#allocation3 + $0x70] sm:$0xf]
      %v3014 = vld [vmem:[#allocation3 + $0x74] sm:$0xf]
      %v3015 = vld [vmem:[#allocation3 + $0x78] sm:$0xf]
      %v3016 = vld [vmem:[#allocation3 + $0x7c] sm:$0xf]
      %v3017 = vld [vmem:[#allocation3 + $0x80] sm:$0xf]
      %v3018 = vld [vmem:[#allocation3 + $0x84] sm:$0xf]
      %v3019 = vld [vmem:[#allocation3 + $0x88] sm:$0xf]
      %v3020 = vld [vmem:[#allocation3 + $0x8c] sm:$0xf]
      %v3021 = vld [vmem:[#allocation3 + $0x90] sm:$0xf]
      %v3022 = vld [vmem:[#allocation3 + $0x94] sm:$0xf]
      %v3023 = vld [vmem:[#allocation3 + $0x98] sm:$0xf]
      %v3024 = vld [vmem:[#allocation3 + $0x9c] sm:$0xf]
      %v3025 = vld [vmem:[#allocation3 + $0xa0] sm:$0xf]
      %v3026 = vld [vmem:[#allocation3 + $0xa4] sm:$0xf]
      %v3027 = vld [vmem:[#allocation3 + $0xa8] sm:$0xf]
      %v3028 = vld [vmem:[#allocation3 + $0xac] sm:$0xf]
      %v3029 = vld [vmem:[#allocation3 + $0xb0] sm:$0xf]
      %v3030 = vld [vmem:[#allocation3 + $0xb4] sm:$0xf]
      %v3031 = vld [vmem:[#allocation3 + $0xb8] sm:$0xf]
      %v3032 = vld [vmem:[#allocation3 + $0xbc] sm:$0xf]
      %v3033 = vld [vmem:[#allocation3 + $0xc0] sm:$0xf]
      %v3034 = vld [vmem:[#allocation3 + $0xc4] sm:$0xf]
      %v3035 = vld [vmem:[#allocation3 + $0xc8] sm:$0xf]
      %v3036 = vld [vmem:[#allocation3 + $0xcc] sm:$0xf]
      %v3037 = vld [vmem:[#allocation3 + $0xd0] sm:$0xf]
      %v3038 = vld [vmem:[#allocation3 + $0xd4] sm:$0xf]
      %v3039 = vld [vmem:[%s3] sm:$0xff]
      %v3040 = vld [vmem:[%s3 + $0x8] sm:$0xf]
      %v3041 = vld [vmem:[%s3 + $0xc] sm:$0xff]
      %v3042 = vld [vmem:[%s3 + $0x14] sm:$0xf]
      %v3043 = vld [vmem:[%s3 + $0x18] sm:$0xff]
      %v3044 = vld [vmem:[%s3 + $0x20] sm:$0xf]
      %v3045 = vld [vmem:[%s3 + $0x24] sm:$0xff]
      %v3046 = vld [vmem:[%s3 + $0x2c] sm:$0xf]
      %v3047 = vld [vmem:[%s3 + $0x30] sm:$0xff]
      %v3048 = vld [vmem:[%s3 + $0x38] sm:$0xf]
      %v3049 = vld [vmem:[%s3 + $0x3c] sm:$0xff]
      %v3050 = vld [vmem:[%s3 + $0x44] sm:$0xf]
      %v3051 = vld [vmem:[%s3 + $0x48] sm:$0xff]
      %v3052 = vld [vmem:[%s3 + $0x50] sm:$0xf]
      %v3053 = vld [vmem:[%s3 + $0x54] sm:$0xff]
      %v3054 = vld [vmem:[%s3 + $0x5c] sm:$0xf]
      %v3055 = vld [vmem:[%s3 + $0x60] sm:$0xff]
      %v3056 = vld [vmem:[%s3 + $0x68] sm:$0xf]
      %v3057 = vld [vmem:[%s3 + $0x6c] sm:$0xff]
      %v3058 = vld [vmem:[%s3 + $0x74] sm:$0xf]
      %v3059 = vld [vmem:[%s3 + $0x78] sm:$0xff]
      %v3060 = vld [vmem:[%s3 + $0x80] sm:$0xf]
      %v3061 = vld [vmem:[%s3 + $0x84] sm:$0xff]
      %v3062 = vld [vmem:[%s3 + $0x8c] sm:$0xf]
      %v3063 = vld [vmem:[%s3 + $0x90] sm:$0xff]
      %v3064 = vld [vmem:[%s3 + $0x98] sm:$0xf]
      %v3065 = vld [vmem:[%s3 + $0x9c] sm:$0xff]
      %v3066 = vld [vmem:[%s3 + $0xa4] sm:$0xf]
      %v3067 = vld [vmem:[%s3 + $0xa8] sm:$0xff]
      %v3068 = vld [vmem:[%s3 + $0xb0] sm:$0xf]
      %v3069 = vld [vmem:[%s3 + $0xb4] sm:$0xff]
      %v3070 = vld [vmem:[%s3 + $0xbc] sm:$0xf]
      %v3071 = vld [vmem:[%s3 + $0xc0] sm:$0xff]
      %v3072 = vld [vmem:[%s3 + $0xc8] sm:$0xf]
      %v3073 = vld [vmem:[%s3 + $0xcc] sm:$0xff]
      %v3074 = vld [vmem:[%s3 + $0xd4] sm:$0xf]
      %v3075 = vld [vmem:[%s3 + $0xd8] sm:$0xff]
      %v3076 = vld [vmem:[%s3 + $0xe0] sm:$0xf]
      %v3077 = vld [vmem:[%s3 + $0xe4] sm:$0xff]
      %v3078 = vld [vmem:[%s3 + $0xec] sm:$0xf]
      %v3079 = vld [vmem:[%s3 + $0xf0] sm:$0xff]
      %v3080 = vld [vmem:[%s3 + $0xf8] sm:$0xf]
      %v3081 = vld [vmem:[%s3 + $0xfc] sm:$0xff]
      %v3082 = vld [vmem:[%s3 + $0x104] sm:$0xf]
      %v3083 = vld [vmem:[%s3 + $0x108] sm:$0xff]
      %v3084 = vld [vmem:[%s3 + $0x110] sm:$0xf]
      %v3085 = vld [vmem:[%s3 + $0x114] sm:$0xff]
      %v3086 = vld [vmem:[%s3 + $0x11c] sm:$0xf]
      %v3087 = vld [vmem:[%s3 + $0x120] sm:$0xff]
      %v3088 = vld [vmem:[%s3 + $0x128] sm:$0xf]
      %v3089 = vld [vmem:[%s3 + $0x12c] sm:$0xff]
      %v3090 = vld [vmem:[%s3 + $0x134] sm:$0xf]
      %v3091 = vld [vmem:[%s3 + $0x138] sm:$0xff]
      %v3092 = vld [vmem:[%s3 + $0x140] sm:$0xf]
      %v3093 = vld [vmem:[%s3 + $0x144] sm:$0xff]
      %v3094 = vld [vmem:[%s3 + $0x14c] sm:$0xf]
      %v3095 = vld [vmem:[%s3 + $0x150] sm:$0xff]
      %v3096 = vld [vmem:[%s3 + $0x158] sm:$0xf]
      %v3097 = vld [vmem:[%s3 + $0x15c] sm:$0xff]
      %v3098 = vld [vmem:[%s3 + $0x164] sm:$0xf]
      %v3099 = vld [vmem:[%s3 + $0x168] sm:$0xff]
      %v3100 = vld [vmem:[%s3 + $0x170] sm:$0xf]
      %v3101 = vld [vmem:[%s3 + $0x174] sm:$0xff]
      %v3102 = vld [vmem:[%s3 + $0x17c] sm:$0xf]
      %v3103 = vld [vmem:[%s3 + $0x180] sm:$0xff]
      %v3104 = vld [vmem:[%s3 + $0x188] sm:$0xf]
      %v3105 = vld [vmem:[%s3 + $0x18c] sm:$0xff]
      %v3106 = vld [vmem:[%s3 + $0x194] sm:$0xf]
      %v3107 = vld [vmem:[%s3 + $0x198] sm:$0xff]
      %v3108 = vld [vmem:[%s3 + $0x1a0] sm:$0xf]
      %v3109 = vld [vmem:[%s3 + $0x1a4] sm:$0xff]
      %v3110 = vld [vmem:[%s3 + $0x1ac] sm:$0xf]
      %v3111 = vld [vmem:[%s3 + $0x1b0] sm:$0xff]
      %v3112 = vld [vmem:[%s3 + $0x1b8] sm:$0xf]
      %v3113 = vld [vmem:[%s3 + $0x1bc] sm:$0xff]
      %v3114 = vld [vmem:[%s3 + $0x1c4] sm:$0xf]
      %v3115 = vld [vmem:[%s3 + $0x1c8] sm:$0xff]
      %v3116 = vld [vmem:[%s3 + $0x1d0] sm:$0xf]
      %v3117 = vld [vmem:[%s3 + $0x1d4] sm:$0xff]
      %v3118 = vld [vmem:[%s3 + $0x1dc] sm:$0xf]
      %v3119 = vld [vmem:[%s3 + $0x1e0] sm:$0xff]
      %v3120 = vld [vmem:[%s3 + $0x1e8] sm:$0xf]
      %v3121 = vld [vmem:[%s3 + $0x1ec] sm:$0xff]
      %v3122 = vld [vmem:[%s3 + $0x1f4] sm:$0xf]
      %v3123 = vld [vmem:[%s3 + $0x1f8] sm:$0xff]
      %v3124 = vld [vmem:[%s3 + $0x200] sm:$0xf]
      %v3125 = vld [vmem:[%s3 + $0x204] sm:$0xff]
      %v3126 = vld [vmem:[%s3 + $0x20c] sm:$0xf]
      %v3127 = vld [vmem:[%s3 + $0x210] sm:$0xff]
      %v3128 = vld [vmem:[%s3 + $0x218] sm:$0xf]
      %v3129 = vld [vmem:[%s3 + $0x21c] sm:$0xff]
      %v3130 = vld [vmem:[%s3 + $0x224] sm:$0xf]
      %v3131 = vld [vmem:[%s3 + $0x228] sm:$0xff]
      %v3132 = vld [vmem:[%s3 + $0x230] sm:$0xf]
      %v3133 = vld [vmem:[%s3 + $0x234] sm:$0xff]
      %v3134 = vld [vmem:[%s3 + $0x23c] sm:$0xf]
      %v3135 = vld [vmem:[%s4] sm:$0x1]
      %v3184 = vunpack.c.l.b16 %v2985
      %v3185 = vunpack.c.l.b16 %v2986
      %v3186 = vunpack.c.l.b16 %v2987
      %v3187 = vunpack.c.l.b16 %v2988
      %v3188 = vunpack.c.l.b16 %v2989
      %v3189 = vunpack.c.l.b16 %v2990
      %v3190 = vunpack.c.l.b16 %v2991
      %v3191 = vunpack.c.l.b16 %v2992
      %v3192 = vunpack.c.l.b16 %v2993
      %v3193 = vunpack.c.l.b16 %v2994
      %v3194 = vunpack.c.l.b16 %v2995
      %v3195 = vunpack.c.l.b16 %v2996
      %v3196 = vunpack.c.l.b16 %v2997
      %v3197 = vunpack.c.l.b16 %v2998
      %v3198 = vunpack.c.l.b16 %v2999
      %v3199 = vunpack.c.l.b16 %v3000
      %v3200 = vunpack.c.l.b16 %v3001
      %v3201 = vunpack.c.l.b16 %v3002
      %v3202 = vunpack.c.l.b16 %v3003
      %v3203 = vunpack.c.l.b16 %v3004
      %v3204 = vunpack.c.l.b16 %v3005
      %v3205 = vunpack.c.l.b16 %v3006
      %v3206 = vunpack.c.l.b16 %v3007
      %v3207 = vunpack.c.l.b16 %v3008
      %v3208 = vunpack.c.l.b16 %v3009
      %v3209 = vunpack.c.l.b16 %v3010
      %v3210 = vunpack.c.l.b16 %v3011
      %v3211 = vunpack.c.l.b16 %v3012
      %v3212 = vunpack.c.l.b16 %v3013
      %v3213 = vunpack.c.l.b16 %v3014
      %v3214 = vunpack.c.l.b16 %v3015
      %v3215 = vunpack.c.l.b16 %v3016
      %v3216 = vunpack.c.l.b16 %v3017
      %v3217 = vunpack.c.l.b16 %v3018
      %v3218 = vunpack.c.l.b16 %v3019
      %v3219 = vunpack.c.l.b16 %v3020
      %v3220 = vunpack.c.l.b16 %v3021
      %v3221 = vunpack.c.l.b16 %v3022
      %v3222 = vunpack.c.l.b16 %v3023
      %v3223 = vunpack.c.l.b16 %v3024
      %v3224 = vunpack.c.l.b16 %v3025
      %v3225 = vunpack.c.l.b16 %v3026
      %v3226 = vunpack.c.l.b16 %v3027
      %v3227 = vunpack.c.l.b16 %v3028
      %v3228 = vunpack.c.l.b16 %v3029
      %v3229 = vunpack.c.l.b16 %v3030
      %v3230 = vunpack.c.l.b16 %v3031
      %v3231 = vunpack.c.l.b16 %v3032
      %v3235 = vunpack.c.l.b16 %v3033
      %v3236 = vunpack.c.l.b16 %v3034
      %v3237 = vunpack.c.l.b16 %v3035
      %v3241 = vunpack.c.l.b16 %v3036
      %v3242 = vunpack.c.l.b16 %v3037
      %v3243 = vunpack.c.l.b16 %v3038
      %v3244 = vpack.c.b16 %v3185, %v3184
      %v3245 = vpack.c.b16 %v3188, %v3187
      %v3246 = vpack.c.b16 %v3191, %v3190
      %v3247 = vpack.c.b16 %v3187, %v3186
      %v3248 = vpack.c.b16 %v3190, %v3189
      %v3249 = vpack.c.b16 %v3193, %v3192
      %v3250 = vpack.c.b16 %v3189, %v3188
      %v3251 = vpack.c.b16 %v3192, %v3191
      %v3252 = vpack.c.b16 %v3195, %v3194
      %v3253 = vpack.c.b16 %v3194, %v3193
      %v3254 = vpack.c.b16 %v3197, %v3196
      %v3255 = vpack.c.b16 %v3196, %v3195
      %v3256 = vpack.c.b16 %v3199, %v3198
      %v3257 = vpack.c.b16 %v3198, %v3197
      %v3258 = vpack.c.b16 %v3201, %v3200
      %v3259 = vpack.c.b16 %v3200, %v3199
      %v3260 = vpack.c.b16 %v3203, %v3202
      %v3261 = vpack.c.b16 %v3202, %v3201
      %v3262 = vpack.c.b16 %v3205, %v3204
      %v3263 = vpack.c.b16 %v3204, %v3203
      %v3264 = vpack.c.b16 %v3207, %v3206
      %v3265 = vpack.c.b16 %v3206, %v3205
      %v3266 = vpack.c.b16 %v3209, %v3208
      %v3267 = vpack.c.b16 %v3208, %v3207
      %v3268 = vpack.c.b16 %v3211, %v3210
      %v3269 = vpack.c.b16 %v3210, %v3209
      %v3270 = vpack.c.b16 %v3213, %v3212
      %v3271 = vpack.c.b16 %v3212, %v3211
      %v3272 = vpack.c.b16 %v3215, %v3214
      %v3273 = vpack.c.b16 %v3214, %v3213
      %v3274 = vpack.c.b16 %v3217, %v3216
      %v3275 = vpack.c.b16 %v3216, %v3215
      %v3276 = vpack.c.b16 %v3219, %v3218
      %v3277 = vpack.c.b16 %v3218, %v3217
      %v3278 = vpack.c.b16 %v3221, %v3220
      %v3279 = vpack.c.b16 %v3220, %v3219
      %v3280 = vpack.c.b16 %v3223, %v3222
      %v3281 = vpack.c.b16 %v3222, %v3221
      %v3282 = vpack.c.b16 %v3225, %v3224
      %v3283 = vpack.c.b16 %v3224, %v3223
      %v3284 = vpack.c.b16 %v3227, %v3226
      %v3285 = vpack.c.b16 %v3226, %v3225
      %v3286 = vpack.c.b16 %v3229, %v3228
      %v3287 = vpack.c.b16 %v3228, %v3227
      %v3288 = vpack.c.b16 %v3231, %v3230
      %v3289 = vpack.c.b16 %v3230, %v3229
      %v3290 = vpack.c.b16 %v3236, %v3235
      %v3291 = vpack.c.b16 %v3235, %v3231
      %v3292 = vpack.c.b16 %v3241, %v3237
      %v3293 = vpack.c.b16 %v3237, %v3236
      %v3294 = vpack.c.b16 %v3243, %v3242
      %v3442 = vunpack.c.l.b16 %v3039
      %v3443 = vunpack.c.h.b16 %v3039
      %v3444 = vunpack.c.l.b16 %v3040
      %v3445 = vunpack.c.l.b16 %v3041
      %v3446 = vunpack.c.h.b16 %v3041
      %v3447 = vunpack.c.l.b16 %v3042
      %v3448 = vunpack.c.l.b16 %v3043
      %v3449 = vunpack.c.h.b16 %v3043
      %v3450 = vunpack.c.l.b16 %v3044
      %v3451 = vunpack.c.l.b16 %v3045
      %v3452 = vunpack.c.h.b16 %v3045
      %v3453 = vunpack.c.l.b16 %v3046
      %v3454 = vunpack.c.l.b16 %v3047
      %v3455 = vunpack.c.h.b16 %v3047
      %v3456 = vunpack.c.l.b16 %v3048
      %v3457 = vunpack.c.l.b16 %v3049
      %v3458 = vunpack.c.h.b16 %v3049
      %v3459 = vunpack.c.l.b16 %v3050
      %v3460 = vunpack.c.l.b16 %v3051
      %v3461 = vunpack.c.h.b16 %v3051
      %v3462 = vunpack.c.l.b16 %v3052
      %v3463 = vunpack.c.l.b16 %v3053
      %v3464 = vunpack.c.h.b16 %v3053
      %v3465 = vunpack.c.l.b16 %v3054
      %v3466 = vunpack.c.l.b16 %v3055
      %v3467 = vunpack.c.h.b16 %v3055
      %v3468 = vunpack.c.l.b16 %v3056
      %v3469 = vunpack.c.l.b16 %v3057
      %v3470 = vunpack.c.h.b16 %v3057
      %v3471 = vunpack.c.l.b16 %v3058
      %v3472 = vunpack.c.l.b16 %v3059
      %v3473 = vunpack.c.h.b16 %v3059
      %v3474 = vunpack.c.l.b16 %v3060
      %v3475 = vunpack.c.l.b16 %v3061
      %v3476 = vunpack.c.h.b16 %v3061
      %v3477 = vunpack.c.l.b16 %v3062
      %v3478 = vunpack.c.l.b16 %v3063
      %v3479 = vunpack.c.h.b16 %v3063
      %v3480 = vunpack.c.l.b16 %v3064
      %v3481 = vunpack.c.l.b16 %v3065
      %v3482 = vunpack.c.h.b16 %v3065
      %v3483 = vunpack.c.l.b16 %v3066
      %v3484 = vunpack.c.l.b16 %v3067
      %v3485 = vunpack.c.h.b16 %v3067
      %v3486 = vunpack.c.l.b16 %v3068
      %v3487 = vunpack.c.l.b16 %v3069
      %v3488 = vunpack.c.h.b16 %v3069
      %v3489 = vunpack.c.l.b16 %v3070
      %v3490 = vunpack.c.l.b16 %v3071
      %v3491 = vunpack.c.h.b16 %v3071
      %v3492 = vunpack.c.l.b16 %v3072
      %v3493 = vunpack.c.l.b16 %v3073
      %v3494 = vunpack.c.h.b16 %v3073
      %v3495 = vunpack.c.l.b16 %v3074
      %v3496 = vunpack.c.l.b16 %v3075
      %v3497 = vunpack.c.h.b16 %v3075
      %v3498 = vunpack.c.l.b16 %v3076
      %v3499 = vunpack.c.l.b16 %v3077
      %v3500 = vunpack.c.h.b16 %v3077
      %v3501 = vunpack.c.l.b16 %v3078
      %v3502 = vunpack.c.l.b16 %v3079
      %v3503 = vunpack.c.h.b16 %v3079
      %v3504 = vunpack.c.l.b16 %v3080
      %v3505 = vunpack.c.l.b16 %v3081
      %v3506 = vunpack.c.h.b16 %v3081
      %v3507 = vunpack.c.l.b16 %v3082
      %v3508 = vunpack.c.l.b16 %v3083
      %v3509 = vunpack.c.h.b16 %v3083
      %v3510 = vunpack.c.l.b16 %v3084
      %v3511 = vunpack.c.l.b16 %v3085
      %v3512 = vunpack.c.h.b16 %v3085
      %v3513 = vunpack.c.l.b16 %v3086
      %v3514 = vunpack.c.l.b16 %v3087
      %v3515 = vunpack.c.h.b16 %v3087
      %v3516 = vunpack.c.l.b16 %v3088
      %v3517 = vunpack.c.l.b16 %v3089
      %v3518 = vunpack.c.h.b16 %v3089
      %v3519 = vunpack.c.l.b16 %v3090
      %v3520 = vunpack.c.l.b16 %v3091
      %v3521 = vunpack.c.h.b16 %v3091
      %v3522 = vunpack.c.l.b16 %v3092
      %v3523 = vunpack.c.l.b16 %v3093
      %v3524 = vunpack.c.h.b16 %v3093
      %v3525 = vunpack.c.l.b16 %v3094
      %v3526 = vunpack.c.l.b16 %v3095
      %v3527 = vunpack.c.h.b16 %v3095
      %v3528 = vunpack.c.l.b16 %v3096
      %v3529 = vunpack.c.l.b16 %v3097
      %v3530 = vunpack.c.h.b16 %v3097
      %v3531 = vunpack.c.l.b16 %v3098
      %v3532 = vunpack.c.l.b16 %v3099
      %v3533 = vunpack.c.h.b16 %v3099
      %v3534 = vunpack.c.l.b16 %v3100
      %v3535 = vunpack.c.l.b16 %v3101
      %v3536 = vunpack.c.h.b16 %v3101
      %v3537 = vunpack.c.l.b16 %v3102
      %v3538 = vunpack.c.l.b16 %v3103
      %v3539 = vunpack.c.h.b16 %v3103
      %v3540 = vunpack.c.l.b16 %v3104
      %v3541 = vunpack.c.l.b16 %v3105
      %v3542 = vunpack.c.h.b16 %v3105
      %v3543 = vunpack.c.l.b16 %v3106
      %v3544 = vunpack.c.l.b16 %v3107
      %v3545 = vunpack.c.h.b16 %v3107
      %v3546 = vunpack.c.l.b16 %v3108
      %v3547 = vunpack.c.l.b16 %v3109
      %v3548 = vunpack.c.h.b16 %v3109
      %v3549 = vunpack.c.l.b16 %v3110
      %v3550 = vunpack.c.l.b16 %v3111
      %v3551 = vunpack.c.h.b16 %v3111
      %v3552 = vunpack.c.l.b16 %v3112
      %v3553 = vunpack.c.l.b16 %v3113
      %v3554 = vunpack.c.h.b16 %v3113
      %v3555 = vunpack.c.l.b16 %v3114
      %v3556 = vunpack.c.l.b16 %v3115
      %v3557 = vunpack.c.h.b16 %v3115
      %v3558 = vunpack.c.l.b16 %v3116
      %v3559 = vunpack.c.l.b16 %v3117
      %v3560 = vunpack.c.h.b16 %v3117
      %v3561 = vunpack.c.l.b16 %v3118
      %v3562 = vunpack.c.l.b16 %v3119
      %v3563 = vunpack.c.h.b16 %v3119
      %v3564 = vunpack.c.l.b16 %v3120
      %v3565 = vunpack.c.l.b16 %v3121
      %v3566 = vunpack.c.h.b16 %v3121
      %v3567 = vunpack.c.l.b16 %v3122
      %v3568 = vunpack.c.l.b16 %v3123
      %v3569 = vunpack.c.h.b16 %v3123
      %v3570 = vunpack.c.l.b16 %v3124
      %v3571 = vunpack.c.l.b16 %v3125
      %v3572 = vunpack.c.h.b16 %v3125
      %v3573 = vunpack.c.l.b16 %v3126
      %v3574 = vunpack.c.l.b16 %v3127
      %v3575 = vunpack.c.h.b16 %v3127
      %v3576 = vunpack.c.l.b16 %v3128
      %v3577 = vunpack.c.l.b16 %v3129
      %v3578 = vunpack.c.h.b16 %v3129
      %v3579 = vunpack.c.l.b16 %v3130
      %v3580 = vunpack.c.l.b16 %v3131
      %v3581 = vunpack.c.h.b16 %v3131
      %v3582 = vunpack.c.l.b16 %v3132
      %v3583 = vunpack.c.l.b16 %v3133
      %v3584 = vunpack.c.h.b16 %v3133
      %v3585 = vunpack.c.l.b16 %v3134
      %v3586 = vpack.c.b16 %v3445, %v3442
      %v3587 = vpack.c.b16 %v3446, %v3443
      %v3588 = vpack.c.b16 %v3447, %v3444
      %v3589 = vpack.c.b16 %v3451, %v3448
      %v3590 = vpack.c.b16 %v3452, %v3449
      %v3591 = vpack.c.b16 %v3453, %v3450
      %v3592 = vpack.c.b16 %v3457, %v3454
      %v3593 = vpack.c.b16 %v3458, %v3455
      %v3594 = vpack.c.b16 %v3459, %v3456
      %v3595 = vpack.c.b16 %v3463, %v3460
      %v3596 = vpack.c.b16 %v3464, %v3461
      %v3597 = vpack.c.b16 %v3465, %v3462
      %v3598 = vpack.c.b16 %v3469, %v3466
      %v3599 = vpack.c.b16 %v3470, %v3467
      %v3600 = vpack.c.b16 %v3471, %v3468
      %v3601 = vpack.c.b16 %v3475, %v3472
      %v3602 = vpack.c.b16 %v3476, %v3473
      %v3603 = vpack.c.b16 %v3477, %v3474
      %v3604 = vpack.c.b16 %v3481, %v3478
      %v3605 = vpack.c.b16 %v3482, %v3479
      %v3606 = vpack.c.b16 %v3483, %v3480
      %v3607 = vpack.c.b16 %v3487, %v3484
      %v3608 = vpack.c.b16 %v3488, %v3485
      %v3609 = vpack.c.b16 %v3489, %v3486
      %v3610 = vpack.c.b16 %v3493, %v3490
      %v3611 = vpack.c.b16 %v3494, %v3491
      %v3612 = vpack.c.b16 %v3495, %v3492
      %v3613 = vpack.c.b16 %v3499, %v3496
      %v3614 = vpack.c.b16 %v3500, %v3497
      %v3615 = vpack.c.b16 %v3501, %v3498
      %v3616 = vpack.c.b16 %v3505, %v3502
      %v3617 = vpack.c.b16 %v3506, %v3503
      %v3618 = vpack.c.b16 %v3507, %v3504
      %v3619 = vpack.c.b16 %v3511, %v3508
      %v3620 = vpack.c.b16 %v3512, %v3509
      %v3621 = vpack.c.b16 %v3513, %v3510
      %v3622 = vpack.c.b16 %v3517, %v3514
      %v3623 = vpack.c.b16 %v3518, %v3515
      %v3624 = vpack.c.b16 %v3519, %v3516
      %v3625 = vpack.c.b16 %v3523, %v3520
      %v3626 = vpack.c.b16 %v3524, %v3521
      %v3627 = vpack.c.b16 %v3525, %v3522
      %v3628 = vpack.c.b16 %v3529, %v3526
      %v3629 = vpack.c.b16 %v3530, %v3527
      %v3630 = vpack.c.b16 %v3531, %v3528
      %v3631 = vpack.c.b16 %v3535, %v3532
      %v3632 = vpack.c.b16 %v3536, %v3533
      %v3633 = vpack.c.b16 %v3537, %v3534
      %v3634 = vpack.c.b16 %v3541, %v3538
      %v3635 = vpack.c.b16 %v3542, %v3539
      %v3636 = vpack.c.b16 %v3543, %v3540
      %v3637 = vpack.c.b16 %v3547, %v3544
      %v3638 = vpack.c.b16 %v3548, %v3545
      %v3639 = vpack.c.b16 %v3549, %v3546
      %v3640 = vpack.c.b16 %v3553, %v3550
      %v3641 = vpack.c.b16 %v3554, %v3551
      %v3642 = vpack.c.b16 %v3555, %v3552
      %v3643 = vpack.c.b16 %v3559, %v3556
      %v3644 = vpack.c.b16 %v3560, %v3557
      %v3645 = vpack.c.b16 %v3561, %v3558
      %v3646 = vpack.c.b16 %v3565, %v3562
      %v3647 = vpack.c.b16 %v3566, %v3563
      %v3648 = vpack.c.b16 %v3567, %v3564
      %v3649 = vpack.c.b16 %v3571, %v3568
      %v3650 = vpack.c.b16 %v3572, %v3569
      %v3651 = vpack.c.b16 %v3573, %v3570
      %v3652 = vpack.c.b16 %v3577, %v3574
      %v3653 = vpack.c.b16 %v3578, %v3575
      %v3654 = vpack.c.b16 %v3579, %v3576
      %v3655 = vpack.c.b16 %v3583, %v3580
      %v3656 = vpack.c.b16 %v3584, %v3581
      %v3657 = vpack.c.b16 %v3585, %v3582
      %3730 = vmatprep.subr.bf16.mxu0 %v3587
      %3731 = vmatpush1.bf16.msra.mxu0 %v3586
      %3732 = vmatprep.subr.bf16.mxu0 %v3590
      %3733 = vmatpush1.bf16.msra.mxu0 %v3589
      %3734 = vmatprep.subr.bf16.mxu0 %v3593
      %3735 = vmatpush1.bf16.msra.mxu0 %v3592
      %3736 = vmatprep.subr.bf16.mxu0 %v3596
      %3737 = vmatpush1.bf16.msra.mxu0 %v3595
      %3738 = vmatprep.subr.bf16.mxu0 %v3599
      %3739 = vmatpush1.bf16.msra.mxu0 %v3598
      %3740 = vmatprep.subr.bf16.mxu0 %v3602
      %3741 = vmatpush1.bf16.msra.mxu0 %v3601
      %3742 = vmatprep.subr.bf16.mxu0 %v3605
      %3743 = vmatpush1.bf16.msra.mxu0 %v3604
      %3744 = vmatprep.subr.bf16.mxu0 %v3608
      %3745 = vmatpush1.bf16.msra.mxu0 %v3607
      %3746 = vmatprep.subr.bf16.mxu0 %v3611
      %3747 = vmatpush1.bf16.msra.mxu0 %v3610
      %3748 = vmatprep.subr.bf16.mxu0 %v3614
      %3749 = vmatpush1.bf16.msra.mxu0 %v3613
      %3750 = vmatprep.subr.bf16.mxu0 %v3617
      %3751 = vmatpush1.bf16.msra.mxu0 %v3616
      %3752 = vmatprep.subr.bf16.mxu0 %v3620
      %3753 = vmatpush1.bf16.msra.mxu0 %v3619
      %3754 = vmatprep.subr.bf16.mxu0 %v3623
      %3755 = vmatpush1.bf16.msra.mxu0 %v3622
      %3756 = vmatprep.subr.bf16.mxu0 %v3626
      %3757 = vmatpush1.bf16.msra.mxu0 %v3625
      %3758 = vmatprep.subr.bf16.mxu0 %v3629
      %3759 = vmatpush1.bf16.msra.mxu0 %v3628
      %3760 = vmatprep.subr.bf16.mxu0 %v3632
      %3761 = vmatpush1.bf16.msra.mxu0 %v3631
      %3762 = vmatprep.mubr.bf16.mxu0 %v3245
      %3763 = vmatmul.mubr.bf16.gmra.mrb[0].mxu0 %v3244
      %v3764 = vpop.f32.mrb[0].mxu0
      %v3765 = vadd.f32 0.0, %v3764
      %v3766 = vpop.f32.mrb[0].mxu0
      %v3767 = vadd.f32 0.0, %v3766
      %v3768 = vpop.f32.mrb[0].mxu0
      %v3769 = vadd.f32 0.0, %v3768
      %v3770 = vpop.f32.mrb[0].mxu0
      %v3771 = vadd.f32 0.0, %v3770
      %3772 = vmatprep.mubr.bf16.mxu0 %v3248
      %3773 = vmatmul.mubr.bf16.gmra.mrb[0].mxu0 %v3247
      %v3774 = vpop.f32.mrb[0].mxu0
      %v3775 = vpop.f32.mrb[0].mxu0
      %v3776 = vadd.f32 0.0, %v3775
      %v3777 = vpop.f32.mrb[0].mxu0
      %v3778 = vadd.f32 0.0, %v3777
      %v3779 = vpop.f32.mrb[0].mxu0
      %v3780 = vadd.f32 0.0, %v3779
      %3781 = vmatprep.mubr.bf16.mxu0 %v3251
      %3782 = vmatmul.mubr.bf16.gmra.mrb[0].mxu0 %v3250
      %v3783 = vpop.f32.mrb[0].mxu0
      %v3784 = vadd.f32 0.0, %v3783
      %v3785 = vpop.f32.mrb[0].mxu0
      %v3786 = vadd.f32 0.0, %v3785
      %v3787 = vpop.f32.mrb[0].mxu0
      %v3788 = vpop.f32.mrb[0].mxu0
      %v3789 = vadd.f32 0.0, %v3788
      %3790 = vmatprep.mubr.bf16.mxu0 %v3253
      %3791 = vmatmul.mubr.bf16.gmra.mrb[0].mxu0 %v3246
      %v3792 = vpop.f32.mrb[0].mxu0
      %v3793 = vadd.f32 0.0, %v3792
      %v3794 = vpop.f32.mrb[0].mxu0
      %v3795 = vadd.f32 0.0, %v3794
      %v3796 = vpop.f32.mrb[0].mxu0
      %v3797 = vadd.f32 0.0, %v3796
      %v3798 = vpop.f32.mrb[0].mxu0
      %v3799 = vadd.f32 0.0, %v3798
      %3800 = vmatprep.mubr.bf16.mxu0 %v3255
      %3801 = vmatmul.mubr.bf16.gmra.mrb[0].mxu0 %v3249
      %v3802 = vpop.f32.mrb[0].mxu0
      %v3803 = vpop.f32.mrb[0].mxu0
      %v3804 = vadd.f32 0.0, %v3803
      %v3805 = vpop.f32.mrb[0].mxu0
      %v3806 = vadd.f32 0.0, %v3805
      %v3807 = vpop.f32.mrb[0].mxu0
      %v3808 = vadd.f32 0.0, %v3807
      %3809 = vmatprep.mubr.bf16.mxu0 %v3257
      %3810 = vmatmul.mubr.bf16.gmra.mrb[0].mxu0 %v3252
      %v3811 = vpop.f32.mrb[0].mxu0
      %v3812 = vadd.f32 0.0, %v3811
      %v3813 = vpop.f32.mrb[0].mxu0
      %v3814 = vadd.f32 0.0, %v3813
      %v3815 = vpop.f32.mrb[0].mxu0
      %v3816 = vpop.f32.mrb[0].mxu0
      %v3817 = vadd.f32 0.0, %v3816
      %3818 = vmatprep.mubr.bf16.mxu0 %v3259
      %3819 = vmatmul.mubr.bf16.gmra.mrb[0].mxu0 %v3254
      %v3820 = vpop.f32.mrb[0].mxu0
      %v3821 = vadd.f32 0.0, %v3820
      %v3822 = vpop.f32.mrb[0].mxu0
      %v3823 = vadd.f32 0.0, %v3822
      %v3824 = vpop.f32.mrb[0].mxu0
      %v3825 = vadd.f32 0.0, %v3824
      %v3826 = vpop.f32.mrb[0].mxu0
      %v3827 = vadd.f32 0.0, %v3826
      %3828 = vmatprep.mubr.bf16.mxu0 %v3261
      %3829 = vmatmul.mubr.bf16.gmra.mrb[0].mxu0 %v3256
      %v3830 = vpop.f32.mrb[0].mxu0
      %v3831 = vpop.f32.mrb[0].mxu0
      %v3832 = vadd.f32 0.0, %v3831
      %v3833 = vpop.f32.mrb[0].mxu0
      %v3834 = vadd.f32 0.0, %v3833
      %v3835 = vpop.f32.mrb[0].mxu0
      %v3836 = vadd.f32 0.0, %v3835
      %3837 = vmatprep.mubr.bf16.mxu0 %v3263
      %3838 = vmatmul.mubr.bf16.gmra.mrb[0].mxu0 %v3258
      %v3839 = vpop.f32.mrb[0].mxu0
      %v3840 = vadd.f32 0.0, %v3839
      %v3841 = vpop.f32.mrb[0].mxu0
      %v3842 = vadd.f32 0.0, %v3841
      %v3843 = vpop.f32.mrb[0].mxu0
      %v3844 = vpop.f32.mrb[0].mxu0
      %v3845 = vadd.f32 0.0, %v3844
      %3846 = vmatprep.mubr.bf16.mxu0 %v3265
      %3847 = vmatmul.mubr.bf16.gmra.mrb[0].mxu0 %v3260
      %v3848 = vpop.f32.mrb[0].mxu0
      %v3849 = vadd.f32 0.0, %v3848
      %v3850 = vpop.f32.mrb[0].mxu0
      %v3851 = vadd.f32 0.0, %v3850
      %v3852 = vpop.f32.mrb[0].mxu0
      %v3853 = vadd.f32 0.0, %v3852
      %v3854 = vpop.f32.mrb[0].mxu0
      %v3855 = vadd.f32 0.0, %v3854
      %3856 = vmatprep.mubr.bf16.mxu0 %v3267
      %3857 = vmatmul.mubr.bf16.gmra.mrb[0].mxu0 %v3262
      %v3858 = vpop.f32.mrb[0].mxu0
      %v3859 = vpop.f32.mrb[0].mxu0
      %v3860 = vadd.f32 0.0, %v3859
      %v3861 = vpop.f32.mrb[0].mxu0
      %v3862 = vadd.f32 0.0, %v3861
      %v3863 = vpop.f32.mrb[0].mxu0
      %v3864 = vadd.f32 0.0, %v3863
      %3865 = vmatprep.mubr.bf16.mxu0 %v3269
      %3866 = vmatmul.mubr.bf16.gmra.mrb[0].mxu0 %v3264
      %v3867 = vpop.f32.mrb[0].mxu0
      %v3868 = vadd.f32 0.0, %v3867
      %v3869 = vpop.f32.mrb[0].mxu0
      %v3870 = vadd.f32 0.0, %v3869
      %v3871 = vpop.f32.mrb[0].mxu0
      %v3872 = vpop.f32.mrb[0].mxu0
      %v3873 = vadd.f32 0.0, %v3872
      %3874 = vmatprep.mubr.bf16.mxu0 %v3271
      %3875 = vmatmul.mubr.bf16.gmra.mrb[0].mxu0 %v3266
      %v3876 = vpop.f32.mrb[0].mxu0
      %v3877 = vadd.f32 0.0, %v3876
      %v3878 = vpop.f32.mrb[0].mxu0
      %v3879 = vadd.f32 0.0, %v3878
      %v3880 = vpop.f32.mrb[0].mxu0
      %v3881 = vadd.f32 0.0, %v3880
      %v3882 = vpop.f32.mrb[0].mxu0
      %v3883 = vadd.f32 0.0, %v3882
      %3884 = vmatprep.mubr.bf16.mxu0 %v3273
      %3885 = vmatmul.mubr.bf16.gmra.mrb[0].mxu0 %v3268
      %v3886 = vpop.f32.mrb[0].mxu0
      %v3887 = vpop.f32.mrb[0].mxu0
      %v3888 = vadd.f32 0.0, %v3887
      %v3889 = vpop.f32.mrb[0].mxu0
      %v3890 = vadd.f32 0.0, %v3889
      %v3891 = vpop.f32.mrb[0].mxu0
      %v3892 = vadd.f32 0.0, %v3891
      %3893 = vmatprep.mubr.bf16.mxu0 %v3275
      %3894 = vmatmul.mubr.bf16.gmra.mrb[0].mxu0 %v3270
      %v3895 = vpop.f32.mrb[0].mxu0
      %v3896 = vadd.f32 0.0, %v3895
      %v3897 = vpop.f32.mrb[0].mxu0
      %v3898 = vadd.f32 0.0, %v3897
      %v3899 = vpop.f32.mrb[0].mxu0
      %v3900 = vpop.f32.mrb[0].mxu0
      %v3901 = vadd.f32 0.0, %v3900
      %3902 = vmatprep.mubr.bf16.mxu0 %v3277
      %3903 = vmatmul.mubr.bf16.gmra.mrb[0].mxu0 %v3272
      %v3904 = vpop.f32.mrb[0].mxu0
      %v3905 = vadd.f32 0.0, %v3904
      %v3906 = vpop.f32.mrb[0].mxu0
      %v3907 = vadd.f32 0.0, %v3906
      %v3908 = vpop.f32.mrb[0].mxu0
      %v3909 = vadd.f32 0.0, %v3908
      %v3910 = vpop.f32.mrb[0].mxu0
      %v3911 = vadd.f32 0.0, %v3910
      %3912 = vmatprep.mubr.bf16.mxu0 %v3279
      %3913 = vmatmul.mubr.bf16.gmra.mrb[0].mxu0 %v3274
      %v3914 = vpop.f32.mrb[0].mxu0
      %v3915 = vpop.f32.mrb[0].mxu0
      %v3916 = vadd.f32 0.0, %v3915
      %v3917 = vpop.f32.mrb[0].mxu0
      %v3918 = vadd.f32 0.0, %v3917
      %v3919 = vpop.f32.mrb[0].mxu0
      %v3920 = vadd.f32 0.0, %v3919
      %3921 = vmatprep.mubr.bf16.mxu0 %v3281
      %3922 = vmatmul.mubr.bf16.gmra.mrb[0].mxu0 %v3276
      %v3923 = vpop.f32.mrb[0].mxu0
      %v3924 = vadd.f32 0.0, %v3923
      %v3925 = vpop.f32.mrb[0].mxu0
      %v3926 = vadd.f32 0.0, %v3925
      %v3927 = vpop.f32.mrb[0].mxu0
      %v3928 = vpop.f32.mrb[0].mxu0
      %v3929 = vadd.f32 0.0, %v3928
      %3930 = vmatprep.mubr.bf16.mxu0 %v3283
      %3931 = vmatmul.mubr.bf16.gmra.mrb[0].mxu0 %v3278
      %v3932 = vpop.f32.mrb[0].mxu0
      %v3933 = vadd.f32 0.0, %v3932
      %v3934 = vpop.f32.mrb[0].mxu0
      %v3935 = vadd.f32 0.0, %v3934
      %v3936 = vpop.f32.mrb[0].mxu0
      %v3937 = vadd.f32 0.0, %v3936
      %v3938 = vpop.f32.mrb[0].mxu0
      %v3939 = vadd.f32 0.0, %v3938
      %3940 = vmatprep.mubr.bf16.mxu0 %v3285
      %3941 = vmatmul.mubr.bf16.gmra.mrb[0].mxu0 %v3280
      %v3942 = vpop.f32.mrb[0].mxu0
      %v3943 = vpop.f32.mrb[0].mxu0
      %v3944 = vadd.f32 0.0, %v3943
      %v3945 = vpop.f32.mrb[0].mxu0
      %v3946 = vadd.f32 0.0, %v3945
      %v3947 = vpop.f32.mrb[0].mxu0
      %v3948 = vadd.f32 0.0, %v3947
      %3949 = vmatprep.mubr.bf16.mxu0 %v3287
      %3950 = vmatmul.mubr.bf16.gmra.mrb[0].mxu0 %v3282
      %v3951 = vpop.f32.mrb[0].mxu0
      %v3952 = vadd.f32 0.0, %v3951
      %v3953 = vpop.f32.mrb[0].mxu0
      %v3954 = vadd.f32 0.0, %v3953
      %v3955 = vpop.f32.mrb[0].mxu0
      %v3956 = vpop.f32.mrb[0].mxu0
      %v3957 = vadd.f32 0.0, %v3956
      %3958 = vmatprep.mubr.bf16.mxu0 %v3289
      %3959 = vmatmul.mubr.bf16.gmra.mrb[0].mxu0 %v3284
      %v3960 = vpop.f32.mrb[0].mxu0
      %v3961 = vadd.f32 0.0, %v3960
      %v3962 = vpop.f32.mrb[0].mxu0
      %v3963 = vadd.f32 0.0, %v3962
      %v3964 = vpop.f32.mrb[0].mxu0
      %v3965 = vadd.f32 0.0, %v3964
      %v3966 = vpop.f32.mrb[0].mxu0
      %v3967 = vadd.f32 0.0, %v3966
      %3968 = vmatprep.mubr.bf16.mxu0 %v3291
      %3969 = vmatmul.mubr.bf16.gmra.mrb[0].mxu0 %v3286
      %v3970 = vpop.f32.mrb[0].mxu0
      %v3971 = vpop.f32.mrb[0].mxu0
      %v3972 = vadd.f32 0.0, %v3971
      %v3973 = vpop.f32.mrb[0].mxu0
      %v3974 = vadd.f32 0.0, %v3973
      %v3975 = vpop.f32.mrb[0].mxu0
      %v3976 = vadd.f32 0.0, %v3975
      %3977 = vmatprep.mubr.bf16.mxu0 %v3293
      %3978 = vmatmul.mubr.bf16.gmra.mrb[0].mxu0 %v3288
      %v3979 = vpop.f32.mrb[0].mxu0
      %v3980 = vadd.f32 0.0, %v3979
      %v3981 = vpop.f32.mrb[0].mxu0
      %v3982 = vadd.f32 0.0, %v3981
      %v3983 = vpop.f32.mrb[0].mxu0
      %v3984 = vpop.f32.mrb[0].mxu0
      %v3985 = vadd.f32 0.0, %v3984
      %3986 = vdwg.mxu0
      %3987 = vmatprep.subr.bf16.mxu0 %v3635
      %3988 = vmatpush1.bf16.msra.mxu0 %v3634
      %3989 = vmatprep.subr.bf16.mxu0 %v3638
      %3990 = vmatpush1.bf16.msra.mxu0 %v3637
      %3991 = vmatprep.subr.bf16.mxu0 %v3641
      %3992 = vmatpush1.bf16.msra.mxu0 %v3640
      %3993 = vmatprep.subr.bf16.mxu0 %v3644
      %3994 = vmatpush1.bf16.msra.mxu0 %v3643
      %3995 = vmatprep.subr.bf16.mxu0 %v3647
      %3996 = vmatpush1.bf16.msra.mxu0 %v3646
      %3997 = vmatprep.subr.bf16.mxu0 %v3650
      %3998 = vmatpush1.bf16.msra.mxu0 %v3649
      %3999 = vmatprep.subr.bf16.mxu0 %v3653
      %4000 = vmatpush1.bf16.msra.mxu0 %v3652
      %4001 = vmatprep.subr.bf16.mxu0 %v3656
      %4002 = vmatpush1.bf16.msra.mxu0 %v3655
      %4003 = vmatprep.subr.bf16.mxu0 0
      %4004 = vmatpush1.bf16.msra.mxu0 0
      %4005 = vmatprep.subr.bf16.mxu0 0
      %4006 = vmatpush1.bf16.msra.mxu0 0
      %4007 = vmatprep.subr.bf16.mxu0 0
      %4008 = vmatpush1.bf16.msra.mxu0 0
      %4009 = vmatprep.subr.bf16.mxu0 0
      %4010 = vmatpush1.bf16.msra.mxu0 0
      %4011 = vmatprep.subr.bf16.mxu0 0
      %4012 = vmatpush1.bf16.msra.mxu0 0
      %4013 = vmatprep.subr.bf16.mxu0 0
      %4014 = vmatpush1.bf16.msra.mxu0 0
      %4015 = vmatprep.subr.bf16.mxu0 0
      %4016 = vmatpush1.bf16.msra.mxu0 0
      %4017 = vmatprep.subr.bf16.mxu0 0
      %4018 = vmatpush1.bf16.msra.mxu0 0
      %4019 = vmatprep.mubr.bf16.mxu0 0
      %4020 = vmatmul.mubr.bf16.gmra.mrb[0].mxu0 %v3246
      %v4021 = vpop.f32.mrb[0].mxu0
      %v4022 = vadd.f32 %v3765, %v4021
      %v4023 = vpop.f32.mrb[0].mxu0
      %v4024 = vadd.f32 %v3767, %v4023
      %v4025 = vpop.f32.mrb[0].mxu0
      %v4026 = vadd.f32 %v3769, %v4025
      %v4027 = vpop.f32.mrb[0].mxu0
      %v4028 = vadd.f32 %v3771, %v4027
      %4029 = vmatprep.mubr.bf16.mxu0 0
      %4030 = vmatmul.mubr.bf16.gmra.mrb[0].mxu0 %v3249
      %v4031 = vpop.f32.mrb[0].mxu0
      %v4032 = vpop.f32.mrb[0].mxu0
      %v4033 = vadd.f32 %v3776, %v4032
      %v4034 = vpop.f32.mrb[0].mxu0
      %v4035 = vadd.f32 %v3778, %v4034
      %v4036 = vpop.f32.mrb[0].mxu0
      %v4037 = vadd.f32 %v3780, %v4036
      %4038 = vmatprep.mubr.bf16.mxu0 0
      %4039 = vmatmul.mubr.bf16.gmra.mrb[0].mxu0 %v3252
      %v4040 = vpop.f32.mrb[0].mxu0
      %v4041 = vadd.f32 %v3784, %v4040
      %v4042 = vpop.f32.mrb[0].mxu0
      %v4043 = vadd.f32 %v3786, %v4042
      %v4044 = vpop.f32.mrb[0].mxu0
      %v4045 = vpop.f32.mrb[0].mxu0
      %v4046 = vadd.f32 %v3789, %v4045
      %4047 = vmatprep.mubr.bf16.mxu0 0
      %4048 = vmatmul.mubr.bf16.gmra.mrb[0].mxu0 %v3254
      %v4049 = vpop.f32.mrb[0].mxu0
      %v4050 = vadd.f32 %v3793, %v4049
      %v4051 = vpop.f32.mrb[0].mxu0
      %v4052 = vadd.f32 %v3795, %v4051
      %v4053 = vpop.f32.mrb[0].mxu0
      %v4054 = vadd.f32 %v3797, %v4053
      %v4055 = vpop.f32.mrb[0].mxu0
      %v4056 = vadd.f32 %v3799, %v4055
      %4057 = vmatprep.mubr.bf16.mxu0 0
      %4058 = vmatmul.mubr.bf16.gmra.mrb[0].mxu0 %v3256
      %v4059 = vpop.f32.mrb[0].mxu0
      %v4060 = vpop.f32.mrb[0].mxu0
      %v4061 = vadd.f32 %v3804, %v4060
      %v4062 = vpop.f32.mrb[0].mxu0
      %v4063 = vadd.f32 %v3806, %v4062
      %v4064 = vpop.f32.mrb[0].mxu0
      %v4065 = vadd.f32 %v3808, %v4064
      %4066 = vmatprep.mubr.bf16.mxu0 0
      %4067 = vmatmul.mubr.bf16.gmra.mrb[0].mxu0 %v3258
      %v4068 = vpop.f32.mrb[0].mxu0
      %v4069 = vadd.f32 %v3812, %v4068
      %v4070 = vpop.f32.mrb[0].mxu0
      %v4071 = vadd.f32 %v3814, %v4070
      %v4072 = vpop.f32.mrb[0].mxu0
      %v4073 = vpop.f32.mrb[0].mxu0
      %v4074 = vadd.f32 %v3817, %v4073
      %4075 = vmatprep.mubr.bf16.mxu0 0
      %4076 = vmatmul.mubr.bf16.gmra.mrb[0].mxu0 %v3260
      %v4077 = vpop.f32.mrb[0].mxu0
      %v4078 = vadd.f32 %v3821, %v4077
      %v4079 = vpop.f32.mrb[0].mxu0
      %v4080 = vadd.f32 %v3823, %v4079
      %v4081 = vpop.f32.mrb[0].mxu0
      %v4082 = vadd.f32 %v3825, %v4081
      %v4083 = vpop.f32.mrb[0].mxu0
      %v4084 = vadd.f32 %v3827, %v4083
      %4085 = vmatprep.mubr.bf16.mxu0 0
      %4086 = vmatmul.mubr.bf16.gmra.mrb[0].mxu0 %v3262
      %v4087 = vpop.f32.mrb[0].mxu0
      %v4088 = vpop.f32.mrb[0].mxu0
      %v4089 = vadd.f32 %v3832, %v4088
      %v4090 = vpop.f32.mrb[0].mxu0
      %v4091 = vadd.f32 %v3834, %v4090
      %v4092 = vpop.f32.mrb[0].mxu0
      %v4093 = vadd.f32 %v3836, %v4092
      %4094 = vmatprep.mubr.bf16.mxu0 0
      %4095 = vmatmul.mubr.bf16.gmra.mrb[0].mxu0 %v3264
      %v4096 = vpop.f32.mrb[0].mxu0
      %v4097 = vadd.f32 %v3840, %v4096
      %v4098 = vpop.f32.mrb[0].mxu0
      %v4099 = vadd.f32 %v3842, %v4098
      %v4100 = vpop.f32.mrb[0].mxu0
      %v4101 = vpop.f32.mrb[0].mxu0
      %v4102 = vadd.f32 %v3845, %v4101
      %4103 = vmatprep.mubr.bf16.mxu0 0
      %4104 = vmatmul.mubr.bf16.gmra.mrb[0].mxu0 %v3266
      %v4105 = vpop.f32.mrb[0].mxu0
      %v4106 = vadd.f32 %v3849, %v4105
      %v4107 = vpop.f32.mrb[0].mxu0
      %v4108 = vadd.f32 %v3851, %v4107
      %v4109 = vpop.f32.mrb[0].mxu0
      %v4110 = vadd.f32 %v3853, %v4109
      %v4111 = vpop.f32.mrb[0].mxu0
      %v4112 = vadd.f32 %v3855, %v4111
      %4113 = vmatprep.mubr.bf16.mxu0 0
      %4114 = vmatmul.mubr.bf16.gmra.mrb[0].mxu0 %v3268
      %v4115 = vpop.f32.mrb[0].mxu0
      %v4116 = vpop.f32.mrb[0].mxu0
      %v4117 = vadd.f32 %v3860, %v4116
      %v4118 = vpop.f32.mrb[0].mxu0
      %v4119 = vadd.f32 %v3862, %v4118
      %v4120 = vpop.f32.mrb[0].mxu0
      %v4121 = vadd.f32 %v3864, %v4120
      %4122 = vmatprep.mubr.bf16.mxu0 0
      %4123 = vmatmul.mubr.bf16.gmra.mrb[0].mxu0 %v3270
      %v4124 = vpop.f32.mrb[0].mxu0
      %v4125 = vadd.f32 %v3868, %v4124
      %v4126 = vpop.f32.mrb[0].mxu0
      %v4127 = vadd.f32 %v3870, %v4126
      %v4128 = vpop.f32.mrb[0].mxu0
      %v4129 = vpop.f32.mrb[0].mxu0
      %v4130 = vadd.f32 %v3873, %v4129
      %4131 = vmatprep.mubr.bf16.mxu0 0
      %4132 = vmatmul.mubr.bf16.gmra.mrb[0].mxu0 %v3272
      %v4133 = vpop.f32.mrb[0].mxu0
      %v4134 = vadd.f32 %v3877, %v4133
      %v4135 = vpop.f32.mrb[0].mxu0
      %v4136 = vadd.f32 %v3879, %v4135
      %v4137 = vpop.f32.mrb[0].mxu0
      %v4138 = vadd.f32 %v3881, %v4137
      %v4139 = vpop.f32.mrb[0].mxu0
      %v4140 = vadd.f32 %v3883, %v4139
      %4141 = vmatprep.mubr.bf16.mxu0 0
      %4142 = vmatmul.mubr.bf16.gmra.mrb[0].mxu0 %v3274
      %v4143 = vpop.f32.mrb[0].mxu0
      %v4144 = vpop.f32.mrb[0].mxu0
      %v4145 = vadd.f32 %v3888, %v4144
      %v4146 = vpop.f32.mrb[0].mxu0
      %v4147 = vadd.f32 %v3890, %v4146
      %v4148 = vpop.f32.mrb[0].mxu0
      %v4149 = vadd.f32 %v3892, %v4148
      %4150 = vmatprep.mubr.bf16.mxu0 0
      %4151 = vmatmul.mubr.bf16.gmra.mrb[0].mxu0 %v3276
      %v4152 = vpop.f32.mrb[0].mxu0
      %v4153 = vadd.f32 %v3896, %v4152
      %v4154 = vpop.f32.mrb[0].mxu0
      %v4155 = vadd.f32 %v3898, %v4154
      %v4156 = vpop.f32.mrb[0].mxu0
      %v4157 = vpop.f32.mrb[0].mxu0
      %v4158 = vadd.f32 %v3901, %v4157
      %4159 = vmatprep.mubr.bf16.mxu0 0
      %4160 = vmatmul.mubr.bf16.gmra.mrb[0].mxu0 %v3278
      %v4161 = vpop.f32.mrb[0].mxu0
      %v4162 = vadd.f32 %v3905, %v4161
      %v4163 = vpop.f32.mrb[0].mxu0
      %v4164 = vadd.f32 %v3907, %v4163
      %v4165 = vpop.f32.mrb[0].mxu0
      %v4166 = vadd.f32 %v3909, %v4165
      %v4167 = vpop.f32.mrb[0].mxu0
      %v4168 = vadd.f32 %v3911, %v4167
      %4169 = vmatprep.mubr.bf16.mxu0 0
      %4170 = vmatmul.mubr.bf16.gmra.mrb[0].mxu0 %v3280
      %v4171 = vpop.f32.mrb[0].mxu0
      %v4172 = vpop.f32.mrb[0].mxu0
      %v4173 = vadd.f32 %v3916, %v4172
      %v4174 = vpop.f32.mrb[0].mxu0
      %v4175 = vadd.f32 %v3918, %v4174
      %v4176 = vpop.f32.mrb[0].mxu0
      %v4177 = vadd.f32 %v3920, %v4176
      %4178 = vmatprep.mubr.bf16.mxu0 0
      %4179 = vmatmul.mubr.bf16.gmra.mrb[0].mxu0 %v3282
      %v4180 = vpop.f32.mrb[0].mxu0
      %v4181 = vadd.f32 %v3924, %v4180
      %v4182 = vpop.f32.mrb[0].mxu0
      %v4183 = vadd.f32 %v3926, %v4182
      %v4184 = vpop.f32.mrb[0].mxu0
      %v4185 = vpop.f32.mrb[0].mxu0
      %v4186 = vadd.f32 %v3929, %v4185
      %4187 = vmatprep.mubr.bf16.mxu0 0
      %4188 = vmatmul.mubr.bf16.gmra.mrb[0].mxu0 %v3284
      %v4189 = vpop.f32.mrb[0].mxu0
      %v4190 = vadd.f32 %v3933, %v4189
      %v4191 = vpop.f32.mrb[0].mxu0
      %v4192 = vadd.f32 %v3935, %v4191
      %v4193 = vpop.f32.mrb[0].mxu0
      %v4194 = vadd.f32 %v3937, %v4193
      %v4195 = vpop.f32.mrb[0].mxu0
      %v4196 = vadd.f32 %v3939, %v4195
      %4197 = vmatprep.mubr.bf16.mxu0 0
      %4198 = vmatmul.mubr.bf16.gmra.mrb[0].mxu0 %v3286
      %v4199 = vpop.f32.mrb[0].mxu0
      %v4200 = vpop.f32.mrb[0].mxu0
      %v4201 = vadd.f32 %v3944, %v4200
      %v4202 = vpop.f32.mrb[0].mxu0
      %v4203 = vadd.f32 %v3946, %v4202
      %v4204 = vpop.f32.mrb[0].mxu0
      %v4205 = vadd.f32 %v3948, %v4204
      %4206 = vmatprep.mubr.bf16.mxu0 0
      %4207 = vmatmul.mubr.bf16.gmra.mrb[0].mxu0 %v3288
      %v4208 = vpop.f32.mrb[0].mxu0
      %v4209 = vadd.f32 %v3952, %v4208
      %v4210 = vpop.f32.mrb[0].mxu0
      %v4211 = vadd.f32 %v3954, %v4210
      %v4212 = vpop.f32.mrb[0].mxu0
      %v4213 = vpop.f32.mrb[0].mxu0
      %v4214 = vadd.f32 %v3957, %v4213
      %4215 = vmatprep.mubr.bf16.mxu0 0
      %4216 = vmatmul.mubr.bf16.gmra.mrb[0].mxu0 %v3290
      %v4217 = vpop.f32.mrb[0].mxu0
      %v4218 = vadd.f32 %v3961, %v4217
      %v4219 = vpop.f32.mrb[0].mxu0
      %v4220 = vadd.f32 %v3963, %v4219
      %v4221 = vpop.f32.mrb[0].mxu0
      %v4222 = vadd.f32 %v3965, %v4221
      %v4223 = vpop.f32.mrb[0].mxu0
      %v4224 = vadd.f32 %v3967, %v4223
      %4225 = vmatprep.mubr.bf16.mxu0 0
      %4226 = vmatmul.mubr.bf16.gmra.mrb[0].mxu0 %v3292
      %v4227 = vpop.f32.mrb[0].mxu0
      %v4228 = vpop.f32.mrb[0].mxu0
      %v4229 = vadd.f32 %v3972, %v4228
      %v4230 = vpop.f32.mrb[0].mxu0
      %v4231 = vadd.f32 %v3974, %v4230
      %v4232 = vpop.f32.mrb[0].mxu0
      %v4233 = vadd.f32 %v3976, %v4232
      %4234 = vmatprep.mubr.bf16.mxu0 0
      %4235 = vmatmul.mubr.bf16.gmra.mrb[0].mxu0 %v3294
      %v4236 = vpop.f32.mrb[0].mxu0
      %v4237 = vadd.f32 %v3980, %v4236
      %v4238 = vpop.f32.mrb[0].mxu0
      %v4239 = vadd.f32 %v3982, %v4238
      %v4240 = vpop.f32.mrb[0].mxu0
      %v4241 = vpop.f32.mrb[0].mxu0
      %v4242 = vadd.f32 %v3985, %v4241
      %4243 = vdwg.mxu0
      %4244 = vmatprep.subr.bf16.mxu0 0
      %4245 = vmatpush1.bf16.msra.mxu0 %v3588
      %4246 = vmatprep.subr.bf16.mxu0 0
      %4247 = vmatpush1.bf16.msra.mxu0 %v3591
      %4248 = vmatprep.subr.bf16.mxu0 0
      %4249 = vmatpush1.bf16.msra.mxu0 %v3594
      %4250 = vmatprep.subr.bf16.mxu0 0
      %4251 = vmatpush1.bf16.msra.mxu0 %v3597
      %4252 = vmatprep.subr.bf16.mxu0 0
      %4253 = vmatpush1.bf16.msra.mxu0 %v3600
      %4254 = vmatprep.subr.bf16.mxu0 0
      %4255 = vmatpush1.bf16.msra.mxu0 %v3603
      %4256 = vmatprep.subr.bf16.mxu0 0
      %4257 = vmatpush1.bf16.msra.mxu0 %v3606
      %4258 = vmatprep.subr.bf16.mxu0 0
      %4259 = vmatpush1.bf16.msra.mxu0 %v3609
      %4260 = vmatprep.subr.bf16.mxu0 0
      %4261 = vmatpush1.bf16.msra.mxu0 %v3612
      %4262 = vmatprep.subr.bf16.mxu0 0
      %4263 = vmatpush1.bf16.msra.mxu0 %v3615
      %4264 = vmatprep.subr.bf16.mxu0 0
      %4265 = vmatpush1.bf16.msra.mxu0 %v3618
      %4266 = vmatprep.subr.bf16.mxu0 0
      %4267 = vmatpush1.bf16.msra.mxu0 %v3621
      %4268 = vmatprep.subr.bf16.mxu0 0
      %4269 = vmatpush1.bf16.msra.mxu0 %v3624
      %4270 = vmatprep.subr.bf16.mxu0 0
      %4271 = vmatpush1.bf16.msra.mxu0 %v3627
      %4272 = vmatprep.subr.bf16.mxu0 0
      %4273 = vmatpush1.bf16.msra.mxu0 %v3630
      %4274 = vmatprep.subr.bf16.mxu0 0
      %4275 = vmatpush1.bf16.msra.mxu0 %v3633
      %4276 = vmatprep.mubr.bf16.mxu0 %v3245
      %4277 = vmatmul.mubr.bf16.gmra.mrb[0].mxu0 %v3244
      %v4278 = vpop.f32.mrb[0].mxu0
      %v4279 = vadd.f32 0.0, %v4278
      %v4280 = vpop.f32.mrb[0].mxu0
      %v4281 = vpop.f32.mrb[0].mxu0
      %v4282 = vadd.f32 0.0, %v4281
      %v4283 = vpop.f32.mrb[0].mxu0
      %4284 = vmatprep.mubr.bf16.mxu0 %v3248
      %4285 = vmatmul.mubr.bf16.gmra.mrb[0].mxu0 %v3247
      %v4286 = vpop.f32.mrb[0].mxu0
      %v4287 = vadd.f32 0.0, %v4286
      %v4288 = vpop.f32.mrb[0].mxu0
      %v4289 = vpop.f32.mrb[0].mxu0
      %v4290 = vadd.f32 0.0, %v4289
      %v4291 = vpop.f32.mrb[0].mxu0
      %4292 = vmatprep.mubr.bf16.mxu0 %v3251
      %4293 = vmatmul.mubr.bf16.gmra.mrb[0].mxu0 %v3250
      %v4294 = vpop.f32.mrb[0].mxu0
      %v4295 = vadd.f32 0.0, %v4294
      %v4296 = vpop.f32.mrb[0].mxu0
      %v4297 = vpop.f32.mrb[0].mxu0
      %v4298 = vadd.f32 0.0, %v4297
      %v4299 = vpop.f32.mrb[0].mxu0
      %4300 = vmatprep.mubr.bf16.mxu0 %v3253
      %4301 = vmatmul.mubr.bf16.gmra.mrb[0].mxu0 %v3246
      %v4302 = vpop.f32.mrb[0].mxu0
      %v4303 = vadd.f32 0.0, %v4302
      %v4304 = vpop.f32.mrb[0].mxu0
      %v4305 = vpop.f32.mrb[0].mxu0
      %v4306 = vadd.f32 0.0, %v4305
      %v4307 = vpop.f32.mrb[0].mxu0
      %4308 = vmatprep.mubr.bf16.mxu0 %v3255
      %4309 = vmatmul.mubr.bf16.gmra.mrb[0].mxu0 %v3249
      %v4310 = vpop.f32.mrb[0].mxu0
      %v4311 = vadd.f32 0.0, %v4310
      %v4312 = vpop.f32.mrb[0].mxu0
      %v4313 = vpop.f32.mrb[0].mxu0
      %v4314 = vadd.f32 0.0, %v4313
      %v4315 = vpop.f32.mrb[0].mxu0
      %4316 = vmatprep.mubr.bf16.mxu0 %v3257
      %4317 = vmatmul.mubr.bf16.gmra.mrb[0].mxu0 %v3252
      %v4318 = vpop.f32.mrb[0].mxu0
      %v4319 = vadd.f32 0.0, %v4318
      %v4320 = vpop.f32.mrb[0].mxu0
      %v4321 = vpop.f32.mrb[0].mxu0
      %v4322 = vadd.f32 0.0, %v4321
      %v4323 = vpop.f32.mrb[0].mxu0
      %4324 = vmatprep.mubr.bf16.mxu0 %v3259
      %4325 = vmatmul.mubr.bf16.gmra.mrb[0].mxu0 %v3254
      %v4326 = vpop.f32.mrb[0].mxu0
      %v4327 = vadd.f32 0.0, %v4326
      %v4328 = vpop.f32.mrb[0].mxu0
      %v4329 = vpop.f32.mrb[0].mxu0
      %v4330 = vadd.f32 0.0, %v4329
      %v4331 = vpop.f32.mrb[0].mxu0
      %4332 = vmatprep.mubr.bf16.mxu0 %v3261
      %4333 = vmatmul.mubr.bf16.gmra.mrb[0].mxu0 %v3256
      %v4334 = vpop.f32.mrb[0].mxu0
      %v4335 = vadd.f32 0.0, %v4334
      %v4336 = vpop.f32.mrb[0].mxu0
      %v4337 = vpop.f32.mrb[0].mxu0
      %v4338 = vadd.f32 0.0, %v4337
      %v4339 = vpop.f32.mrb[0].mxu0
      %4340 = vmatprep.mubr.bf16.mxu0 %v3263
      %4341 = vmatmul.mubr.bf16.gmra.mrb[0].mxu0 %v3258
      %v4342 = vpop.f32.mrb[0].mxu0
      %v4343 = vadd.f32 0.0, %v4342
      %v4344 = vpop.f32.mrb[0].mxu0
      %v4345 = vpop.f32.mrb[0].mxu0
      %v4346 = vadd.f32 0.0, %v4345
      %v4347 = vpop.f32.mrb[0].mxu0
      %4348 = vmatprep.mubr.bf16.mxu0 %v3265
      %4349 = vmatmul.mubr.bf16.gmra.mrb[0].mxu0 %v3260
      %v4350 = vpop.f32.mrb[0].mxu0
      %v4351 = vadd.f32 0.0, %v4350
      %v4352 = vpop.f32.mrb[0].mxu0
      %v4353 = vpop.f32.mrb[0].mxu0
      %v4354 = vadd.f32 0.0, %v4353
      %v4355 = vpop.f32.mrb[0].mxu0
      %4356 = vmatprep.mubr.bf16.mxu0 %v3267
      %4357 = vmatmul.mubr.bf16.gmra.mrb[0].mxu0 %v3262
      %v4358 = vpop.f32.mrb[0].mxu0
      %v4359 = vadd.f32 0.0, %v4358
      %v4360 = vpop.f32.mrb[0].mxu0
      %v4361 = vpop.f32.mrb[0].mxu0
      %v4362 = vadd.f32 0.0, %v4361
      %v4363 = vpop.f32.mrb[0].mxu0
      %4364 = vmatprep.mubr.bf16.mxu0 %v3269
      %4365 = vmatmul.mubr.bf16.gmra.mrb[0].mxu0 %v3264
      %v4366 = vpop.f32.mrb[0].mxu0
      %v4367 = vadd.f32 0.0, %v4366
      %v4368 = vpop.f32.mrb[0].mxu0
      %v4369 = vpop.f32.mrb[0].mxu0
      %v4370 = vadd.f32 0.0, %v4369
      %v4371 = vpop.f32.mrb[0].mxu0
      %4372 = vmatprep.mubr.bf16.mxu0 %v3271
      %4373 = vmatmul.mubr.bf16.gmra.mrb[0].mxu0 %v3266
      %v4374 = vpop.f32.mrb[0].mxu0
      %v4375 = vadd.f32 0.0, %v4374
      %v4376 = vpop.f32.mrb[0].mxu0
      %v4377 = vpop.f32.mrb[0].mxu0
      %v4378 = vadd.f32 0.0, %v4377
      %v4379 = vpop.f32.mrb[0].mxu0
      %4380 = vmatprep.mubr.bf16.mxu0 %v3273
      %4381 = vmatmul.mubr.bf16.gmra.mrb[0].mxu0 %v3268
      %v4382 = vpop.f32.mrb[0].mxu0
      %v4383 = vadd.f32 0.0, %v4382
      %v4384 = vpop.f32.mrb[0].mxu0
      %v4385 = vpop.f32.mrb[0].mxu0
      %v4386 = vadd.f32 0.0, %v4385
      %v4387 = vpop.f32.mrb[0].mxu0
      %4388 = vmatprep.mubr.bf16.mxu0 %v3275
      %4389 = vmatmul.mubr.bf16.gmra.mrb[0].mxu0 %v3270
      %v4390 = vpop.f32.mrb[0].mxu0
      %v4391 = vadd.f32 0.0, %v4390
      %v4392 = vpop.f32.mrb[0].mxu0
      %v4393 = vpop.f32.mrb[0].mxu0
      %v4394 = vadd.f32 0.0, %v4393
      %v4395 = vpop.f32.mrb[0].mxu0
      %4396 = vmatprep.mubr.bf16.mxu0 %v3277
      %4397 = vmatmul.mubr.bf16.gmra.mrb[0].mxu0 %v3272
      %v4398 = vpop.f32.mrb[0].mxu0
      %v4399 = vadd.f32 0.0, %v4398
      %v4400 = vpop.f32.mrb[0].mxu0
      %v4401 = vpop.f32.mrb[0].mxu0
      %v4402 = vadd.f32 0.0, %v4401
      %v4403 = vpop.f32.mrb[0].mxu0
      %4404 = vmatprep.mubr.bf16.mxu0 %v3279
      %4405 = vmatmul.mubr.bf16.gmra.mrb[0].mxu0 %v3274
      %v4406 = vpop.f32.mrb[0].mxu0
      %v4407 = vadd.f32 0.0, %v4406
      %v4408 = vpop.f32.mrb[0].mxu0
      %v4409 = vpop.f32.mrb[0].mxu0
      %v4410 = vadd.f32 0.0, %v4409
      %v4411 = vpop.f32.mrb[0].mxu0
      %4412 = vmatprep.mubr.bf16.mxu0 %v3281
      %4413 = vmatmul.mubr.bf16.gmra.mrb[0].mxu0 %v3276
      %v4414 = vpop.f32.mrb[0].mxu0
      %v4415 = vadd.f32 0.0, %v4414
      %v4416 = vpop.f32.mrb[0].mxu0
      %v4417 = vpop.f32.mrb[0].mxu0
      %v4418 = vadd.f32 0.0, %v4417
      %v4419 = vpop.f32.mrb[0].mxu0
      %4420 = vmatprep.mubr.bf16.mxu0 %v3283
      %4421 = vmatmul.mubr.bf16.gmra.mrb[0].mxu0 %v3278
      %v4422 = vpop.f32.mrb[0].mxu0
      %v4423 = vadd.f32 0.0, %v4422
      %v4424 = vpop.f32.mrb[0].mxu0
      %v4425 = vpop.f32.mrb[0].mxu0
      %v4426 = vadd.f32 0.0, %v4425
      %v4427 = vpop.f32.mrb[0].mxu0
      %4428 = vmatprep.mubr.bf16.mxu0 %v3285
      %4429 = vmatmul.mubr.bf16.gmra.mrb[0].mxu0 %v3280
      %v4430 = vpop.f32.mrb[0].mxu0
      %v4431 = vadd.f32 0.0, %v4430
      %v4432 = vpop.f32.mrb[0].mxu0
      %v4433 = vpop.f32.mrb[0].mxu0
      %v4434 = vadd.f32 0.0, %v4433
      %v4435 = vpop.f32.mrb[0].mxu0
      %4436 = vmatprep.mubr.bf16.mxu0 %v3287
      %4437 = vmatmul.mubr.bf16.gmra.mrb[0].mxu0 %v3282
      %v4438 = vpop.f32.mrb[0].mxu0
      %v4439 = vadd.f32 0.0, %v4438
      %v4440 = vpop.f32.mrb[0].mxu0
      %v4441 = vpop.f32.mrb[0].mxu0
      %v4442 = vadd.f32 0.0, %v4441
      %v4443 = vpop.f32.mrb[0].mxu0
      %4444 = vmatprep.mubr.bf16.mxu0 %v3289
      %4445 = vmatmul.mubr.bf16.gmra.mrb[0].mxu0 %v3284
      %v4446 = vpop.f32.mrb[0].mxu0
      %v4447 = vadd.f32 0.0, %v4446
      %v4448 = vpop.f32.mrb[0].mxu0
      %v4449 = vpop.f32.mrb[0].mxu0
      %v4450 = vadd.f32 0.0, %v4449
      %v4451 = vpop.f32.mrb[0].mxu0
      %4452 = vmatprep.mubr.bf16.mxu0 %v3291
      %4453 = vmatmul.mubr.bf16.gmra.mrb[0].mxu0 %v3286
      %v4454 = vpop.f32.mrb[0].mxu0
      %v4455 = vadd.f32 0.0, %v4454
      %v4456 = vpop.f32.mrb[0].mxu0
      %v4457 = vpop.f32.mrb[0].mxu0
      %v4458 = vadd.f32 0.0, %v4457
      %v4459 = vpop.f32.mrb[0].mxu0
      %4460 = vmatprep.mubr.bf16.mxu0 %v3293
      %4461 = vmatmul.mubr.bf16.gmra.mrb[0].mxu0 %v3288
      %v4462 = vpop.f32.mrb[0].mxu0
      %v4463 = vadd.f32 0.0, %v4462
      %v4464 = vpop.f32.mrb[0].mxu0
      %v4465 = vpop.f32.mrb[0].mxu0
      %v4466 = vadd.f32 0.0, %v4465
      %v4467 = vpop.f32.mrb[0].mxu0
      %4468 = vdwg.mxu0
      %4469 = vmatprep.subr.bf16.mxu0 0
      %4470 = vmatpush1.bf16.msra.mxu0 %v3636
      %4471 = vmatprep.subr.bf16.mxu0 0
      %4472 = vmatpush1.bf16.msra.mxu0 %v3639
      %4473 = vmatprep.subr.bf16.mxu0 0
      %4474 = vmatpush1.bf16.msra.mxu0 %v3642
      %4475 = vmatprep.subr.bf16.mxu0 0
      %4476 = vmatpush1.bf16.msra.mxu0 %v3645
      %4477 = vmatprep.subr.bf16.mxu0 0
      %4478 = vmatpush1.bf16.msra.mxu0 %v3648
      %4479 = vmatprep.subr.bf16.mxu0 0
      %4480 = vmatpush1.bf16.msra.mxu0 %v3651
      %4481 = vmatprep.subr.bf16.mxu0 0
      %4482 = vmatpush1.bf16.msra.mxu0 %v3654
      %4483 = vmatprep.subr.bf16.mxu0 0
      %4484 = vmatpush1.bf16.msra.mxu0 %v3657
      %4485 = vmatprep.subr.bf16.mxu0 0
      %4486 = vmatpush1.bf16.msra.mxu0 0
      %4487 = vmatprep.subr.bf16.mxu0 0
      %4488 = vmatpush1.bf16.msra.mxu0 0
      %4489 = vmatprep.subr.bf16.mxu0 0
      %4490 = vmatpush1.bf16.msra.mxu0 0
      %4491 = vmatprep.subr.bf16.mxu0 0
      %4492 = vmatpush1.bf16.msra.mxu0 0
      %4493 = vmatprep.subr.bf16.mxu0 0
      %4494 = vmatpush1.bf16.msra.mxu0 0
      %4495 = vmatprep.subr.bf16.mxu0 0
      %4496 = vmatpush1.bf16.msra.mxu0 0
      %4497 = vmatprep.subr.bf16.mxu0 0
      %4498 = vmatpush1.bf16.msra.mxu0 0
      %4499 = vmatprep.subr.bf16.mxu0 0
      %4500 = vmatpush1.bf16.msra.mxu0 0
      %4501 = vmatprep.mubr.bf16.mxu0 0
      %4502 = vmatmul.mubr.bf16.gmra.mrb[0].mxu0 %v3246
      %v4503 = vpop.f32.mrb[0].mxu0
      %v4504 = vadd.f32 %v4279, %v4503
      %v4505 = vpop.f32.mrb[0].mxu0
      %v4506 = vpop.f32.mrb[0].mxu0
      %v4507 = vadd.f32 %v4282, %v4506
      %v4508 = vpop.f32.mrb[0].mxu0
      %4509 = vmatprep.mubr.bf16.mxu0 0
      %4510 = vmatmul.mubr.bf16.gmra.mrb[0].mxu0 %v3249
      %v4511 = vpop.f32.mrb[0].mxu0
      %v4512 = vadd.f32 %v4287, %v4511
      %v4513 = vpop.f32.mrb[0].mxu0
      %v4514 = vpop.f32.mrb[0].mxu0
      %v4515 = vadd.f32 %v4290, %v4514
      %v4516 = vpop.f32.mrb[0].mxu0
      %4517 = vmatprep.mubr.bf16.mxu0 0
      %4518 = vmatmul.mubr.bf16.gmra.mrb[0].mxu0 %v3252
      %v4519 = vpop.f32.mrb[0].mxu0
      %v4520 = vadd.f32 %v4295, %v4519
      %v4521 = vpop.f32.mrb[0].mxu0
      %v4522 = vpop.f32.mrb[0].mxu0
      %v4523 = vadd.f32 %v4298, %v4522
      %v4524 = vpop.f32.mrb[0].mxu0
      %4525 = vmatprep.mubr.bf16.mxu0 0
      %4526 = vmatmul.mubr.bf16.gmra.mrb[0].mxu0 %v3254
      %v4527 = vpop.f32.mrb[0].mxu0
      %v4528 = vadd.f32 %v4303, %v4527
      %v4529 = vpop.f32.mrb[0].mxu0
      %v4530 = vpop.f32.mrb[0].mxu0
      %v4531 = vadd.f32 %v4306, %v4530
      %v4532 = vpop.f32.mrb[0].mxu0
      %4533 = vmatprep.mubr.bf16.mxu0 0
      %4534 = vmatmul.mubr.bf16.gmra.mrb[0].mxu0 %v3256
      %v4535 = vpop.f32.mrb[0].mxu0
      %v4536 = vadd.f32 %v4311, %v4535
      %v4537 = vpop.f32.mrb[0].mxu0
      %v4538 = vpop.f32.mrb[0].mxu0
      %v4539 = vadd.f32 %v4314, %v4538
      %v4540 = vpop.f32.mrb[0].mxu0
      %4541 = vmatprep.mubr.bf16.mxu0 0
      %4542 = vmatmul.mubr.bf16.gmra.mrb[0].mxu0 %v3258
      %v4543 = vpop.f32.mrb[0].mxu0
      %v4544 = vadd.f32 %v4319, %v4543
      %v4545 = vpop.f32.mrb[0].mxu0
      %v4546 = vpop.f32.mrb[0].mxu0
      %v4547 = vadd.f32 %v4322, %v4546
      %v4548 = vpop.f32.mrb[0].mxu0
      %4549 = vmatprep.mubr.bf16.mxu0 0
      %4550 = vmatmul.mubr.bf16.gmra.mrb[0].mxu0 %v3260
      %v4551 = vpop.f32.mrb[0].mxu0
      %v4552 = vadd.f32 %v4327, %v4551
      %v4553 = vpop.f32.mrb[0].mxu0
      %v4554 = vpop.f32.mrb[0].mxu0
      %v4555 = vadd.f32 %v4330, %v4554
      %v4556 = vpop.f32.mrb[0].mxu0
      %4557 = vmatprep.mubr.bf16.mxu0 0
      %4558 = vmatmul.mubr.bf16.gmra.mrb[0].mxu0 %v3262
      %v4559 = vpop.f32.mrb[0].mxu0
      %v4560 = vadd.f32 %v4335, %v4559
      %v4561 = vpop.f32.mrb[0].mxu0
      %v4562 = vpop.f32.mrb[0].mxu0
      %v4563 = vadd.f32 %v4338, %v4562
      %v4564 = vpop.f32.mrb[0].mxu0
      %4565 = vmatprep.mubr.bf16.mxu0 0
      %4566 = vmatmul.mubr.bf16.gmra.mrb[0].mxu0 %v3264
      %v4567 = vpop.f32.mrb[0].mxu0
      %v4568 = vadd.f32 %v4343, %v4567
      %v4569 = vpop.f32.mrb[0].mxu0
      %v4570 = vpop.f32.mrb[0].mxu0
      %v4571 = vadd.f32 %v4346, %v4570
      %v4572 = vpop.f32.mrb[0].mxu0
      %4573 = vmatprep.mubr.bf16.mxu0 0
      %4574 = vmatmul.mubr.bf16.gmra.mrb[0].mxu0 %v3266
      %v4575 = vpop.f32.mrb[0].mxu0
      %v4576 = vadd.f32 %v4351, %v4575
      %v4577 = vpop.f32.mrb[0].mxu0
      %v4578 = vpop.f32.mrb[0].mxu0
      %v4579 = vadd.f32 %v4354, %v4578
      %v4580 = vpop.f32.mrb[0].mxu0
      %4581 = vmatprep.mubr.bf16.mxu0 0
      %4582 = vmatmul.mubr.bf16.gmra.mrb[0].mxu0 %v3268
      %v4583 = vpop.f32.mrb[0].mxu0
      %v4584 = vadd.f32 %v4359, %v4583
      %v4585 = vpop.f32.mrb[0].mxu0
      %v4586 = vpop.f32.mrb[0].mxu0
      %v4587 = vadd.f32 %v4362, %v4586
      %v4588 = vpop.f32.mrb[0].mxu0
      %4589 = vmatprep.mubr.bf16.mxu0 0
      %4590 = vmatmul.mubr.bf16.gmra.mrb[0].mxu0 %v3270
      %v4591 = vpop.f32.mrb[0].mxu0
      %v4592 = vadd.f32 %v4367, %v4591
      %v4593 = vpop.f32.mrb[0].mxu0
      %v4594 = vpop.f32.mrb[0].mxu0
      %v4595 = vadd.f32 %v4370, %v4594
      %v4596 = vpop.f32.mrb[0].mxu0
      %4597 = vmatprep.mubr.bf16.mxu0 0
      %4598 = vmatmul.mubr.bf16.gmra.mrb[0].mxu0 %v3272
      %v4599 = vpop.f32.mrb[0].mxu0
      %v4600 = vadd.f32 %v4375, %v4599
      %v4601 = vpop.f32.mrb[0].mxu0
      %v4602 = vpop.f32.mrb[0].mxu0
      %v4603 = vadd.f32 %v4378, %v4602
      %v4604 = vpop.f32.mrb[0].mxu0
      %4605 = vmatprep.mubr.bf16.mxu0 0
      %4606 = vmatmul.mubr.bf16.gmra.mrb[0].mxu0 %v3274
      %v4607 = vpop.f32.mrb[0].mxu0
      %v4608 = vadd.f32 %v4383, %v4607
      %v4609 = vpop.f32.mrb[0].mxu0
      %v4610 = vpop.f32.mrb[0].mxu0
      %v4611 = vadd.f32 %v4386, %v4610
      %v4612 = vpop.f32.mrb[0].mxu0
      %4613 = vmatprep.mubr.bf16.mxu0 0
      %4614 = vmatmul.mubr.bf16.gmra.mrb[0].mxu0 %v3276
      %v4615 = vpop.f32.mrb[0].mxu0
      %v4616 = vadd.f32 %v4391, %v4615
      %v4617 = vpop.f32.mrb[0].mxu0
      %v4618 = vpop.f32.mrb[0].mxu0
      %v4619 = vadd.f32 %v4394, %v4618
      %v4620 = vpop.f32.mrb[0].mxu0
      %4621 = vmatprep.mubr.bf16.mxu0 0
      %4622 = vmatmul.mubr.bf16.gmra.mrb[0].mxu0 %v3278
      %v4623 = vpop.f32.mrb[0].mxu0
      %v4624 = vadd.f32 %v4399, %v4623
      %v4625 = vpop.f32.mrb[0].mxu0
      %v4626 = vpop.f32.mrb[0].mxu0
      %v4627 = vadd.f32 %v4402, %v4626
      %v4628 = vpop.f32.mrb[0].mxu0
      %4629 = vmatprep.mubr.bf16.mxu0 0
      %4630 = vmatmul.mubr.bf16.gmra.mrb[0].mxu0 %v3280
      %v4631 = vpop.f32.mrb[0].mxu0
      %v4632 = vadd.f32 %v4407, %v4631
      %v4633 = vpop.f32.mrb[0].mxu0
      %v4634 = vpop.f32.mrb[0].mxu0
      %v4635 = vadd.f32 %v4410, %v4634
      %v4636 = vpop.f32.mrb[0].mxu0
      %4637 = vmatprep.mubr.bf16.mxu0 0
      %4638 = vmatmul.mubr.bf16.gmra.mrb[0].mxu0 %v3282
      %v4639 = vpop.f32.mrb[0].mxu0
      %v4640 = vadd.f32 %v4415, %v4639
      %v4641 = vpop.f32.mrb[0].mxu0
      %v4642 = vpop.f32.mrb[0].mxu0
      %v4643 = vadd.f32 %v4418, %v4642
      %v4644 = vpop.f32.mrb[0].mxu0
      %4645 = vmatprep.mubr.bf16.mxu0 0
      %4646 = vmatmul.mubr.bf16.gmra.mrb[0].mxu0 %v3284
      %v4647 = vpop.f32.mrb[0].mxu0
      %v4648 = vadd.f32 %v4423, %v4647
      %v4649 = vpop.f32.mrb[0].mxu0
      %v4650 = vpop.f32.mrb[0].mxu0
      %v4651 = vadd.f32 %v4426, %v4650
      %v4652 = vpop.f32.mrb[0].mxu0
      %4653 = vmatprep.mubr.bf16.mxu0 0
      %4654 = vmatmul.mubr.bf16.gmra.mrb[0].mxu0 %v3286
      %v4655 = vpop.f32.mrb[0].mxu0
      %v4656 = vadd.f32 %v4431, %v4655
      %v4657 = vpop.f32.mrb[0].mxu0
      %v4658 = vpop.f32.mrb[0].mxu0
      %v4659 = vadd.f32 %v4434, %v4658
      %v4660 = vpop.f32.mrb[0].mxu0
      %4661 = vmatprep.mubr.bf16.mxu0 0
      %4662 = vmatmul.mubr.bf16.gmra.mrb[0].mxu0 %v3288
      %v4663 = vpop.f32.mrb[0].mxu0
      %v4664 = vadd.f32 %v4439, %v4663
      %v4665 = vpop.f32.mrb[0].mxu0
      %v4666 = vpop.f32.mrb[0].mxu0
      %v4667 = vadd.f32 %v4442, %v4666
      %v4668 = vpop.f32.mrb[0].mxu0
      %4669 = vmatprep.mubr.bf16.mxu0 0
      %4670 = vmatmul.mubr.bf16.gmra.mrb[0].mxu0 %v3290
      %v4671 = vpop.f32.mrb[0].mxu0
      %v4672 = vadd.f32 %v4447, %v4671
      %v4673 = vpop.f32.mrb[0].mxu0
      %v4674 = vpop.f32.mrb[0].mxu0
      %v4675 = vadd.f32 %v4450, %v4674
      %v4676 = vpop.f32.mrb[0].mxu0
      %4677 = vmatprep.mubr.bf16.mxu0 0
      %4678 = vmatmul.mubr.bf16.gmra.mrb[0].mxu0 %v3292
      %v4679 = vpop.f32.mrb[0].mxu0
      %v4680 = vadd.f32 %v4455, %v4679
      %v4681 = vpop.f32.mrb[0].mxu0
      %v4682 = vpop.f32.mrb[0].mxu0
      %v4683 = vadd.f32 %v4458, %v4682
      %v4684 = vpop.f32.mrb[0].mxu0
      %4685 = vmatprep.mubr.bf16.mxu0 0
      %4686 = vmatmul.mubr.bf16.gmra.mrb[0].mxu0 %v3294
      %v4687 = vpop.f32.mrb[0].mxu0
      %v4688 = vadd.f32 %v4463, %v4687
      %v4689 = vpop.f32.mrb[0].mxu0
      %v4690 = vpop.f32.mrb[0].mxu0
      %v4691 = vadd.f32 %v4466, %v4690
      %v4692 = vpop.f32.mrb[0].mxu0
      %4693 = vdwg.mxu0
      %v4742 = vrot.slane %v4024, 1
      %v4743 = vrot.slane %v4028, 1
      %v4744 = vsel %vm1990, %v4742, %v4743
      %v4745 = vrot.slane %v4033, 1
      %v4746 = vsel %vm1990, %v4743, %v4745
      %v4747 = vrot.slane %v4037, 1
      %v4748 = vrot.slane %v4043, 1
      %v4749 = vsel %vm1990, %v4747, %v4748
      %v4750 = vrot.slane %v4046, 1
      %v4751 = vsel %vm1990, %v4748, %v4750
      %v4752 = vrot.slane %v4052, 1
      %v4753 = vrot.slane %v4056, 1
      %v4754 = vsel %vm1990, %v4752, %v4753
      %v4755 = vrot.slane %v4061, 1
      %v4756 = vsel %vm1990, %v4753, %v4755
      %v4757 = vrot.slane %v4065, 1
      %v4758 = vrot.slane %v4071, 1
      %v4759 = vsel %vm1990, %v4757, %v4758
      %v4760 = vrot.slane %v4074, 1
      %v4761 = vsel %vm1990, %v4758, %v4760
      %v4762 = vrot.slane %v4080, 1
      %v4763 = vrot.slane %v4084, 1
      %v4764 = vsel %vm1990, %v4762, %v4763
      %v4765 = vrot.slane %v4089, 1
      %v4766 = vsel %vm1990, %v4763, %v4765
      %v4767 = vrot.slane %v4093, 1
      %v4768 = vrot.slane %v4099, 1
      %v4769 = vsel %vm1990, %v4767, %v4768
      %v4770 = vrot.slane %v4102, 1
      %v4771 = vsel %vm1990, %v4768, %v4770
      %v4772 = vrot.slane %v4108, 1
      %v4773 = vrot.slane %v4112, 1
      %v4774 = vsel %vm1990, %v4772, %v4773
      %v4775 = vrot.slane %v4117, 1
      %v4776 = vsel %vm1990, %v4773, %v4775
      %v4777 = vrot.slane %v4121, 1
      %v4778 = vrot.slane %v4127, 1
      %v4779 = vsel %vm1990, %v4777, %v4778
      %v4780 = vrot.slane %v4130, 1
      %v4781 = vsel %vm1990, %v4778, %v4780
      %v4782 = vrot.slane %v4136, 1
      %v4783 = vrot.slane %v4140, 1
      %v4784 = vsel %vm1990, %v4782, %v4783
      %v4785 = vrot.slane %v4145, 1
      %v4786 = vsel %vm1990, %v4783, %v4785
      %v4787 = vrot.slane %v4149, 1
      %v4788 = vrot.slane %v4155, 1
      %v4789 = vsel %vm1990, %v4787, %v4788
      %v4790 = vrot.slane %v4158, 1
      %v4791 = vsel %vm1990, %v4788, %v4790
      %v4792 = vrot.slane %v4164, 1
      %v4793 = vrot.slane %v4168, 1
      %v4794 = vsel %vm1990, %v4792, %v4793
      %v4795 = vrot.slane %v4173, 1
      %v4796 = vsel %vm1990, %v4793, %v4795
      %v4797 = vrot.slane %v4177, 1
      %v4798 = vrot.slane %v4183, 1
      %v4799 = vsel %vm1990, %v4797, %v4798
      %v4800 = vrot.slane %v4186, 1
      %v4801 = vsel %vm1990, %v4798, %v4800
      %v4802 = vrot.slane %v4192, 1
      %v4803 = vrot.slane %v4196, 1
      %v4804 = vsel %vm1990, %v4802, %v4803
      %v4805 = vrot.slane %v4201, 1
      %v4806 = vsel %vm1990, %v4803, %v4805
      %v4807 = vrot.slane %v4205, 1
      %v4808 = vrot.slane %v4211, 1
      %v4809 = vsel %vm1990, %v4807, %v4808
      %v4810 = vrot.slane %v4214, 1
      %v4811 = vsel %vm1990, %v4808, %v4810
      %v4812 = vrot.slane %v4220, 1
      %v4813 = vrot.slane %v4224, 1
      %v4814 = vsel %vm1990, %v4812, %v4813
      %v4815 = vrot.slane %v4229, 1
      %v4816 = vsel %vm1990, %v4813, %v4815
      %v4817 = vrot.slane %v4233, 1
      %v4818 = vrot.slane %v4239, 1
      %v4819 = vsel %vm1990, %v4817, %v4818
      %v4820 = vrot.slane %v4242, 1
      %v4821 = vsel %vm1990, %v4818, %v4820
      %v4854 = vadd.f32 %v4022, %v4744
      %v4855 = vadd.f32 %v4026, %v4746
      %v4856 = vadd.f32 %v4035, %v4749
      %v4857 = vadd.f32 %v4041, %v4751
      %v4858 = vadd.f32 %v4050, %v4754
      %v4859 = vadd.f32 %v4054, %v4756
      %v4860 = vadd.f32 %v4063, %v4759
      %v4861 = vadd.f32 %v4069, %v4761
      %v4862 = vadd.f32 %v4078, %v4764
      %v4863 = vadd.f32 %v4082, %v4766
      %v4864 = vadd.f32 %v4091, %v4769
      %v4865 = vadd.f32 %v4097, %v4771
      %v4866 = vadd.f32 %v4106, %v4774
      %v4867 = vadd.f32 %v4110, %v4776
      %v4868 = vadd.f32 %v4119, %v4779
      %v4869 = vadd.f32 %v4125, %v4781
      %v4870 = vadd.f32 %v4134, %v4784
      %v4871 = vadd.f32 %v4138, %v4786
      %v4872 = vadd.f32 %v4147, %v4789
      %v4873 = vadd.f32 %v4153, %v4791
      %v4874 = vadd.f32 %v4162, %v4794
      %v4875 = vadd.f32 %v4166, %v4796
      %v4876 = vadd.f32 %v4175, %v4799
      %v4877 = vadd.f32 %v4181, %v4801
      %v4878 = vadd.f32 %v4190, %v4804
      %v4879 = vadd.f32 %v4194, %v4806
      %v4880 = vadd.f32 %v4203, %v4809
      %v4881 = vadd.f32 %v4209, %v4811
      %v4882 = vadd.f32 %v4218, %v4814
      %v4883 = vadd.f32 %v4222, %v4816
      %v4884 = vadd.f32 %v4231, %v4819
      %v4885 = vadd.f32 %v4237, %v4821
      %v4934 = vrot.slane %v4504, 2
      %v4935 = vrot.slane %v4507, 2
      %v4936 = vsel %vm2183, %v4934, %v4935
      %v4937 = vrot.slane %v4512, 2
      %v4938 = vsel %vm2183, %v4935, %v4937
      %v4939 = vrot.slane %v4515, 2
      %v4940 = vrot.slane %v4520, 2
      %v4941 = vsel %vm2183, %v4939, %v4940
      %v4942 = vrot.slane %v4523, 2
      %v4943 = vsel %vm2183, %v4940, %v4942
      %v4944 = vrot.slane %v4528, 2
      %v4945 = vrot.slane %v4531, 2
      %v4946 = vsel %vm2183, %v4944, %v4945
      %v4947 = vrot.slane %v4536, 2
      %v4948 = vsel %vm2183, %v4945, %v4947
      %v4949 = vrot.slane %v4539, 2
      %v4950 = vrot.slane %v4544, 2
      %v4951 = vsel %vm2183, %v4949, %v4950
      %v4952 = vrot.slane %v4547, 2
      %v4953 = vsel %vm2183, %v4950, %v4952
      %v4954 = vrot.slane %v4552, 2
      %v4955 = vrot.slane %v4555, 2
      %v4956 = vsel %vm2183, %v4954, %v4955
      %v4957 = vrot.slane %v4560, 2
      %v4958 = vsel %vm2183, %v4955, %v4957
      %v4959 = vrot.slane %v4563, 2
      %v4960 = vrot.slane %v4568, 2
      %v4961 = vsel %vm2183, %v4959, %v4960
      %v4962 = vrot.slane %v4571, 2
      %v4963 = vsel %vm2183, %v4960, %v4962
      %v4964 = vrot.slane %v4576, 2
      %v4965 = vrot.slane %v4579, 2
      %v4966 = vsel %vm2183, %v4964, %v4965
      %v4967 = vrot.slane %v4584, 2
      %v4968 = vsel %vm2183, %v4965, %v4967
      %v4969 = vrot.slane %v4587, 2
      %v4970 = vrot.slane %v4592, 2
      %v4971 = vsel %vm2183, %v4969, %v4970
      %v4972 = vrot.slane %v4595, 2
      %v4973 = vsel %vm2183, %v4970, %v4972
      %v4974 = vrot.slane %v4600, 2
      %v4975 = vrot.slane %v4603, 2
      %v4976 = vsel %vm2183, %v4974, %v4975
      %v4977 = vrot.slane %v4608, 2
      %v4978 = vsel %vm2183, %v4975, %v4977
      %v4979 = vrot.slane %v4611, 2
      %v4980 = vrot.slane %v4616, 2
      %v4981 = vsel %vm2183, %v4979, %v4980
      %v4982 = vrot.slane %v4619, 2
      %v4983 = vsel %vm2183, %v4980, %v4982
      %v4984 = vrot.slane %v4624, 2
      %v4985 = vrot.slane %v4627, 2
      %v4986 = vsel %vm2183, %v4984, %v4985
      %v4987 = vrot.slane %v4632, 2
      %v4988 = vsel %vm2183, %v4985, %v4987
      %v4989 = vrot.slane %v4635, 2
      %v4990 = vrot.slane %v4640, 2
      %v4991 = vsel %vm2183, %v4989, %v4990
      %v4992 = vrot.slane %v4643, 2
      %v4993 = vsel %vm2183, %v4990, %v4992
      %v4994 = vrot.slane %v4648, 2
      %v4995 = vrot.slane %v4651, 2
      %v4996 = vsel %vm2183, %v4994, %v4995
      %v4997 = vrot.slane %v4656, 2
      %v4998 = vsel %vm2183, %v4995, %v4997
      %v4999 = vrot.slane %v4659, 2
      %v5000 = vrot.slane %v4664, 2
      %v5001 = vsel %vm2183, %v4999, %v5000
      %v5002 = vrot.slane %v4667, 2
      %v5003 = vsel %vm2183, %v5000, %v5002
      %v5004 = vrot.slane %v4672, 2
      %v5005 = vrot.slane %v4675, 2
      %v5006 = vsel %vm2183, %v5004, %v5005
      %v5007 = vrot.slane %v4680, 2
      %v5008 = vsel %vm2183, %v5005, %v5007
      %v5009 = vrot.slane %v4683, 2
      %v5010 = vrot.slane %v4688, 2
      %v5011 = vsel %vm2183, %v5009, %v5010
      %v5012 = vrot.slane %v4691, 2
      %v5013 = vsel %vm2183, %v5010, %v5012
      %v5046 = vadd.f32 %v4854, %v4936
      %v5047 = vadd.f32 %v4855, %v4938
      %v5048 = vadd.f32 %v4856, %v4941
      %v5049 = vadd.f32 %v4857, %v4943
      %v5050 = vadd.f32 %v4858, %v4946
      %v5051 = vadd.f32 %v4859, %v4948
      %v5052 = vadd.f32 %v4860, %v4951
      %v5053 = vadd.f32 %v4861, %v4953
      %v5054 = vadd.f32 %v4862, %v4956
      %v5055 = vadd.f32 %v4863, %v4958
      %v5056 = vadd.f32 %v4864, %v4961
      %v5057 = vadd.f32 %v4865, %v4963
      %v5058 = vadd.f32 %v4866, %v4966
      %v5059 = vadd.f32 %v4867, %v4968
      %v5060 = vadd.f32 %v4868, %v4971
      %v5061 = vadd.f32 %v4869, %v4973
      %v5062 = vadd.f32 %v4870, %v4976
      %v5063 = vadd.f32 %v4871, %v4978
      %v5064 = vadd.f32 %v4872, %v4981
      %v5065 = vadd.f32 %v4873, %v4983
      %v5066 = vadd.f32 %v4874, %v4986
      %v5067 = vadd.f32 %v4875, %v4988
      %v5068 = vadd.f32 %v4876, %v4991
      %v5069 = vadd.f32 %v4877, %v4993
      %v5070 = vadd.f32 %v4878, %v4996
      %v5071 = vadd.f32 %v4879, %v4998
      %v5072 = vadd.f32 %v4880, %v5001
      %v5073 = vadd.f32 %v4881, %v5003
      %v5074 = vadd.f32 %v4882, %v5006
      %v5075 = vadd.f32 %v4883, %v5008
      %v5076 = vadd.f32 %v4884, %v5011
      %v5077 = vadd.f32 %v4885, %v5013
      %v5079 = vlaneseq
      %v5080 = vshrl.u32 %v5079, 7
      %v5081 = vsub.s32 0, %v5080
      %v5082 = vrot.slane %v3135, %v5081
      %v5084 = vadd.f32 %v5046, %v5082
      %v5085 = vadd.f32 %v5047, %v5082
      %v5086 = vadd.f32 %v5048, %v5082
      %v5087 = vadd.f32 %v5049, %v5082
      %v5088 = vadd.f32 %v5050, %v5082
      %v5089 = vadd.f32 %v5051, %v5082
      %v5090 = vadd.f32 %v5052, %v5082
      %v5091 = vadd.f32 %v5053, %v5082
      %v5092 = vadd.f32 %v5054, %v5082
      %v5093 = vadd.f32 %v5055, %v5082
      %v5094 = vadd.f32 %v5056, %v5082
      %v5095 = vadd.f32 %v5057, %v5082
      %v5096 = vadd.f32 %v5058, %v5082
      %v5097 = vadd.f32 %v5059, %v5082
      %v5098 = vadd.f32 %v5060, %v5082
      %v5099 = vadd.f32 %v5061, %v5082
      %v5100 = vadd.f32 %v5062, %v5082
      %v5101 = vadd.f32 %v5063, %v5082
      %v5102 = vadd.f32 %v5064, %v5082
      %v5103 = vadd.f32 %v5065, %v5082
      %v5104 = vadd.f32 %v5066, %v5082
      %v5105 = vadd.f32 %v5067, %v5082
      %v5106 = vadd.f32 %v5068, %v5082
      %v5107 = vadd.f32 %v5069, %v5082
      %v5108 = vadd.f32 %v5070, %v5082
      %v5109 = vadd.f32 %v5071, %v5082
      %v5110 = vadd.f32 %v5072, %v5082
      %v5111 = vadd.f32 %v5073, %v5082
      %v5112 = vadd.f32 %v5074, %v5082
      %v5113 = vadd.f32 %v5075, %v5082
      %v5114 = vadd.f32 %v5076, %v5082
      %v5115 = vadd.f32 %v5077, %v5082
      %v5116 = vmax.f32 %v5084, 0.0
      %v5117 = vmax.f32 %v5085, 0.0
      %v5118 = vmax.f32 %v5086, 0.0
      %v5119 = vmax.f32 %v5087, 0.0
      %v5120 = vmax.f32 %v5088, 0.0
      %v5121 = vmax.f32 %v5089, 0.0
      %v5122 = vmax.f32 %v5090, 0.0
      %v5123 = vmax.f32 %v5091, 0.0
      %v5124 = vmax.f32 %v5092, 0.0
      %v5125 = vmax.f32 %v5093, 0.0
      %v5126 = vmax.f32 %v5094, 0.0
      %v5127 = vmax.f32 %v5095, 0.0
      %v5128 = vmax.f32 %v5096, 0.0
      %v5129 = vmax.f32 %v5097, 0.0
      %v5130 = vmax.f32 %v5098, 0.0
      %v5131 = vmax.f32 %v5099, 0.0
      %v5132 = vmax.f32 %v5100, 0.0
      %v5133 = vmax.f32 %v5101, 0.0
      %v5134 = vmax.f32 %v5102, 0.0
      %v5135 = vmax.f32 %v5103, 0.0
      %v5136 = vmax.f32 %v5104, 0.0
      %v5137 = vmax.f32 %v5105, 0.0
      %v5138 = vmax.f32 %v5106, 0.0
      %v5139 = vmax.f32 %v5107, 0.0
      %v5140 = vmax.f32 %v5108, 0.0
      %v5141 = vmax.f32 %v5109, 0.0
      %v5142 = vmax.f32 %v5110, 0.0
      %v5143 = vmax.f32 %v5111, 0.0
      %v5144 = vmax.f32 %v5112, 0.0
      %v5145 = vmax.f32 %v5113, 0.0
      %v5146 = vmax.f32 %v5114, 0.0
      %v5147 = vmax.f32 %v5115, 0.0
      %v5148 = vpack.c.bf16 %v5117, %v5116
      %v5149 = vpack.c.bf16 %v5119, %v5118
      %v5150 = vpack.c.bf16 %v5121, %v5120
      %v5151 = vpack.c.bf16 %v5123, %v5122
      %v5152 = vpack.c.bf16 %v5125, %v5124
      %v5153 = vpack.c.bf16 %v5127, %v5126
      %v5154 = vpack.c.bf16 %v5129, %v5128
      %v5155 = vpack.c.bf16 %v5131, %v5130
      %v5156 = vpack.c.bf16 %v5133, %v5132
      %v5157 = vpack.c.bf16 %v5135, %v5134
      %v5158 = vpack.c.bf16 %v5137, %v5136
      %v5159 = vpack.c.bf16 %v5139, %v5138
      %v5160 = vpack.c.bf16 %v5141, %v5140
      %v5161 = vpack.c.bf16 %v5143, %v5142
      %v5162 = vpack.c.bf16 %v5145, %v5144
      %v5163 = vpack.c.bf16 %v5147, %v5146
      %v5180 = vunpack.c.l.b16 %v5148
      %v5181 = vunpack.c.h.b16 %v5148
      %v5182 = vunpack.c.l.b16 %v5149
      %v5183 = vunpack.c.h.b16 %v5149
      %v5184 = vunpack.c.l.b16 %v5150
      %v5185 = vunpack.c.h.b16 %v5150
      %v5186 = vunpack.c.l.b16 %v5151
      %v5187 = vunpack.c.h.b16 %v5151
      %v5188 = vunpack.c.l.b16 %v5152
      %v5189 = vunpack.c.h.b16 %v5152
      %v5190 = vunpack.c.l.b16 %v5153
      %v5191 = vunpack.c.h.b16 %v5153
      %v5192 = vunpack.c.l.b16 %v5154
      %v5193 = vunpack.c.h.b16 %v5154
      %v5194 = vunpack.c.l.b16 %v5155
      %v5195 = vunpack.c.h.b16 %v5155
      %v5196 = vunpack.c.l.b16 %v5156
      %v5197 = vunpack.c.h.b16 %v5156
      %v5198 = vunpack.c.l.b16 %v5157
      %v5199 = vunpack.c.h.b16 %v5157
      %v5200 = vunpack.c.l.b16 %v5158
      %v5201 = vunpack.c.h.b16 %v5158
      %v5202 = vunpack.c.l.b16 %v5159
      %v5203 = vunpack.c.h.b16 %v5159
      %v5204 = vunpack.c.l.b16 %v5160
      %v5205 = vunpack.c.h.b16 %v5160
      %v5206 = vunpack.c.l.b16 %v5161
      %v5207 = vunpack.c.h.b16 %v5161
      %v5208 = vunpack.c.l.b16 %v5162
      %v5209 = vunpack.c.h.b16 %v5162
      %v5210 = vunpack.c.l.b16 %v5163
      %v5211 = vunpack.c.h.b16 %v5163
      %v5212 = vpack.c.b16 %v5180, %v5180
      %v5213 = vpack.c.b16 %v5181, %v5181
      %v5214 = vpack.c.b16 %v5182, %v5182
      %v5215 = vpack.c.b16 %v5183, %v5183
      %v5216 = vpack.c.b16 %v5184, %v5184
      %v5217 = vpack.c.b16 %v5185, %v5185
      %v5218 = vpack.c.b16 %v5186, %v5186
      %v5219 = vpack.c.b16 %v5187, %v5187
      %v5220 = vpack.c.b16 %v5188, %v5188
      %v5221 = vpack.c.b16 %v5189, %v5189
      %v5222 = vpack.c.b16 %v5190, %v5190
      %v5223 = vpack.c.b16 %v5191, %v5191
      %v5224 = vpack.c.b16 %v5192, %v5192
      %v5225 = vpack.c.b16 %v5193, %v5193
      %v5226 = vpack.c.b16 %v5194, %v5194
      %v5227 = vpack.c.b16 %v5195, %v5195
      %v5228 = vpack.c.b16 %v5196, %v5196
      %v5229 = vpack.c.b16 %v5197, %v5197
      %v5230 = vpack.c.b16 %v5198, %v5198
      %v5231 = vpack.c.b16 %v5199, %v5199
      %v5232 = vpack.c.b16 %v5200, %v5200
      %v5233 = vpack.c.b16 %v5201, %v5201
      %v5234 = vpack.c.b16 %v5202, %v5202
      %v5235 = vpack.c.b16 %v5203, %v5203
      %v5236 = vpack.c.b16 %v5204, %v5204
      %v5237 = vpack.c.b16 %v5205, %v5205
      %v5238 = vpack.c.b16 %v5206, %v5206
      %v5239 = vpack.c.b16 %v5207, %v5207
      %v5240 = vpack.c.b16 %v5208, %v5208
      %v5241 = vpack.c.b16 %v5209, %v5209
      %v5242 = vpack.c.b16 %v5210, %v5210
      %v5243 = vpack.c.b16 %v5211, %v5211
      %5276 = vst [vmem:[%s224] sm:$0xf] %v5212
      %5277 = vst [vmem:[%s224 + $0x4] sm:$0xf] %v5213
      %5278 = vst [vmem:[%s224 + $0x8] sm:$0xf] %v5214
      %5279 = vst [vmem:[%s224 + $0xc] sm:$0xf] %v5215
      %5280 = vst [vmem:[%s224 + $0x10] sm:$0xf] %v5216
      %5281 = vst [vmem:[%s224 + $0x14] sm:$0xf] %v5217
      %5282 = vst [vmem:[%s224 + $0x18] sm:$0xf] %v5218
      %5283 = vst [vmem:[%s224 + $0x1c] sm:$0xf] %v5219
      %5284 = vst [vmem:[%s224 + $0x20] sm:$0xf] %v5220
      %5285 = vst [vmem:[%s224 + $0x24] sm:$0xf] %v5221
      %5286 = vst [vmem:[%s224 + $0x28] sm:$0xf] %v5222
      %5287 = vst [vmem:[%s224 + $0x2c] sm:$0xf] %v5223
      %5288 = vst [vmem:[%s224 + $0x30] sm:$0xf] %v5224
      %5289 = vst [vmem:[%s224 + $0x34] sm:$0xf] %v5225
      %5290 = vst [vmem:[%s224 + $0x38] sm:$0xf] %v5226
      %5291 = vst [vmem:[%s224 + $0x3c] sm:$0xf] %v5227
      %5292 = vst [vmem:[%s224 + $0x40] sm:$0xf] %v5228
      %5293 = vst [vmem:[%s224 + $0x44] sm:$0xf] %v5229
      %5294 = vst [vmem:[%s224 + $0x48] sm:$0xf] %v5230
      %5295 = vst [vmem:[%s224 + $0x4c] sm:$0xf] %v5231
      %5296 = vst [vmem:[%s224 + $0x50] sm:$0xf] %v5232
      %5297 = vst [vmem:[%s224 + $0x54] sm:$0xf] %v5233
      %5298 = vst [vmem:[%s224 + $0x58] sm:$0xf] %v5234
      %5299 = vst [vmem:[%s224 + $0x5c] sm:$0xf] %v5235
      %5300 = vst [vmem:[%s224 + $0x60] sm:$0xf] %v5236
      %5301 = vst [vmem:[%s224 + $0x64] sm:$0xf] %v5237
      %5302 = vst [vmem:[%s224 + $0x68] sm:$0xf] %v5238
      %5303 = vst [vmem:[%s224 + $0x6c] sm:$0xf] %v5239
      %5304 = vst [vmem:[%s224 + $0x70] sm:$0xf] %v5240
      %5305 = vst [vmem:[%s224 + $0x74] sm:$0xf] %v5241
      %5306 = vst [vmem:[%s224 + $0x78] sm:$0xf] %v5242
      %5307 = vst [vmem:[%s224 + $0x7c] sm:$0xf] %v5243
      %p5308 = scmp.lt.s32.totalorder %s16, 1
      %s5309 = scalar_select %p5308, %s16, 1
      %s5310 = smul.addr %s5309, 32
      %s5311 = smul.addr %s5310, 4
      %s5312 = scalar_lea.vmem %s5, %s5311
      // Predicated region
      $region41: #{decoder_block_forward.1} parent=39 // pred_check
        %p5313 = pneg %p144
      $region42: #{decoder_block_forward.1} parent=39 // pred_check_branch
        %5315 = sbr.rel (%p5313) target = $region44
      $region43: #{decoder_block_forward.1} parent=39 // pred_region
        _
      $region44: #{decoder_block_forward.1} parent=39 // pred_fallthru
        _
    $region40: #{decoder_block_forward.1} parent=5 // pred_fallthru
      _
    %p5316 = scmp.le.s32.totalorder 2, %s11
    // Predicated region
    $region45: #{decoder_block_forward.1} parent=5 // pred_check
      %p5317 = pneg %p5316
    $region46: #{decoder_block_forward.1} parent=5 // pred_check_branch
      %5319 = sbr.rel (%p5317) target = $region48
    $region47: #{decoder_block_forward.1} parent=5 // pred_region
      %s5320 = ssub.s32 %s11, 2
      // Predicated region
      $region49: #{decoder_block_forward.1} parent=47 // pred_check
        %p5321 = pneg %p150
      $region50: #{decoder_block_forward.1} parent=47 // pred_check_branch
        %5323 = sbr.rel (%p5321) target = $region52
      $region51: #{decoder_block_forward.1} parent=47 // pred_region
        %p5324 = scmp.lt.s32.totalorder %s17, 1
        %s5325 = scalar_select %p5324, %s17, 1
        %s5326 = smul.addr %s5325, 32
        %s5327 = smul.addr %s5326, 4
        %s5328 = scalar_lea.vmem %s5, %s5327
      $region52: #{decoder_block_forward.1} parent=47 // pred_fallthru
        _
    $region48: #{decoder_block_forward.1} parent=5 // pred_fallthru
      _
  $region6: #{decoder_block_forward.1} parent=0 // loop_footer
    %s15 = sadd.s32 1, %s11
  $region7: #{decoder_block_forward.1} parent=0 // loop_footer_branch
    %10 = sbr.rel target = $region3
  $region8: #{decoder_block_forward.1} parent=0 // loop_exit
    _

</llo_original>
